<compile_context>
chip_gen: v7x
topology: tpu7x:2x2x1
jax: 0.10.0
libtpu: 0.0.40
codegen_flags: <defaults>
</compile_context>

<pallas_src>
import functools

import jax
import jax.numpy as jnp
import numpy as np
from jax.experimental import pallas as pl
from jax.experimental.pallas import tpu as pltpu


# ----------------------------------------------------------------------------
# The fused Pallas kernel (whole network, single invocation, everything in VMEM)
# ----------------------------------------------------------------------------
def _lenet_kernel(x_ref, w1_ref, b1_ref, p1_ref, w3_ref, b3_ref, p3_ref,
                  w5_ref, b5_ref, w6_ref, b6_ref, wo_ref, bo_ref, o_ref, *, batch):
    f32, bf16 = jnp.float32, jnp.bfloat16
    B = batch
    K = 5                                   # conv kernel size
    W0, W1p, W2p = 32, 14, 5                # stored row strides per stage
    N0 = B * W0 * W0                        # lanes after C1 (junk borders included)
    N1 = B * W1p * W1p                      # lanes after pool1
    N2 = B * W2p * W2p                      # lanes after pool2

    # ---------------- C1: 5x5 conv (Cin=1) + bias + tanh (f32, VPU) ----------------
    # 25 shifted broadcast multiply-accumulates; channel dim pre-padded to 8 sublanes.
    x = jnp.concatenate(
        [x_ref[...], jnp.zeros((1, (K - 1) * W0 + (K - 1)), f32)], axis=1)  # (1, N0+132)
    w1 = w1_ref[...]                                      # (8, 25) f32, rows 6..7 are zero
    acc = jnp.zeros((8, N0), f32)
    for t in range(K * K):
        off = (t // K) * W0 + (t % K)
        acc = acc + w1[:, t:t + 1] * x[:, off:off + N0]
    y1 = jnp.tanh(acc + b1_ref[...])                      # (8, N0) f32

    # ---------------- avgpool 2x2: matmul with constant pooling matrix --------------
    p1 = p1_ref[...]                                      # (1024, 196) f32
    pooled = [jnp.dot(y1[:, b * W0 * W0:(b + 1) * W0 * W0], p1,
                      preferred_element_type=f32) for b in range(B)]        # (8, 196) each
    pad1 = (K - 1) * W1p + (K - 1)                        # 60 junk lanes for C3 tap slices
    a1 = jnp.concatenate(pooled + [jnp.zeros((8, pad1), f32)], axis=1)      # (8, N1 + 60)

    # ---------------- C3: in-kernel im2col (25 lane slices) + one bf16 matmul -------
    patches3 = jnp.concatenate(
        [a1[:, (t // K) * W1p + (t % K): (t // K) * W1p + (t % K) + N1]
         for t in range(K * K)], axis=0)                  # (200, N1) f32, 8-aligned concat
    y3 = jnp.tanh(jnp.dot(w3_ref[...], patches3.astype(bf16),
                          preferred_element_type=f32) + b3_ref[...])        # (16, N1) f32

    # ---------------- avgpool 2x2 -> (16, N2) ---------------------------------------
    p3 = p3_ref[...]                                      # (196, 25) f32
    a2 = jnp.concatenate(
        [jnp.dot(y3[:, b * W1p * W1p:(b + 1) * W1p * W1p], p3,
                 preferred_element_type=f32) for b in range(B)], axis=1)    # (16, N2) f32

    # ---------------- C5: 5x5 conv on 5x5 input == dense 400 -> 120 + tanh ----------
    L5 = (B - 1) * W2p * W2p + 1                          # junk-carrying lane count
    patches5 = jnp.concatenate([a2[:, t:t + L5] for t in range(K * K)], axis=0)  # (400, L5)
    y5 = jnp.tanh(jnp.dot(w5_ref[...], patches5.astype(bf16),
                          preferred_element_type=f32) + b5_ref[...])        # (120, L5)
    y5 = jnp.concatenate([y5[:, b * W2p * W2p:b * W2p * W2p + 1]
                          for b in range(B)], axis=1)     # (120, B) valid lanes only

    # ---------------- F6 (tanh) + output head (no activation), fused ----------------
    y6 = jnp.tanh(jnp.dot(w6_ref[...], y5.astype(bf16),
                          preferred_element_type=f32) + b6_ref[...])        # (84, B)
    o_ref[...] = jnp.dot(wo_ref[...], y6.astype(bf16),
                         preferred_element_type=f32) + bo_ref[...]          # (10, B)


# ----------------------------------------------------------------------------
# Host wrapper: one pallas_call, only metadata-level glue around it
# ----------------------------------------------------------------------------
def _lenet_forward_impl(x, params):
    B, C, H, W = x.shape
    assert (C, H, W) == (1, 32, 32), "LeNetOri expects 1x32x32 inputs"
    x_flat = x.astype(jnp.float32).reshape(1, B * H * W)   # metadata-only reshape

    out_t = pl.pallas_call(
        functools.partial(_lenet_kernel, batch=B),
        out_shape=jax.ShapeDtypeStruct((10, B), jnp.float32),
        in_specs=[pl.BlockSpec(memory_space=pltpu.MemorySpace.VMEM)] * 13,
        out_specs=pl.BlockSpec(memory_space=pltpu.MemorySpace.VMEM),
    )(x_flat,
      params["w1"], params["b1"], params["p1"],
      params["w3"], params["b3"], params["p3"],
      params["w5"], params["b5"],
      params["w6"], params["b6"],
      params["wo"], params["bo"])
    return out_t.T                                          # (B, 10)


lenet_forward = jax.jit(_lenet_forward_impl)


# ----------------------------------------------------------------------------
# One-time parameter preparation (all layout work happens here, not per forward)
# ----------------------------------------------------------------------------
def _pool_matrix(in_hw, out_hw):
    """(in_hw*in_hw, out_hw*out_hw) matrix performing 2x2 / stride-2 average pooling over
    a row-major spatial block whose row stride is in_hw (junk border lanes are never read)."""
    m = np.zeros((in_hw * in_hw, out_hw * out_hw), np.float32)
    for i in range(out_hw):
        for j in range(out_hw):
            for a in range(2):
                for c in range(2):
                    m[(2 * i + a) * in_hw + (2 * j + c), i * out_hw + j] = 0.25
    return jnp.asarray(m)


def prepare_params(raw):
    """Convert PyTorch-layout parameters into the fused kernel's layout, once:
    conv weights -> (Cout, kh*kw*Cin_padded) bf16 matmul matrices, biases -> (Cout, 1) f32
    columns, plus the constant pooling matrices.  Input-channel dims of C1/C3 are padded
    to 8 so every in-kernel sublane concatenation stays 8-aligned."""
    f32, bf16 = jnp.float32, jnp.bfloat16

    w1 = jnp.zeros((8, 25), f32).at[:6].set(raw["c1_w"].astype(f32).reshape(6, 25))
    b1 = jnp.zeros((8, 1), f32).at[:6, 0].set(raw["c1_b"].astype(f32))

    c3w = jnp.zeros((16, 8, 5, 5), f32).at[:, :6].set(raw["c3_w"].astype(f32))
    w3 = c3w.transpose(0, 2, 3, 1).reshape(16, 200).astype(bf16)      # col = (kh*5+kw)*8 + ci
    b3 = raw["c3_b"].astype(f32).reshape(16, 1)

    w5 = (raw["c5_w"].astype(f32).transpose(0, 2, 3, 1)
          .reshape(120, 400).astype(bf16))                            # col = (kh*5+kw)*16 + ci
    b5 = raw["c5_b"].astype(f32).reshape(120, 1)

    w6 = raw["f6_w"].astype(bf16)                                     # (84, 120)
    b6 = raw["f6_b"].astype(f32).reshape(84, 1)
    wo = raw["out_w"].astype(bf16)                                    # (10, 84)
    bo = raw["out_b"].astype(f32).reshape(10, 1)

    return dict(w1=w1, b1=b1, p1=_pool_matrix(32, 14),
                w3=w3, b3=b3, p3=_pool_matrix(14, 5),
                w5=w5, b5=b5, w6=w6, b6=b6, wo=wo, bo=bo)


# ----------------------------------------------------------------------------
# Deterministic parameter construction (PyTorch-default-style uniform init)
# ----------------------------------------------------------------------------
def _conv_params(key, cout, cin, k):
    bound = 1.0 / float(np.sqrt(cin * k * k))
    k1, k2 = jax.random.split(key)
    w = jax.random.uniform(k1, (cout, cin, k, k), jnp.float32, -bound, bound)
    b = jax.random.uniform(k2, (cout,), jnp.float32, -bound, bound)
    return w, b


def _linear_params(key, cin, cout):
    bound = 1.0 / float(np.sqrt(cin))
    k1, k2 = jax.random.split(key)
    w = jax.random.uniform(k1, (cout, cin), jnp.float32, -bound, bound)
    b = jax.random.uniform(k2, (cout,), jnp.float32, -bound, bound)
    return w, b


def build_c3_params(fs_w, fs_b, sc_w, sc_b, th_w, th_b, fo_w, fo_b):
    """Fold the 16 channel-subset convolutions of convC3 (with shared sub-layer weights)
    into one equivalent dense (16, 6, 5, 5) conv weight with zeros on unselected input
    channels.  Mathematically identical to the PyTorch code."""
    k = 5
    w = jnp.zeros((16, 6, k, k), jnp.float32)
    b = jnp.zeros((16,), jnp.float32)
    out = 0
    # sub layer 1: fsConv2D over channels {i, i+1, i+2} % 6, i = 0..5
    for i in range(6):
        for m, c in enumerate([(i + m) % 6 for m in range(3)]):
            w = w.at[out, c].set(fs_w[0, m])
        b = b.at[out].set(fs_b[0])
        out += 1
    # sub layer 2: scConv2D over channels {i..i+3} % 6, i = 0..5
    for i in range(6):
        for m, c in enumerate([(i + m) % 6 for m in range(4)]):
            w = w.at[out, c].set(sc_w[0, m])
        b = b.at[out].set(sc_b[0])
        out += 1
    # sub layer 3: thConv2D over channels ([0,1,3,4]+i) % 6, i = 0..2
    for i in range(3):
        for m, c in enumerate([(j + i) % 6 for j in (0, 1, 3, 4)]):
            w = w.at[out, c].set(th_w[0, m])
        b = b.at[out].set(th_b[0])
        out += 1
    # sub layer 4: foConv2D over all 6 channels
    w = w.at[out].set(fo_w[0])
    b = b.at[out].set(fo_b[0])
    return w, b


# ----------------------------------------------------------------------------
# Plain-JAX reference (f32) used only for a correctness sanity check
# ----------------------------------------------------------------------------
def _reference_forward(x, raw):
    f32 = jnp.float32

    def conv(a, w, b):
        y = jax.lax.conv_general_dilated(a, w, (1, 1), "VALID",
                                         dimension_numbers=("NCHW", "OIHW", "NCHW"))
        return y + b.reshape(1, -1, 1, 1)

    def pool(a):
        s = jax.lax.reduce_window(a, 0.0, jax.lax.add, (1, 1, 2, 2), (1, 1, 2, 2), "VALID")
        return s * 0.25

    out = jnp.tanh(conv(x.astype(f32), raw["c1_w"], raw["c1_b"]))
    out = pool(out)
    out = jnp.tanh(conv(out, raw["c3_w"], raw["c3_b"]))
    out = pool(out)
    out = jnp.tanh(conv(out, raw["c5_w"], raw["c5_b"]))
    out = out.reshape(out.shape[0], -1)
    out = jnp.tanh(out @ raw["f6_w"].T + raw["f6_b"])
    return out @ raw["out_w"].T + raw["out_b"]


if __name__ == "__main__":
    key = jax.random.PRNGKey(0)
    keys = jax.random.split(key, 9)

    c1_w, c1_b = _conv_params(keys[0], 6, 1, 5)
    fs_w, fs_b = _conv_params(keys[1], 1, 3, 5)
    sc_w, sc_b = _conv_params(keys[2], 1, 4, 5)
    th_w, th_b = _conv_params(keys[3], 1, 4, 5)
    fo_w, fo_b = _conv_params(keys[4], 1, 6, 5)
    c5_w, c5_b = _conv_params(keys[5], 120, 16, 5)
    f6_w, f6_b = _linear_params(keys[6], 120, 84)
    out_w, out_b = _linear_params(keys[7], 84, 10)
    c3_w, c3_b = build_c3_params(fs_w, fs_b, sc_w, sc_b, th_w, th_b, fo_w, fo_b)

    raw = dict(c1_w=c1_w, c1_b=c1_b, c3_w=c3_w, c3_b=c3_b, c5_w=c5_w, c5_b=c5_b,
               f6_w=f6_w, f6_b=f6_b, out_w=out_w, out_b=out_b)
    params = prepare_params(raw)

    # LeNet-5 requires 1x32x32 inputs (C5's 5x5 kernel reduces spatial to 1x1 -> 120 feats).
    x = jax.random.normal(keys[8], (2, 1, 32, 32), jnp.float32)

    y = jax.block_until_ready(lenet_forward(x, params))
    assert y.shape == (2, 10) and y.dtype == jnp.float32

    y_ref = _reference_forward(x, raw)
    assert float(jnp.max(jnp.abs(y - y_ref))) < 8e-2, "mismatch vs f32 reference"

    print("KERNEL_OK")
</pallas_src>

<mosaic_0001>
module attributes {stable_mosaic.version = 11 : i64} {
  func.func @_lenet_kernel(%arg0: memref<1x2048xf32, #tpu.memory_space<vmem>>, %arg1: memref<8x25xf32, #tpu.memory_space<vmem>>, %arg2: memref<8x1xf32, #tpu.memory_space<vmem>>, %arg3: memref<1024x196xf32, #tpu.memory_space<vmem>>, %arg4: memref<16x200xbf16, #tpu.memory_space<vmem>>, %arg5: memref<16x1xf32, #tpu.memory_space<vmem>>, %arg6: memref<196x25xf32, #tpu.memory_space<vmem>>, %arg7: memref<120x400xbf16, #tpu.memory_space<vmem>>, %arg8: memref<120x1xf32, #tpu.memory_space<vmem>>, %arg9: memref<84x120xbf16, #tpu.memory_space<vmem>>, %arg10: memref<84x1xf32, #tpu.memory_space<vmem>>, %arg11: memref<10x84xbf16, #tpu.memory_space<vmem>>, %arg12: memref<10x1xf32, #tpu.memory_space<vmem>>, %arg13: memref<10x2xf32, #tpu.memory_space<vmem>>) attributes {dimension_semantics = [], scalar_prefetch = 0 : i64, scratch_operands = 0 : i64, tpu.core_type = #tpu.core_type<tc>} {
    %c0 = arith.constant 0 : index
    %c0_0 = arith.constant 0 : index
    %0 = vector.load %arg0[%c0, %c0_0] : memref<1x2048xf32, #tpu.memory_space<vmem>>, vector<1x2048xf32>
    %cst = arith.constant 0.000000e+00 : f32
    %1 = vector.broadcast %cst : f32 to vector<1x132xf32>
    %2 = tpu.concatenate %0, %1 in 1 : vector<1x2048xf32>, vector<1x132xf32> -> vector<1x2180xf32>
    %c0_1 = arith.constant 0 : index
    %c0_2 = arith.constant 0 : index
    %3 = vector.load %arg1[%c0_1, %c0_2] : memref<8x25xf32, #tpu.memory_space<vmem>>, vector<8x25xf32>
    %cst_3 = arith.constant 0.000000e+00 : f32
    %4 = vector.broadcast %cst_3 : f32 to vector<8x2048xf32>
    %5 = vector.extract_strided_slice %3 {offsets = [0, 0], sizes = [8, 1], strides = [1, 1]} : vector<8x25xf32> to vector<8x1xf32>
    %6 = vector.extract_strided_slice %2 {offsets = [0, 0], sizes = [1, 2048], strides = [1, 1]} : vector<1x2180xf32> to vector<1x2048xf32>
    %7 = vector.broadcast %5 : vector<8x1xf32> to vector<8x2048xf32>
    %8 = vector.broadcast %6 : vector<1x2048xf32> to vector<8x2048xf32>
    %9 = arith.mulf %7, %8 : vector<8x2048xf32>
    %10 = arith.addf %4, %9 : vector<8x2048xf32>
    %11 = vector.extract_strided_slice %3 {offsets = [0, 1], sizes = [8, 1], strides = [1, 1]} : vector<8x25xf32> to vector<8x1xf32>
    %12 = vector.extract_strided_slice %2 {offsets = [0, 1], sizes = [1, 2048], strides = [1, 1]} : vector<1x2180xf32> to vector<1x2048xf32>
    %13 = vector.broadcast %11 : vector<8x1xf32> to vector<8x2048xf32>
    %14 = vector.broadcast %12 : vector<1x2048xf32> to vector<8x2048xf32>
    %15 = arith.mulf %13, %14 : vector<8x2048xf32>
    %16 = arith.addf %10, %15 : vector<8x2048xf32>
    %17 = vector.extract_strided_slice %3 {offsets = [0, 2], sizes = [8, 1], strides = [1, 1]} : vector<8x25xf32> to vector<8x1xf32>
    %18 = vector.extract_strided_slice %2 {offsets = [0, 2], sizes = [1, 2048], strides = [1, 1]} : vector<1x2180xf32> to vector<1x2048xf32>
    %19 = vector.broadcast %17 : vector<8x1xf32> to vector<8x2048xf32>
    %20 = vector.broadcast %18 : vector<1x2048xf32> to vector<8x2048xf32>
    %21 = arith.mulf %19, %20 : vector<8x2048xf32>
    %22 = arith.addf %16, %21 : vector<8x2048xf32>
    %23 = vector.extract_strided_slice %3 {offsets = [0, 3], sizes = [8, 1], strides = [1, 1]} : vector<8x25xf32> to vector<8x1xf32>
    %24 = vector.extract_strided_slice %2 {offsets = [0, 3], sizes = [1, 2048], strides = [1, 1]} : vector<1x2180xf32> to vector<1x2048xf32>
    %25 = vector.broadcast %23 : vector<8x1xf32> to vector<8x2048xf32>
    %26 = vector.broadcast %24 : vector<1x2048xf32> to vector<8x2048xf32>
    %27 = arith.mulf %25, %26 : vector<8x2048xf32>
    %28 = arith.addf %22, %27 : vector<8x2048xf32>
    %29 = vector.extract_strided_slice %3 {offsets = [0, 4], sizes = [8, 1], strides = [1, 1]} : vector<8x25xf32> to vector<8x1xf32>
    %30 = vector.extract_strided_slice %2 {offsets = [0, 4], sizes = [1, 2048], strides = [1, 1]} : vector<1x2180xf32> to vector<1x2048xf32>
    %31 = vector.broadcast %29 : vector<8x1xf32> to vector<8x2048xf32>
    %32 = vector.broadcast %30 : vector<1x2048xf32> to vector<8x2048xf32>
    %33 = arith.mulf %31, %32 : vector<8x2048xf32>
    %34 = arith.addf %28, %33 : vector<8x2048xf32>
    %35 = vector.extract_strided_slice %3 {offsets = [0, 5], sizes = [8, 1], strides = [1, 1]} : vector<8x25xf32> to vector<8x1xf32>
    %36 = vector.extract_strided_slice %2 {offsets = [0, 32], sizes = [1, 2048], strides = [1, 1]} : vector<1x2180xf32> to vector<1x2048xf32>
    %37 = vector.broadcast %35 : vector<8x1xf32> to vector<8x2048xf32>
    %38 = vector.broadcast %36 : vector<1x2048xf32> to vector<8x2048xf32>
    %39 = arith.mulf %37, %38 : vector<8x2048xf32>
    %40 = arith.addf %34, %39 : vector<8x2048xf32>
    %41 = vector.extract_strided_slice %3 {offsets = [0, 6], sizes = [8, 1], strides = [1, 1]} : vector<8x25xf32> to vector<8x1xf32>
    %42 = vector.extract_strided_slice %2 {offsets = [0, 33], sizes = [1, 2048], strides = [1, 1]} : vector<1x2180xf32> to vector<1x2048xf32>
    %43 = vector.broadcast %41 : vector<8x1xf32> to vector<8x2048xf32>
    %44 = vector.broadcast %42 : vector<1x2048xf32> to vector<8x2048xf32>
    %45 = arith.mulf %43, %44 : vector<8x2048xf32>
    %46 = arith.addf %40, %45 : vector<8x2048xf32>
    %47 = vector.extract_strided_slice %3 {offsets = [0, 7], sizes = [8, 1], strides = [1, 1]} : vector<8x25xf32> to vector<8x1xf32>
    %48 = vector.extract_strided_slice %2 {offsets = [0, 34], sizes = [1, 2048], strides = [1, 1]} : vector<1x2180xf32> to vector<1x2048xf32>
    %49 = vector.broadcast %47 : vector<8x1xf32> to vector<8x2048xf32>
    %50 = vector.broadcast %48 : vector<1x2048xf32> to vector<8x2048xf32>
    %51 = arith.mulf %49, %50 : vector<8x2048xf32>
    %52 = arith.addf %46, %51 : vector<8x2048xf32>
    %53 = vector.extract_strided_slice %3 {offsets = [0, 8], sizes = [8, 1], strides = [1, 1]} : vector<8x25xf32> to vector<8x1xf32>
    %54 = vector.extract_strided_slice %2 {offsets = [0, 35], sizes = [1, 2048], strides = [1, 1]} : vector<1x2180xf32> to vector<1x2048xf32>
    %55 = vector.broadcast %53 : vector<8x1xf32> to vector<8x2048xf32>
    %56 = vector.broadcast %54 : vector<1x2048xf32> to vector<8x2048xf32>
    %57 = arith.mulf %55, %56 : vector<8x2048xf32>
    %58 = arith.addf %52, %57 : vector<8x2048xf32>
    %59 = vector.extract_strided_slice %3 {offsets = [0, 9], sizes = [8, 1], strides = [1, 1]} : vector<8x25xf32> to vector<8x1xf32>
    %60 = vector.extract_strided_slice %2 {offsets = [0, 36], sizes = [1, 2048], strides = [1, 1]} : vector<1x2180xf32> to vector<1x2048xf32>
    %61 = vector.broadcast %59 : vector<8x1xf32> to vector<8x2048xf32>
    %62 = vector.broadcast %60 : vector<1x2048xf32> to vector<8x2048xf32>
    %63 = arith.mulf %61, %62 : vector<8x2048xf32>
    %64 = arith.addf %58, %63 : vector<8x2048xf32>
    %65 = vector.extract_strided_slice %3 {offsets = [0, 10], sizes = [8, 1], strides = [1, 1]} : vector<8x25xf32> to vector<8x1xf32>
    %66 = vector.extract_strided_slice %2 {offsets = [0, 64], sizes = [1, 2048], strides = [1, 1]} : vector<1x2180xf32> to vector<1x2048xf32>
    %67 = vector.broadcast %65 : vector<8x1xf32> to vector<8x2048xf32>
    %68 = vector.broadcast %66 : vector<1x2048xf32> to vector<8x2048xf32>
    %69 = arith.mulf %67, %68 : vector<8x2048xf32>
    %70 = arith.addf %64, %69 : vector<8x2048xf32>
    %71 = vector.extract_strided_slice %3 {offsets = [0, 11], sizes = [8, 1], strides = [1, 1]} : vector<8x25xf32> to vector<8x1xf32>
    %72 = vector.extract_strided_slice %2 {offsets = [0, 65], sizes = [1, 2048], strides = [1, 1]} : vector<1x2180xf32> to vector<1x2048xf32>
    %73 = vector.broadcast %71 : vector<8x1xf32> to vector<8x2048xf32>
    %74 = vector.broadcast %72 : vector<1x2048xf32> to vector<8x2048xf32>
    %75 = arith.mulf %73, %74 : vector<8x2048xf32>
    %76 = arith.addf %70, %75 : vector<8x2048xf32>
    %77 = vector.extract_strided_slice %3 {offsets = [0, 12], sizes = [8, 1], strides = [1, 1]} : vector<8x25xf32> to vector<8x1xf32>
    %78 = vector.extract_strided_slice %2 {offsets = [0, 66], sizes = [1, 2048], strides = [1, 1]} : vector<1x2180xf32> to vector<1x2048xf32>
    %79 = vector.broadcast %77 : vector<8x1xf32> to vector<8x2048xf32>
    %80 = vector.broadcast %78 : vector<1x2048xf32> to vector<8x2048xf32>
    %81 = arith.mulf %79, %80 : vector<8x2048xf32>
    %82 = arith.addf %76, %81 : vector<8x2048xf32>
    %83 = vector.extract_strided_slice %3 {offsets = [0, 13], sizes = [8, 1], strides = [1, 1]} : vector<8x25xf32> to vector<8x1xf32>
    %84 = vector.extract_strided_slice %2 {offsets = [0, 67], sizes = [1, 2048], strides = [1, 1]} : vector<1x2180xf32> to vector<1x2048xf32>
    %85 = vector.broadcast %83 : vector<8x1xf32> to vector<8x2048xf32>
    %86 = vector.broadcast %84 : vector<1x2048xf32> to vector<8x2048xf32>
    %87 = arith.mulf %85, %86 : vector<8x2048xf32>
    %88 = arith.addf %82, %87 : vector<8x2048xf32>
    %89 = vector.extract_strided_slice %3 {offsets = [0, 14], sizes = [8, 1], strides = [1, 1]} : vector<8x25xf32> to vector<8x1xf32>
    %90 = vector.extract_strided_slice %2 {offsets = [0, 68], sizes = [1, 2048], strides = [1, 1]} : vector<1x2180xf32> to vector<1x2048xf32>
    %91 = vector.broadcast %89 : vector<8x1xf32> to vector<8x2048xf32>
    %92 = vector.broadcast %90 : vector<1x2048xf32> to vector<8x2048xf32>
    %93 = arith.mulf %91, %92 : vector<8x2048xf32>
    %94 = arith.addf %88, %93 : vector<8x2048xf32>
    %95 = vector.extract_strided_slice %3 {offsets = [0, 15], sizes = [8, 1], strides = [1, 1]} : vector<8x25xf32> to vector<8x1xf32>
    %96 = vector.extract_strided_slice %2 {offsets = [0, 96], sizes = [1, 2048], strides = [1, 1]} : vector<1x2180xf32> to vector<1x2048xf32>
    %97 = vector.broadcast %95 : vector<8x1xf32> to vector<8x2048xf32>
    %98 = vector.broadcast %96 : vector<1x2048xf32> to vector<8x2048xf32>
    %99 = arith.mulf %97, %98 : vector<8x2048xf32>
    %100 = arith.addf %94, %99 : vector<8x2048xf32>
    %101 = vector.extract_strided_slice %3 {offsets = [0, 16], sizes = [8, 1], strides = [1, 1]} : vector<8x25xf32> to vector<8x1xf32>
    %102 = vector.extract_strided_slice %2 {offsets = [0, 97], sizes = [1, 2048], strides = [1, 1]} : vector<1x2180xf32> to vector<1x2048xf32>
    %103 = vector.broadcast %101 : vector<8x1xf32> to vector<8x2048xf32>
    %104 = vector.broadcast %102 : vector<1x2048xf32> to vector<8x2048xf32>
    %105 = arith.mulf %103, %104 : vector<8x2048xf32>
    %106 = arith.addf %100, %105 : vector<8x2048xf32>
    %107 = vector.extract_strided_slice %3 {offsets = [0, 17], sizes = [8, 1], strides = [1, 1]} : vector<8x25xf32> to vector<8x1xf32>
    %108 = vector.extract_strided_slice %2 {offsets = [0, 98], sizes = [1, 2048], strides = [1, 1]} : vector<1x2180xf32> to vector<1x2048xf32>
    %109 = vector.broadcast %107 : vector<8x1xf32> to vector<8x2048xf32>
    %110 = vector.broadcast %108 : vector<1x2048xf32> to vector<8x2048xf32>
    %111 = arith.mulf %109, %110 : vector<8x2048xf32>
    %112 = arith.addf %106, %111 : vector<8x2048xf32>
    %113 = vector.extract_strided_slice %3 {offsets = [0, 18], sizes = [8, 1], strides = [1, 1]} : vector<8x25xf32> to vector<8x1xf32>
    %114 = vector.extract_strided_slice %2 {offsets = [0, 99], sizes = [1, 2048], strides = [1, 1]} : vector<1x2180xf32> to vector<1x2048xf32>
    %115 = vector.broadcast %113 : vector<8x1xf32> to vector<8x2048xf32>
    %116 = vector.broadcast %114 : vector<1x2048xf32> to vector<8x2048xf32>
    %117 = arith.mulf %115, %116 : vector<8x2048xf32>
    %118 = arith.addf %112, %117 : vector<8x2048xf32>
    %119 = vector.extract_strided_slice %3 {offsets = [0, 19], sizes = [8, 1], strides = [1, 1]} : vector<8x25xf32> to vector<8x1xf32>
    %120 = vector.extract_strided_slice %2 {offsets = [0, 100], sizes = [1, 2048], strides = [1, 1]} : vector<1x2180xf32> to vector<1x2048xf32>
    %121 = vector.broadcast %119 : vector<8x1xf32> to vector<8x2048xf32>
    %122 = vector.broadcast %120 : vector<1x2048xf32> to vector<8x2048xf32>
    %123 = arith.mulf %121, %122 : vector<8x2048xf32>
    %124 = arith.addf %118, %123 : vector<8x2048xf32>
    %125 = vector.extract_strided_slice %3 {offsets = [0, 20], sizes = [8, 1], strides = [1, 1]} : vector<8x25xf32> to vector<8x1xf32>
    %126 = vector.extract_strided_slice %2 {offsets = [0, 128], sizes = [1, 2048], strides = [1, 1]} : vector<1x2180xf32> to vector<1x2048xf32>
    %127 = vector.broadcast %125 : vector<8x1xf32> to vector<8x2048xf32>
    %128 = vector.broadcast %126 : vector<1x2048xf32> to vector<8x2048xf32>
    %129 = arith.mulf %127, %128 : vector<8x2048xf32>
    %130 = arith.addf %124, %129 : vector<8x2048xf32>
    %131 = vector.extract_strided_slice %3 {offsets = [0, 21], sizes = [8, 1], strides = [1, 1]} : vector<8x25xf32> to vector<8x1xf32>
    %132 = vector.extract_strided_slice %2 {offsets = [0, 129], sizes = [1, 2048], strides = [1, 1]} : vector<1x2180xf32> to vector<1x2048xf32>
    %133 = vector.broadcast %131 : vector<8x1xf32> to vector<8x2048xf32>
    %134 = vector.broadcast %132 : vector<1x2048xf32> to vector<8x2048xf32>
    %135 = arith.mulf %133, %134 : vector<8x2048xf32>
    %136 = arith.addf %130, %135 : vector<8x2048xf32>
    %137 = vector.extract_strided_slice %3 {offsets = [0, 22], sizes = [8, 1], strides = [1, 1]} : vector<8x25xf32> to vector<8x1xf32>
    %138 = vector.extract_strided_slice %2 {offsets = [0, 130], sizes = [1, 2048], strides = [1, 1]} : vector<1x2180xf32> to vector<1x2048xf32>
    %139 = vector.broadcast %137 : vector<8x1xf32> to vector<8x2048xf32>
    %140 = vector.broadcast %138 : vector<1x2048xf32> to vector<8x2048xf32>
    %141 = arith.mulf %139, %140 : vector<8x2048xf32>
    %142 = arith.addf %136, %141 : vector<8x2048xf32>
    %143 = vector.extract_strided_slice %3 {offsets = [0, 23], sizes = [8, 1], strides = [1, 1]} : vector<8x25xf32> to vector<8x1xf32>
    %144 = vector.extract_strided_slice %2 {offsets = [0, 131], sizes = [1, 2048], strides = [1, 1]} : vector<1x2180xf32> to vector<1x2048xf32>
    %145 = vector.broadcast %143 : vector<8x1xf32> to vector<8x2048xf32>
    %146 = vector.broadcast %144 : vector<1x2048xf32> to vector<8x2048xf32>
    %147 = arith.mulf %145, %146 : vector<8x2048xf32>
    %148 = arith.addf %142, %147 : vector<8x2048xf32>
    %149 = vector.extract_strided_slice %3 {offsets = [0, 24], sizes = [8, 1], strides = [1, 1]} : vector<8x25xf32> to vector<8x1xf32>
    %150 = vector.extract_strided_slice %2 {offsets = [0, 132], sizes = [1, 2048], strides = [1, 1]} : vector<1x2180xf32> to vector<1x2048xf32>
    %151 = vector.broadcast %149 : vector<8x1xf32> to vector<8x2048xf32>
    %152 = vector.broadcast %150 : vector<1x2048xf32> to vector<8x2048xf32>
    %153 = arith.mulf %151, %152 : vector<8x2048xf32>
    %154 = arith.addf %148, %153 : vector<8x2048xf32>
    %c0_4 = arith.constant 0 : index
    %c0_5 = arith.constant 0 : index
    %155 = vector.load %arg2[%c0_4, %c0_5] : memref<8x1xf32, #tpu.memory_space<vmem>>, vector<8x1xf32>
    %156 = vector.broadcast %155 : vector<8x1xf32> to vector<8x2048xf32>
    %157 = arith.addf %154, %156 : vector<8x2048xf32>
    %158 = math.tanh %157 : vector<8x2048xf32>
    %c0_6 = arith.constant 0 : index
    %c0_7 = arith.constant 0 : index
    %159 = vector.load %arg3[%c0_6, %c0_7] : memref<1024x196xf32, #tpu.memory_space<vmem>>, vector<1024x196xf32>
    %160 = vector.extract_strided_slice %158 {offsets = [0, 0], sizes = [8, 1024], strides = [1, 1]} : vector<8x2048xf32> to vector<8x1024xf32>
    %cst_8 = arith.constant dense<0.000000e+00> : vector<8x196xf32>
    %161 = tpu.matmul %160, %159, %cst_8 {dimension_numbers = #tpu.dot_dimension_numbers<[1], [0], [0], [1], [0, 0, 1, 1], [], []>} : vector<8x1024xf32>, vector<1024x196xf32>, vector<8x196xf32> -> vector<8x196xf32>
    %162 = vector.extract_strided_slice %158 {offsets = [0, 1024], sizes = [8, 1024], strides = [1, 1]} : vector<8x2048xf32> to vector<8x1024xf32>
    %cst_9 = arith.constant dense<0.000000e+00> : vector<8x196xf32>
    %163 = tpu.matmul %162, %159, %cst_9 {dimension_numbers = #tpu.dot_dimension_numbers<[1], [0], [0], [1], [0, 0, 1, 1], [], []>} : vector<8x1024xf32>, vector<1024x196xf32>, vector<8x196xf32> -> vector<8x196xf32>
    %cst_10 = arith.constant 0.000000e+00 : f32
    %164 = vector.broadcast %cst_10 : f32 to vector<8x60xf32>
    %165 = tpu.concatenate %161, %163, %164 in 1 : vector<8x196xf32>, vector<8x196xf32>, vector<8x60xf32> -> vector<8x452xf32>
    %166 = vector.extract_strided_slice %165 {offsets = [0, 0], sizes = [8, 392], strides = [1, 1]} : vector<8x452xf32> to vector<8x392xf32>
    %167 = vector.extract_strided_slice %165 {offsets = [0, 1], sizes = [8, 392], strides = [1, 1]} : vector<8x452xf32> to vector<8x392xf32>
    %168 = vector.extract_strided_slice %165 {offsets = [0, 2], sizes = [8, 392], strides = [1, 1]} : vector<8x452xf32> to vector<8x392xf32>
    %169 = vector.extract_strided_slice %165 {offsets = [0, 3], sizes = [8, 392], strides = [1, 1]} : vector<8x452xf32> to vector<8x392xf32>
    %170 = vector.extract_strided_slice %165 {offsets = [0, 4], sizes = [8, 392], strides = [1, 1]} : vector<8x452xf32> to vector<8x392xf32>
    %171 = vector.extract_strided_slice %165 {offsets = [0, 14], sizes = [8, 392], strides = [1, 1]} : vector<8x452xf32> to vector<8x392xf32>
    %172 = vector.extract_strided_slice %165 {offsets = [0, 15], sizes = [8, 392], strides = [1, 1]} : vector<8x452xf32> to vector<8x392xf32>
    %173 = vector.extract_strided_slice %165 {offsets = [0, 16], sizes = [8, 392], strides = [1, 1]} : vector<8x452xf32> to vector<8x392xf32>
    %174 = vector.extract_strided_slice %165 {offsets = [0, 17], sizes = [8, 392], strides = [1, 1]} : vector<8x452xf32> to vector<8x392xf32>
    %175 = vector.extract_strided_slice %165 {offsets = [0, 18], sizes = [8, 392], strides = [1, 1]} : vector<8x452xf32> to vector<8x392xf32>
    %176 = vector.extract_strided_slice %165 {offsets = [0, 28], sizes = [8, 392], strides = [1, 1]} : vector<8x452xf32> to vector<8x392xf32>
    %177 = vector.extract_strided_slice %165 {offsets = [0, 29], sizes = [8, 392], strides = [1, 1]} : vector<8x452xf32> to vector<8x392xf32>
    %178 = vector.extract_strided_slice %165 {offsets = [0, 30], sizes = [8, 392], strides = [1, 1]} : vector<8x452xf32> to vector<8x392xf32>
    %179 = vector.extract_strided_slice %165 {offsets = [0, 31], sizes = [8, 392], strides = [1, 1]} : vector<8x452xf32> to vector<8x392xf32>
    %180 = vector.extract_strided_slice %165 {offsets = [0, 32], sizes = [8, 392], strides = [1, 1]} : vector<8x452xf32> to vector<8x392xf32>
    %181 = vector.extract_strided_slice %165 {offsets = [0, 42], sizes = [8, 392], strides = [1, 1]} : vector<8x452xf32> to vector<8x392xf32>
    %182 = vector.extract_strided_slice %165 {offsets = [0, 43], sizes = [8, 392], strides = [1, 1]} : vector<8x452xf32> to vector<8x392xf32>
    %183 = vector.extract_strided_slice %165 {offsets = [0, 44], sizes = [8, 392], strides = [1, 1]} : vector<8x452xf32> to vector<8x392xf32>
    %184 = vector.extract_strided_slice %165 {offsets = [0, 45], sizes = [8, 392], strides = [1, 1]} : vector<8x452xf32> to vector<8x392xf32>
    %185 = vector.extract_strided_slice %165 {offsets = [0, 46], sizes = [8, 392], strides = [1, 1]} : vector<8x452xf32> to vector<8x392xf32>
    %186 = vector.extract_strided_slice %165 {offsets = [0, 56], sizes = [8, 392], strides = [1, 1]} : vector<8x452xf32> to vector<8x392xf32>
    %187 = vector.extract_strided_slice %165 {offsets = [0, 57], sizes = [8, 392], strides = [1, 1]} : vector<8x452xf32> to vector<8x392xf32>
    %188 = vector.extract_strided_slice %165 {offsets = [0, 58], sizes = [8, 392], strides = [1, 1]} : vector<8x452xf32> to vector<8x392xf32>
    %189 = vector.extract_strided_slice %165 {offsets = [0, 59], sizes = [8, 392], strides = [1, 1]} : vector<8x452xf32> to vector<8x392xf32>
    %190 = vector.extract_strided_slice %165 {offsets = [0, 60], sizes = [8, 392], strides = [1, 1]} : vector<8x452xf32> to vector<8x392xf32>
    %191 = tpu.concatenate %166, %167, %168, %169, %170, %171, %172, %173, %174, %175, %176, %177, %178, %179, %180, %181 in 0 : vector<8x392xf32>, vector<8x392xf32>, vector<8x392xf32>, vector<8x392xf32>, vector<8x392xf32>, vector<8x392xf32>, vector<8x392xf32>, vector<8x392xf32>, vector<8x392xf32>, vector<8x392xf32>, vector<8x392xf32>, vector<8x392xf32>, vector<8x392xf32>, vector<8x392xf32>, vector<8x392xf32>, vector<8x392xf32> -> vector<128x392xf32>
    %192 = tpu.concatenate %182, %183, %184, %185, %186, %187, %188, %189, %190 in 0 : vector<8x392xf32>, vector<8x392xf32>, vector<8x392xf32>, vector<8x392xf32>, vector<8x392xf32>, vector<8x392xf32>, vector<8x392xf32>, vector<8x392xf32>, vector<8x392xf32> -> vector<72x392xf32>
    %193 = tpu.concatenate %191, %192 in 0 : vector<128x392xf32>, vector<72x392xf32> -> vector<200x392xf32>
    %c0_11 = arith.constant 0 : index
    %c0_12 = arith.constant 0 : index
    %194 = vector.load %arg4[%c0_11, %c0_12] : memref<16x200xbf16, #tpu.memory_space<vmem>>, vector<16x200xbf16>
    %195 = arith.truncf %193 : vector<200x392xf32> to vector<200x392xbf16>
    %cst_13 = arith.constant dense<0.000000e+00> : vector<16x392xf32>
    %196 = tpu.matmul %194, %195, %cst_13 {dimension_numbers = #tpu.dot_dimension_numbers<[1], [0], [0], [1], [0, 0, 1, 1], [], []>} : vector<16x200xbf16>, vector<200x392xbf16>, vector<16x392xf32> -> vector<16x392xf32>
    %c0_14 = arith.constant 0 : index
    %c0_15 = arith.constant 0 : index
    %197 = vector.load %arg5[%c0_14, %c0_15] : memref<16x1xf32, #tpu.memory_space<vmem>>, vector<16x1xf32>
    %198 = vector.broadcast %197 : vector<16x1xf32> to vector<16x392xf32>
    %199 = arith.addf %196, %198 : vector<16x392xf32>
    %200 = math.tanh %199 : vector<16x392xf32>
    %c0_16 = arith.constant 0 : index
    %c0_17 = arith.constant 0 : index
    %201 = vector.load %arg6[%c0_16, %c0_17] : memref<196x25xf32, #tpu.memory_space<vmem>>, vector<196x25xf32>
    %202 = vector.extract_strided_slice %200 {offsets = [0, 0], sizes = [16, 196], strides = [1, 1]} : vector<16x392xf32> to vector<16x196xf32>
    %cst_18 = arith.constant dense<0.000000e+00> : vector<16x25xf32>
    %203 = tpu.matmul %202, %201, %cst_18 {dimension_numbers = #tpu.dot_dimension_numbers<[1], [0], [0], [1], [0, 0, 1, 1], [], []>} : vector<16x196xf32>, vector<196x25xf32>, vector<16x25xf32> -> vector<16x25xf32>
    %204 = vector.extract_strided_slice %200 {offsets = [0, 196], sizes = [16, 196], strides = [1, 1]} : vector<16x392xf32> to vector<16x196xf32>
    %cst_19 = arith.constant dense<0.000000e+00> : vector<16x25xf32>
    %205 = tpu.matmul %204, %201, %cst_19 {dimension_numbers = #tpu.dot_dimension_numbers<[1], [0], [0], [1], [0, 0, 1, 1], [], []>} : vector<16x196xf32>, vector<196x25xf32>, vector<16x25xf32> -> vector<16x25xf32>
    %206 = tpu.concatenate %203, %205 in 1 : vector<16x25xf32>, vector<16x25xf32> -> vector<16x50xf32>
    %207 = vector.extract_strided_slice %206 {offsets = [0, 0], sizes = [16, 26], strides = [1, 1]} : vector<16x50xf32> to vector<16x26xf32>
    %208 = vector.extract_strided_slice %206 {offsets = [0, 1], sizes = [16, 26], strides = [1, 1]} : vector<16x50xf32> to vector<16x26xf32>
    %209 = vector.extract_strided_slice %206 {offsets = [0, 2], sizes = [16, 26], strides = [1, 1]} : vector<16x50xf32> to vector<16x26xf32>
    %210 = vector.extract_strided_slice %206 {offsets = [0, 3], sizes = [16, 26], strides = [1, 1]} : vector<16x50xf32> to vector<16x26xf32>
    %211 = vector.extract_strided_slice %206 {offsets = [0, 4], sizes = [16, 26], strides = [1, 1]} : vector<16x50xf32> to vector<16x26xf32>
    %212 = vector.extract_strided_slice %206 {offsets = [0, 5], sizes = [16, 26], strides = [1, 1]} : vector<16x50xf32> to vector<16x26xf32>
    %213 = vector.extract_strided_slice %206 {offsets = [0, 6], sizes = [16, 26], strides = [1, 1]} : vector<16x50xf32> to vector<16x26xf32>
    %214 = vector.extract_strided_slice %206 {offsets = [0, 7], sizes = [16, 26], strides = [1, 1]} : vector<16x50xf32> to vector<16x26xf32>
    %215 = vector.extract_strided_slice %206 {offsets = [0, 8], sizes = [16, 26], strides = [1, 1]} : vector<16x50xf32> to vector<16x26xf32>
    %216 = vector.extract_strided_slice %206 {offsets = [0, 9], sizes = [16, 26], strides = [1, 1]} : vector<16x50xf32> to vector<16x26xf32>
    %217 = vector.extract_strided_slice %206 {offsets = [0, 10], sizes = [16, 26], strides = [1, 1]} : vector<16x50xf32> to vector<16x26xf32>
    %218 = vector.extract_strided_slice %206 {offsets = [0, 11], sizes = [16, 26], strides = [1, 1]} : vector<16x50xf32> to vector<16x26xf32>
    %219 = vector.extract_strided_slice %206 {offsets = [0, 12], sizes = [16, 26], strides = [1, 1]} : vector<16x50xf32> to vector<16x26xf32>
    %220 = vector.extract_strided_slice %206 {offsets = [0, 13], sizes = [16, 26], strides = [1, 1]} : vector<16x50xf32> to vector<16x26xf32>
    %221 = vector.extract_strided_slice %206 {offsets = [0, 14], sizes = [16, 26], strides = [1, 1]} : vector<16x50xf32> to vector<16x26xf32>
    %222 = vector.extract_strided_slice %206 {offsets = [0, 15], sizes = [16, 26], strides = [1, 1]} : vector<16x50xf32> to vector<16x26xf32>
    %223 = vector.extract_strided_slice %206 {offsets = [0, 16], sizes = [16, 26], strides = [1, 1]} : vector<16x50xf32> to vector<16x26xf32>
    %224 = vector.extract_strided_slice %206 {offsets = [0, 17], sizes = [16, 26], strides = [1, 1]} : vector<16x50xf32> to vector<16x26xf32>
    %225 = vector.extract_strided_slice %206 {offsets = [0, 18], sizes = [16, 26], strides = [1, 1]} : vector<16x50xf32> to vector<16x26xf32>
    %226 = vector.extract_strided_slice %206 {offsets = [0, 19], sizes = [16, 26], strides = [1, 1]} : vector<16x50xf32> to vector<16x26xf32>
    %227 = vector.extract_strided_slice %206 {offsets = [0, 20], sizes = [16, 26], strides = [1, 1]} : vector<16x50xf32> to vector<16x26xf32>
    %228 = vector.extract_strided_slice %206 {offsets = [0, 21], sizes = [16, 26], strides = [1, 1]} : vector<16x50xf32> to vector<16x26xf32>
    %229 = vector.extract_strided_slice %206 {offsets = [0, 22], sizes = [16, 26], strides = [1, 1]} : vector<16x50xf32> to vector<16x26xf32>
    %230 = vector.extract_strided_slice %206 {offsets = [0, 23], sizes = [16, 26], strides = [1, 1]} : vector<16x50xf32> to vector<16x26xf32>
    %231 = vector.extract_strided_slice %206 {offsets = [0, 24], sizes = [16, 26], strides = [1, 1]} : vector<16x50xf32> to vector<16x26xf32>
    %232 = tpu.concatenate %207, %208, %209, %210, %211, %212, %213, %214, %215, %216, %217, %218, %219, %220, %221, %222 in 0 : vector<16x26xf32>, vector<16x26xf32>, vector<16x26xf32>, vector<16x26xf32>, vector<16x26xf32>, vector<16x26xf32>, vector<16x26xf32>, vector<16x26xf32>, vector<16x26xf32>, vector<16x26xf32>, vector<16x26xf32>, vector<16x26xf32>, vector<16x26xf32>, vector<16x26xf32>, vector<16x26xf32>, vector<16x26xf32> -> vector<256x26xf32>
    %233 = tpu.concatenate %223, %224, %225, %226, %227, %228, %229, %230, %231 in 0 : vector<16x26xf32>, vector<16x26xf32>, vector<16x26xf32>, vector<16x26xf32>, vector<16x26xf32>, vector<16x26xf32>, vector<16x26xf32>, vector<16x26xf32>, vector<16x26xf32> -> vector<144x26xf32>
    %234 = tpu.concatenate %232, %233 in 0 : vector<256x26xf32>, vector<144x26xf32> -> vector<400x26xf32>
    %c0_20 = arith.constant 0 : index
    %c0_21 = arith.constant 0 : index
    %235 = vector.load %arg7[%c0_20, %c0_21] : memref<120x400xbf16, #tpu.memory_space<vmem>>, vector<120x400xbf16>
    %236 = arith.truncf %234 : vector<400x26xf32> to vector<400x26xbf16>
    %cst_22 = arith.constant dense<0.000000e+00> : vector<120x26xf32>
    %237 = tpu.matmul %235, %236, %cst_22 {dimension_numbers = #tpu.dot_dimension_numbers<[1], [0], [0], [1], [0, 0, 1, 1], [], []>} : vector<120x400xbf16>, vector<400x26xbf16>, vector<120x26xf32> -> vector<120x26xf32>
    %c0_23 = arith.constant 0 : index
    %c0_24 = arith.constant 0 : index
    %238 = vector.load %arg8[%c0_23, %c0_24] : memref<120x1xf32, #tpu.memory_space<vmem>>, vector<120x1xf32>
    %239 = vector.broadcast %238 : vector<120x1xf32> to vector<120x26xf32>
    %240 = arith.addf %237, %239 : vector<120x26xf32>
    %241 = math.tanh %240 : vector<120x26xf32>
    %242 = vector.extract_strided_slice %241 {offsets = [0, 0], sizes = [120, 1], strides = [1, 1]} : vector<120x26xf32> to vector<120x1xf32>
    %243 = vector.extract_strided_slice %241 {offsets = [0, 25], sizes = [120, 1], strides = [1, 1]} : vector<120x26xf32> to vector<120x1xf32>
    %244 = tpu.concatenate %242, %243 in 1 : vector<120x1xf32>, vector<120x1xf32> -> vector<120x2xf32>
    %c0_25 = arith.constant 0 : index
    %c0_26 = arith.constant 0 : index
    %245 = vector.load %arg9[%c0_25, %c0_26] : memref<84x120xbf16, #tpu.memory_space<vmem>>, vector<84x120xbf16>
    %246 = arith.truncf %244 : vector<120x2xf32> to vector<120x2xbf16>
    %cst_27 = arith.constant dense<0.000000e+00> : vector<84x2xf32>
    %247 = tpu.matmul %245, %246, %cst_27 {dimension_numbers = #tpu.dot_dimension_numbers<[1], [0], [0], [1], [0, 0, 1, 1], [], []>} : vector<84x120xbf16>, vector<120x2xbf16>, vector<84x2xf32> -> vector<84x2xf32>
    %c0_28 = arith.constant 0 : index
    %c0_29 = arith.constant 0 : index
    %248 = vector.load %arg10[%c0_28, %c0_29] : memref<84x1xf32, #tpu.memory_space<vmem>>, vector<84x1xf32>
    %249 = vector.broadcast %248 : vector<84x1xf32> to vector<84x2xf32>
    %250 = arith.addf %247, %249 : vector<84x2xf32>
    %251 = math.tanh %250 : vector<84x2xf32>
    %c0_30 = arith.constant 0 : index
    %c0_31 = arith.constant 0 : index
    %252 = vector.load %arg11[%c0_30, %c0_31] : memref<10x84xbf16, #tpu.memory_space<vmem>>, vector<10x84xbf16>
    %253 = arith.truncf %251 : vector<84x2xf32> to vector<84x2xbf16>
    %cst_32 = arith.constant dense<0.000000e+00> : vector<10x2xf32>
    %254 = tpu.matmul %252, %253, %cst_32 {dimension_numbers = #tpu.dot_dimension_numbers<[1], [0], [0], [1], [0, 0, 1, 1], [], []>} : vector<10x84xbf16>, vector<84x2xbf16>, vector<10x2xf32> -> vector<10x2xf32>
    %c0_33 = arith.constant 0 : index
    %c0_34 = arith.constant 0 : index
    %255 = vector.load %arg12[%c0_33, %c0_34] : memref<10x1xf32, #tpu.memory_space<vmem>>, vector<10x1xf32>
    %256 = vector.broadcast %255 : vector<10x1xf32> to vector<10x2xf32>
    %257 = arith.addf %254, %256 : vector<10x2xf32>
    %c0_35 = arith.constant 0 : index
    %c0_36 = arith.constant 0 : index
    %258 = vector.load %arg13[%c0_35, %c0_36] : memref<10x2xf32, #tpu.memory_space<vmem>>, vector<10x2xf32>
    tpu.vector_store %arg13[%c0_35, %c0_36], %257 {strides = array<i32>} : memref<10x2xf32, #tpu.memory_space<vmem>>, vector<10x2xf32>,
    return
  }
}

</mosaic_0001>

<llo_original>
// kernel: _lenet_forward_impl.1
$region0: #{_lenet_forward_impl.1}
  #allocation0 [shape = 'u32[]', space=smem, size = 0x4, offset = 0x4, fixed_abs, tag = 'smem constant byte address 0x4 - core index']
  #allocation1 [shape = 'u32[144,128]{1,0:T(1,128)}', space=vmem, size = 0x12000, scoped, tag = 'internal scratch']
  %s0 = inlined_call_operand.vmem [shape: f32[1,2048], index: 0, kind: input, shape index: {}]
  %s1 = inlined_call_operand.vmem [shape: f32[8,25], index: 1, kind: input, shape index: {}]
  %s2 = inlined_call_operand.vmem [shape: f32[8,1], index: 2, kind: input, shape index: {}]
  %s3 = inlined_call_operand.vmem [shape: f32[1024,196], index: 3, kind: input, shape index: {}]
  %s4 = inlined_call_operand.vmem [shape: bf16[16,200], index: 4, kind: input, shape index: {}]
  %s5 = inlined_call_operand.vmem [shape: f32[16,1], index: 5, kind: input, shape index: {}]
  %s6 = inlined_call_operand.vmem [shape: f32[196,25], index: 6, kind: input, shape index: {}]
  %s7 = inlined_call_operand.vmem [shape: bf16[120,400], index: 7, kind: input, shape index: {}]
  %s8 = inlined_call_operand.vmem [shape: f32[120,1], index: 8, kind: input, shape index: {}]
  %s9 = inlined_call_operand.vmem [shape: bf16[84,120], index: 9, kind: input, shape index: {}]
  %s10 = inlined_call_operand.vmem [shape: f32[84,1], index: 10, kind: input, shape index: {}]
  %s11 = inlined_call_operand.vmem [shape: bf16[10,84], index: 11, kind: input, shape index: {}]
  %s12 = inlined_call_operand.vmem [shape: f32[10,1], index: 12, kind: input, shape index: {}]
  %s13 = inlined_call_operand.vmem [shape: f32[10,2], index: 13, kind: output, shape index: {}]
  %s14 = sld [smem:[#allocation0]]
  $region62: #{_lenet_forward_impl.1} parent=0
    _
  %s16 = ssub.s32 1, %s14
  %s17 = scalar_select 0, %s16, %s14
  // Predicated region
  $region2: #{_lenet_forward_impl.1} parent=0 // pred_check
    _
  $region3: #{_lenet_forward_impl.1} parent=0 // pred_check_branch
    %19 = sbr.rel (0) target = $region5
  $region4: #{_lenet_forward_impl.1} parent=0 // pred_region
    _
  $region5: #{_lenet_forward_impl.1} parent=0 // pred_fallthru
    _
  // Predicated region
  $region6: #{_lenet_forward_impl.1} parent=0 // pred_check
    _
  $region7: #{_lenet_forward_impl.1} parent=0 // pred_check_branch
    %21 = sbr.rel (0) target = $region9
  $region8: #{_lenet_forward_impl.1} parent=0 // pred_region
    _
  $region9: #{_lenet_forward_impl.1} parent=0 // pred_fallthru
    _
  // Predicated region
  $region10: #{_lenet_forward_impl.1} parent=0 // pred_check
    _
  $region11: #{_lenet_forward_impl.1} parent=0 // pred_check_branch
    %23 = sbr.rel (0) target = $region13
  $region12: #{_lenet_forward_impl.1} parent=0 // pred_region
    _
  $region13: #{_lenet_forward_impl.1} parent=0 // pred_fallthru
    _
  // Predicated region
  $region14: #{_lenet_forward_impl.1} parent=0 // pred_check
    _
  $region15: #{_lenet_forward_impl.1} parent=0 // pred_check_branch
    %25 = sbr.rel (0) target = $region17
  $region16: #{_lenet_forward_impl.1} parent=0 // pred_region
    _
  $region17: #{_lenet_forward_impl.1} parent=0 // pred_fallthru
    _
  // Predicated region
  $region18: #{_lenet_forward_impl.1} parent=0 // pred_check
    _
  $region19: #{_lenet_forward_impl.1} parent=0 // pred_check_branch
    %27 = sbr.rel (0) target = $region21
  $region20: #{_lenet_forward_impl.1} parent=0 // pred_region
    _
  $region21: #{_lenet_forward_impl.1} parent=0 // pred_fallthru
    _
  // Predicated region
  $region22: #{_lenet_forward_impl.1} parent=0 // pred_check
    _
  $region23: #{_lenet_forward_impl.1} parent=0 // pred_check_branch
    %29 = sbr.rel (0) target = $region25
  $region24: #{_lenet_forward_impl.1} parent=0 // pred_region
    _
  $region25: #{_lenet_forward_impl.1} parent=0 // pred_fallthru
    _
  // Predicated region
  $region26: #{_lenet_forward_impl.1} parent=0 // pred_check
    _
  $region27: #{_lenet_forward_impl.1} parent=0 // pred_check_branch
    %31 = sbr.rel (0) target = $region29
  $region28: #{_lenet_forward_impl.1} parent=0 // pred_region
    _
  $region29: #{_lenet_forward_impl.1} parent=0 // pred_fallthru
    _
  // Predicated region
  $region30: #{_lenet_forward_impl.1} parent=0 // pred_check
    _
  $region31: #{_lenet_forward_impl.1} parent=0 // pred_check_branch
    %33 = sbr.rel (0) target = $region33
  $region32: #{_lenet_forward_impl.1} parent=0 // pred_region
    _
  $region33: #{_lenet_forward_impl.1} parent=0 // pred_fallthru
    _
  // Predicated region
  $region34: #{_lenet_forward_impl.1} parent=0 // pred_check
    _
  $region35: #{_lenet_forward_impl.1} parent=0 // pred_check_branch
    %35 = sbr.rel (0) target = $region37
  $region36: #{_lenet_forward_impl.1} parent=0 // pred_region
    _
  $region37: #{_lenet_forward_impl.1} parent=0 // pred_fallthru
    _
  // Predicated region
  $region38: #{_lenet_forward_impl.1} parent=0 // pred_check
    _
  $region39: #{_lenet_forward_impl.1} parent=0 // pred_check_branch
    %37 = sbr.rel (0) target = $region41
  $region40: #{_lenet_forward_impl.1} parent=0 // pred_region
    _
  $region41: #{_lenet_forward_impl.1} parent=0 // pred_fallthru
    _
  // Predicated region
  $region42: #{_lenet_forward_impl.1} parent=0 // pred_check
    _
  $region43: #{_lenet_forward_impl.1} parent=0 // pred_check_branch
    %39 = sbr.rel (0) target = $region45
  $region44: #{_lenet_forward_impl.1} parent=0 // pred_region
    _
  $region45: #{_lenet_forward_impl.1} parent=0 // pred_fallthru
    _
  // Predicated region
  $region46: #{_lenet_forward_impl.1} parent=0 // pred_check
    _
  $region47: #{_lenet_forward_impl.1} parent=0 // pred_check_branch
    %41 = sbr.rel (0) target = $region49
  $region48: #{_lenet_forward_impl.1} parent=0 // pred_region
    _
  $region49: #{_lenet_forward_impl.1} parent=0 // pred_fallthru
    _
  // Predicated region
  $region50: #{_lenet_forward_impl.1} parent=0 // pred_check
    _
  $region51: #{_lenet_forward_impl.1} parent=0 // pred_check_branch
    %43 = sbr.rel (0) target = $region53
  $region52: #{_lenet_forward_impl.1} parent=0 // pred_region
    _
  $region53: #{_lenet_forward_impl.1} parent=0 // pred_fallthru
    _
  %v45 = vld [vmem:[%s0] sm:$0xff]
  %v46 = vld [vmem:[%s0 + $0x8] sm:$0xff]
  %v49 = vlaneseq
  %v50 = vshrl.u32 %v49, 7
  %v51 = vsub.s32 0, %v50
  %v52 = vrot.slane %v45, %v51
  %v53 = vlaneseq
  %v54 = vshrl.u32 %v53, 7
  %v55 = vsub.s32 1, %v54
  %v56 = vrot.slane %v45, %v55
  %v57 = vlaneseq
  %v58 = vshrl.u32 %v57, 7
  %v59 = vsub.s32 2, %v58
  %v60 = vrot.slane %v45, %v59
  %v61 = vlaneseq
  %v62 = vshrl.u32 %v61, 7
  %v63 = vsub.s32 3, %v62
  %v64 = vrot.slane %v45, %v63
  %v65 = vlaneseq
  %v66 = vshrl.u32 %v65, 7
  %v67 = vsub.s32 4, %v66
  %v68 = vrot.slane %v45, %v67
  %v69 = vlaneseq
  %v70 = vshrl.u32 %v69, 7
  %v71 = vsub.s32 5, %v70
  %v72 = vrot.slane %v45, %v71
  %v73 = vlaneseq
  %v74 = vshrl.u32 %v73, 7
  %v75 = vsub.s32 6, %v74
  %v76 = vrot.slane %v45, %v75
  %v77 = vlaneseq
  %v78 = vshrl.u32 %v77, 7
  %v79 = vsub.s32 7, %v78
  %v80 = vrot.slane %v45, %v79
  %v81 = vlaneseq
  %v82 = vshrl.u32 %v81, 7
  %v83 = vsub.s32 0, %v82
  %v84 = vrot.slane %v46, %v83
  %v85 = vlaneseq
  %v86 = vshrl.u32 %v85, 7
  %v87 = vsub.s32 1, %v86
  %v88 = vrot.slane %v46, %v87
  %v89 = vlaneseq
  %v90 = vshrl.u32 %v89, 7
  %v91 = vsub.s32 2, %v90
  %v92 = vrot.slane %v46, %v91
  %v93 = vlaneseq
  %v94 = vshrl.u32 %v93, 7
  %v95 = vsub.s32 3, %v94
  %v96 = vrot.slane %v46, %v95
  %v97 = vlaneseq
  %v98 = vshrl.u32 %v97, 7
  %v99 = vsub.s32 4, %v98
  %v100 = vrot.slane %v46, %v99
  %v101 = vlaneseq
  %v102 = vshrl.u32 %v101, 7
  %v103 = vsub.s32 5, %v102
  %v104 = vrot.slane %v46, %v103
  %v105 = vlaneseq
  %v106 = vshrl.u32 %v105, 7
  %v107 = vsub.s32 6, %v106
  %v108 = vrot.slane %v46, %v107
  %v109 = vlaneseq
  %v110 = vshrl.u32 %v109, 7
  %v111 = vsub.s32 7, %v110
  %v112 = vrot.slane %v46, %v111
  %v129 = vld [vmem:[%s1] sm:$0xff]
  %131 = vset.pattern.permute.xlu0 0
  %132 = vperm.xlu0 %131, %v129
  %v133 = vpop.permute.xlu0 %132
  %v135 = vlaneseq
  %v136 = vshrl.u32 %v135, 7
  %v137 = vsub.s32 0, %v136
  %v138 = vrot.slane %v52, %v137
  %v139 = vlaneseq
  %v140 = vshrl.u32 %v139, 7
  %v141 = vsub.s32 0, %v140
  %v142 = vrot.slane %v56, %v141
  %v143 = vlaneseq
  %v144 = vshrl.u32 %v143, 7
  %v145 = vsub.s32 0, %v144
  %v146 = vrot.slane %v60, %v145
  %v147 = vlaneseq
  %v148 = vshrl.u32 %v147, 7
  %v149 = vsub.s32 0, %v148
  %v150 = vrot.slane %v64, %v149
  %v151 = vlaneseq
  %v152 = vshrl.u32 %v151, 7
  %v153 = vsub.s32 0, %v152
  %v154 = vrot.slane %v68, %v153
  %v155 = vlaneseq
  %v156 = vshrl.u32 %v155, 7
  %v157 = vsub.s32 0, %v156
  %v158 = vrot.slane %v72, %v157
  %v159 = vlaneseq
  %v160 = vshrl.u32 %v159, 7
  %v161 = vsub.s32 0, %v160
  %v162 = vrot.slane %v76, %v161
  %v163 = vlaneseq
  %v164 = vshrl.u32 %v163, 7
  %v165 = vsub.s32 0, %v164
  %v166 = vrot.slane %v80, %v165
  %v167 = vlaneseq
  %v168 = vshrl.u32 %v167, 7
  %v169 = vsub.s32 0, %v168
  %v170 = vrot.slane %v84, %v169
  %v171 = vlaneseq
  %v172 = vshrl.u32 %v171, 7
  %v173 = vsub.s32 0, %v172
  %v174 = vrot.slane %v88, %v173
  %v175 = vlaneseq
  %v176 = vshrl.u32 %v175, 7
  %v177 = vsub.s32 0, %v176
  %v178 = vrot.slane %v92, %v177
  %v179 = vlaneseq
  %v180 = vshrl.u32 %v179, 7
  %v181 = vsub.s32 0, %v180
  %v182 = vrot.slane %v96, %v181
  %v183 = vlaneseq
  %v184 = vshrl.u32 %v183, 7
  %v185 = vsub.s32 0, %v184
  %v186 = vrot.slane %v100, %v185
  %v187 = vlaneseq
  %v188 = vshrl.u32 %v187, 7
  %v189 = vsub.s32 0, %v188
  %v190 = vrot.slane %v104, %v189
  %v191 = vlaneseq
  %v192 = vshrl.u32 %v191, 7
  %v193 = vsub.s32 0, %v192
  %v194 = vrot.slane %v108, %v193
  %v195 = vlaneseq
  %v196 = vshrl.u32 %v195, 7
  %v197 = vsub.s32 0, %v196
  %v198 = vrot.slane %v112, %v197
  %v199 = vmul.f32 %v133, %v138
  %v200 = vmul.f32 %v133, %v142
  %v201 = vmul.f32 %v133, %v146
  %v202 = vmul.f32 %v133, %v150
  %v203 = vmul.f32 %v133, %v154
  %v204 = vmul.f32 %v133, %v158
  %v205 = vmul.f32 %v133, %v162
  %v206 = vmul.f32 %v133, %v166
  %v207 = vmul.f32 %v133, %v170
  %v208 = vmul.f32 %v133, %v174
  %v209 = vmul.f32 %v133, %v178
  %v210 = vmul.f32 %v133, %v182
  %v211 = vmul.f32 %v133, %v186
  %v212 = vmul.f32 %v133, %v190
  %v213 = vmul.f32 %v133, %v194
  %v214 = vmul.f32 %v133, %v198
  %v215 = vadd.f32 %v199, 0.0
  %v216 = vadd.f32 %v200, 0.0
  %v217 = vadd.f32 %v201, 0.0
  %v218 = vadd.f32 %v202, 0.0
  %v219 = vadd.f32 %v203, 0.0
  %v220 = vadd.f32 %v204, 0.0
  %v221 = vadd.f32 %v205, 0.0
  %v222 = vadd.f32 %v206, 0.0
  %v223 = vadd.f32 %v207, 0.0
  %v224 = vadd.f32 %v208, 0.0
  %v225 = vadd.f32 %v209, 0.0
  %v226 = vadd.f32 %v210, 0.0
  %v227 = vadd.f32 %v211, 0.0
  %v228 = vadd.f32 %v212, 0.0
  %v229 = vadd.f32 %v213, 0.0
  %v230 = vadd.f32 %v214, 0.0
  %231 = vset.pattern.permute.xlu0 1
  %232 = vperm.xlu0 %231, %v129
  %v233 = vpop.permute.xlu0 %232
  %v235 = vlaneseq
  %v236 = vshrl.u32 %v235, 7
  %v237 = vsub.s32 0, %v236
  %v238 = vmul.f32 %v233, %v138
  %v239 = vmul.f32 %v233, %v142
  %v240 = vmul.f32 %v233, %v146
  %v241 = vmul.f32 %v233, %v150
  %v242 = vmul.f32 %v233, %v154
  %v243 = vmul.f32 %v233, %v158
  %v244 = vmul.f32 %v233, %v162
  %v245 = vmul.f32 %v233, %v166
  %v246 = vmul.f32 %v233, %v170
  %v247 = vmul.f32 %v233, %v174
  %v248 = vmul.f32 %v233, %v178
  %v249 = vmul.f32 %v233, %v182
  %v250 = vmul.f32 %v233, %v186
  %v251 = vmul.f32 %v233, %v190
  %v252 = vmul.f32 %v233, %v194
  %v253 = vmul.f32 %v233, %v198
  %v254 = vmul.f32 %v233, 0.0
  %272 = vrot.lane.b32.xlu0 %v238, 127
  %v273 = vpop.permute.xlu0 %272
  %274 = vrot.lane.b32.xlu0 %v239, 127
  %v275 = vpop.permute.xlu0 %274
  %276 = vrot.lane.b32.xlu0 %v240, 127
  %v277 = vpop.permute.xlu0 %276
  %278 = vrot.lane.b32.xlu0 %v241, 127
  %v279 = vpop.permute.xlu0 %278
  %280 = vrot.lane.b32.xlu0 %v242, 127
  %v281 = vpop.permute.xlu0 %280
  %282 = vrot.lane.b32.xlu0 %v243, 127
  %v283 = vpop.permute.xlu0 %282
  %284 = vrot.lane.b32.xlu0 %v244, 127
  %v285 = vpop.permute.xlu0 %284
  %286 = vrot.lane.b32.xlu0 %v245, 127
  %v287 = vpop.permute.xlu0 %286
  %288 = vrot.lane.b32.xlu0 %v246, 127
  %v289 = vpop.permute.xlu0 %288
  %290 = vrot.lane.b32.xlu0 %v247, 127
  %v291 = vpop.permute.xlu0 %290
  %292 = vrot.lane.b32.xlu0 %v248, 127
  %v293 = vpop.permute.xlu0 %292
  %294 = vrot.lane.b32.xlu0 %v249, 127
  %v295 = vpop.permute.xlu0 %294
  %296 = vrot.lane.b32.xlu0 %v250, 127
  %v297 = vpop.permute.xlu0 %296
  %298 = vrot.lane.b32.xlu0 %v251, 127
  %v299 = vpop.permute.xlu0 %298
  %300 = vrot.lane.b32.xlu0 %v252, 127
  %v301 = vpop.permute.xlu0 %300
  %302 = vrot.lane.b32.xlu0 %v253, 127
  %v303 = vpop.permute.xlu0 %302
  %304 = vrot.lane.b32.xlu0 %v254, 127
  %v305 = vpop.permute.xlu0 %304
  %vm306 = vcmask 1039360
  %v307 = vsel %vm306, %v273, %v275
  %v308 = vsel %vm306, %v275, %v277
  %v309 = vsel %vm306, %v277, %v279
  %v310 = vsel %vm306, %v279, %v281
  %v311 = vsel %vm306, %v281, %v283
  %v312 = vsel %vm306, %v283, %v285
  %v313 = vsel %vm306, %v285, %v287
  %v314 = vsel %vm306, %v287, %v289
  %v315 = vsel %vm306, %v289, %v291
  %v316 = vsel %vm306, %v291, %v293
  %v317 = vsel %vm306, %v293, %v295
  %v318 = vsel %vm306, %v295, %v297
  %v319 = vsel %vm306, %v297, %v299
  %v320 = vsel %vm306, %v299, %v301
  %v321 = vsel %vm306, %v301, %v303
  %v322 = vsel %vm306, %v303, %v305
  %v339 = vadd.f32 %v215, %v307
  %v340 = vadd.f32 %v216, %v308
  %v341 = vadd.f32 %v217, %v309
  %v342 = vadd.f32 %v218, %v310
  %v343 = vadd.f32 %v219, %v311
  %v344 = vadd.f32 %v220, %v312
  %v345 = vadd.f32 %v221, %v313
  %v346 = vadd.f32 %v222, %v314
  %v347 = vadd.f32 %v223, %v315
  %v348 = vadd.f32 %v224, %v316
  %v349 = vadd.f32 %v225, %v317
  %v350 = vadd.f32 %v226, %v318
  %v351 = vadd.f32 %v227, %v319
  %v352 = vadd.f32 %v228, %v320
  %v353 = vadd.f32 %v229, %v321
  %v354 = vadd.f32 %v230, %v322
  %355 = vset.pattern.permute.xlu0 2
  %356 = vperm.xlu0 %355, %v129
  %v357 = vpop.permute.xlu0 %356
  %v359 = vmul.f32 %v357, %v138
  %v360 = vmul.f32 %v357, %v142
  %v361 = vmul.f32 %v357, %v146
  %v362 = vmul.f32 %v357, %v150
  %v363 = vmul.f32 %v357, %v154
  %v364 = vmul.f32 %v357, %v158
  %v365 = vmul.f32 %v357, %v162
  %v366 = vmul.f32 %v357, %v166
  %v367 = vmul.f32 %v357, %v170
  %v368 = vmul.f32 %v357, %v174
  %v369 = vmul.f32 %v357, %v178
  %v370 = vmul.f32 %v357, %v182
  %v371 = vmul.f32 %v357, %v186
  %v372 = vmul.f32 %v357, %v190
  %v373 = vmul.f32 %v357, %v194
  %v374 = vmul.f32 %v357, %v198
  %v375 = vmul.f32 %v357, 0.0
  %393 = vrot.lane.b32.xlu0 %v359, 126
  %v394 = vpop.permute.xlu0 %393
  %395 = vrot.lane.b32.xlu0 %v360, 126
  %v396 = vpop.permute.xlu0 %395
  %397 = vrot.lane.b32.xlu0 %v361, 126
  %v398 = vpop.permute.xlu0 %397
  %399 = vrot.lane.b32.xlu0 %v362, 126
  %v400 = vpop.permute.xlu0 %399
  %401 = vrot.lane.b32.xlu0 %v363, 126
  %v402 = vpop.permute.xlu0 %401
  %403 = vrot.lane.b32.xlu0 %v364, 126
  %v404 = vpop.permute.xlu0 %403
  %405 = vrot.lane.b32.xlu0 %v365, 126
  %v406 = vpop.permute.xlu0 %405
  %407 = vrot.lane.b32.xlu0 %v366, 126
  %v408 = vpop.permute.xlu0 %407
  %409 = vrot.lane.b32.xlu0 %v367, 126
  %v410 = vpop.permute.xlu0 %409
  %411 = vrot.lane.b32.xlu0 %v368, 126
  %v412 = vpop.permute.xlu0 %411
  %413 = vrot.lane.b32.xlu0 %v369, 126
  %v414 = vpop.permute.xlu0 %413
  %415 = vrot.lane.b32.xlu0 %v370, 126
  %v416 = vpop.permute.xlu0 %415
  %417 = vrot.lane.b32.xlu0 %v371, 126
  %v418 = vpop.permute.xlu0 %417
  %419 = vrot.lane.b32.xlu0 %v372, 126
  %v420 = vpop.permute.xlu0 %419
  %421 = vrot.lane.b32.xlu0 %v373, 126
  %v422 = vpop.permute.xlu0 %421
  %423 = vrot.lane.b32.xlu0 %v374, 126
  %v424 = vpop.permute.xlu0 %423
  %425 = vrot.lane.b32.xlu0 %v375, 126
  %v426 = vpop.permute.xlu0 %425
  %vm427 = vcmask 1031168
  %v428 = vsel %vm427, %v394, %v396
  %v429 = vsel %vm427, %v396, %v398
  %v430 = vsel %vm427, %v398, %v400
  %v431 = vsel %vm427, %v400, %v402
  %v432 = vsel %vm427, %v402, %v404
  %v433 = vsel %vm427, %v404, %v406
  %v434 = vsel %vm427, %v406, %v408
  %v435 = vsel %vm427, %v408, %v410
  %v436 = vsel %vm427, %v410, %v412
  %v437 = vsel %vm427, %v412, %v414
  %v438 = vsel %vm427, %v414, %v416
  %v439 = vsel %vm427, %v416, %v418
  %v440 = vsel %vm427, %v418, %v420
  %v441 = vsel %vm427, %v420, %v422
  %v442 = vsel %vm427, %v422, %v424
  %v443 = vsel %vm427, %v424, %v426
  %v460 = vadd.f32 %v339, %v428
  %v461 = vadd.f32 %v340, %v429
  %v462 = vadd.f32 %v341, %v430
  %v463 = vadd.f32 %v342, %v431
  %v464 = vadd.f32 %v343, %v432
  %v465 = vadd.f32 %v344, %v433
  %v466 = vadd.f32 %v345, %v434
  %v467 = vadd.f32 %v346, %v435
  %v468 = vadd.f32 %v347, %v436
  %v469 = vadd.f32 %v348, %v437
  %v470 = vadd.f32 %v349, %v438
  %v471 = vadd.f32 %v350, %v439
  %v472 = vadd.f32 %v351, %v440
  %v473 = vadd.f32 %v352, %v441
  %v474 = vadd.f32 %v353, %v442
  %v475 = vadd.f32 %v354, %v443
  %476 = vset.pattern.permute.xlu0 3
  %477 = vperm.xlu0 %476, %v129
  %v478 = vpop.permute.xlu0 %477
  %v480 = vmul.f32 %v478, %v138
  %v481 = vmul.f32 %v478, %v142
  %v482 = vmul.f32 %v478, %v146
  %v483 = vmul.f32 %v478, %v150
  %v484 = vmul.f32 %v478, %v154
  %v485 = vmul.f32 %v478, %v158
  %v486 = vmul.f32 %v478, %v162
  %v487 = vmul.f32 %v478, %v166
  %v488 = vmul.f32 %v478, %v170
  %v489 = vmul.f32 %v478, %v174
  %v490 = vmul.f32 %v478, %v178
  %v491 = vmul.f32 %v478, %v182
  %v492 = vmul.f32 %v478, %v186
  %v493 = vmul.f32 %v478, %v190
  %v494 = vmul.f32 %v478, %v194
  %v495 = vmul.f32 %v478, %v198
  %v496 = vmul.f32 %v478, 0.0
  %514 = vrot.lane.b32.xlu0 %v480, 125
  %v515 = vpop.permute.xlu0 %514
  %516 = vrot.lane.b32.xlu0 %v481, 125
  %v517 = vpop.permute.xlu0 %516
  %518 = vrot.lane.b32.xlu0 %v482, 125
  %v519 = vpop.permute.xlu0 %518
  %520 = vrot.lane.b32.xlu0 %v483, 125
  %v521 = vpop.permute.xlu0 %520
  %522 = vrot.lane.b32.xlu0 %v484, 125
  %v523 = vpop.permute.xlu0 %522
  %524 = vrot.lane.b32.xlu0 %v485, 125
  %v525 = vpop.permute.xlu0 %524
  %526 = vrot.lane.b32.xlu0 %v486, 125
  %v527 = vpop.permute.xlu0 %526
  %528 = vrot.lane.b32.xlu0 %v487, 125
  %v529 = vpop.permute.xlu0 %528
  %530 = vrot.lane.b32.xlu0 %v488, 125
  %v531 = vpop.permute.xlu0 %530
  %532 = vrot.lane.b32.xlu0 %v489, 125
  %v533 = vpop.permute.xlu0 %532
  %534 = vrot.lane.b32.xlu0 %v490, 125
  %v535 = vpop.permute.xlu0 %534
  %536 = vrot.lane.b32.xlu0 %v491, 125
  %v537 = vpop.permute.xlu0 %536
  %538 = vrot.lane.b32.xlu0 %v492, 125
  %v539 = vpop.permute.xlu0 %538
  %540 = vrot.lane.b32.xlu0 %v493, 125
  %v541 = vpop.permute.xlu0 %540
  %542 = vrot.lane.b32.xlu0 %v494, 125
  %v543 = vpop.permute.xlu0 %542
  %544 = vrot.lane.b32.xlu0 %v495, 125
  %v545 = vpop.permute.xlu0 %544
  %546 = vrot.lane.b32.xlu0 %v496, 125
  %v547 = vpop.permute.xlu0 %546
  %vm548 = vcmask 1022976
  %v549 = vsel %vm548, %v515, %v517
  %v550 = vsel %vm548, %v517, %v519
  %v551 = vsel %vm548, %v519, %v521
  %v552 = vsel %vm548, %v521, %v523
  %v553 = vsel %vm548, %v523, %v525
  %v554 = vsel %vm548, %v525, %v527
  %v555 = vsel %vm548, %v527, %v529
  %v556 = vsel %vm548, %v529, %v531
  %v557 = vsel %vm548, %v531, %v533
  %v558 = vsel %vm548, %v533, %v535
  %v559 = vsel %vm548, %v535, %v537
  %v560 = vsel %vm548, %v537, %v539
  %v561 = vsel %vm548, %v539, %v541
  %v562 = vsel %vm548, %v541, %v543
  %v563 = vsel %vm548, %v543, %v545
  %v564 = vsel %vm548, %v545, %v547
  %v581 = vadd.f32 %v460, %v549
  %v582 = vadd.f32 %v461, %v550
  %v583 = vadd.f32 %v462, %v551
  %v584 = vadd.f32 %v463, %v552
  %v585 = vadd.f32 %v464, %v553
  %v586 = vadd.f32 %v465, %v554
  %v587 = vadd.f32 %v466, %v555
  %v588 = vadd.f32 %v467, %v556
  %v589 = vadd.f32 %v468, %v557
  %v590 = vadd.f32 %v469, %v558
  %v591 = vadd.f32 %v470, %v559
  %v592 = vadd.f32 %v471, %v560
  %v593 = vadd.f32 %v472, %v561
  %v594 = vadd.f32 %v473, %v562
  %v595 = vadd.f32 %v474, %v563
  %v596 = vadd.f32 %v475, %v564
  %597 = vset.pattern.permute.xlu0 4
  %598 = vperm.xlu0 %597, %v129
  %v599 = vpop.permute.xlu0 %598
  %v601 = vmul.f32 %v599, %v138
  %v602 = vmul.f32 %v599, %v142
  %v603 = vmul.f32 %v599, %v146
  %v604 = vmul.f32 %v599, %v150
  %v605 = vmul.f32 %v599, %v154
  %v606 = vmul.f32 %v599, %v158
  %v607 = vmul.f32 %v599, %v162
  %v608 = vmul.f32 %v599, %v166
  %v609 = vmul.f32 %v599, %v170
  %v610 = vmul.f32 %v599, %v174
  %v611 = vmul.f32 %v599, %v178
  %v612 = vmul.f32 %v599, %v182
  %v613 = vmul.f32 %v599, %v186
  %v614 = vmul.f32 %v599, %v190
  %v615 = vmul.f32 %v599, %v194
  %v616 = vmul.f32 %v599, %v198
  %v617 = vmul.f32 %v599, 0.0
  %635 = vrot.lane.b32.xlu0 %v601, 124
  %v636 = vpop.permute.xlu0 %635
  %637 = vrot.lane.b32.xlu0 %v602, 124
  %v638 = vpop.permute.xlu0 %637
  %639 = vrot.lane.b32.xlu0 %v603, 124
  %v640 = vpop.permute.xlu0 %639
  %641 = vrot.lane.b32.xlu0 %v604, 124
  %v642 = vpop.permute.xlu0 %641
  %643 = vrot.lane.b32.xlu0 %v605, 124
  %v644 = vpop.permute.xlu0 %643
  %645 = vrot.lane.b32.xlu0 %v606, 124
  %v646 = vpop.permute.xlu0 %645
  %647 = vrot.lane.b32.xlu0 %v607, 124
  %v648 = vpop.permute.xlu0 %647
  %649 = vrot.lane.b32.xlu0 %v608, 124
  %v650 = vpop.permute.xlu0 %649
  %651 = vrot.lane.b32.xlu0 %v609, 124
  %v652 = vpop.permute.xlu0 %651
  %653 = vrot.lane.b32.xlu0 %v610, 124
  %v654 = vpop.permute.xlu0 %653
  %655 = vrot.lane.b32.xlu0 %v611, 124
  %v656 = vpop.permute.xlu0 %655
  %657 = vrot.lane.b32.xlu0 %v612, 124
  %v658 = vpop.permute.xlu0 %657
  %659 = vrot.lane.b32.xlu0 %v613, 124
  %v660 = vpop.permute.xlu0 %659
  %661 = vrot.lane.b32.xlu0 %v614, 124
  %v662 = vpop.permute.xlu0 %661
  %663 = vrot.lane.b32.xlu0 %v615, 124
  %v664 = vpop.permute.xlu0 %663
  %665 = vrot.lane.b32.xlu0 %v616, 124
  %v666 = vpop.permute.xlu0 %665
  %667 = vrot.lane.b32.xlu0 %v617, 124
  %v668 = vpop.permute.xlu0 %667
  %vm669 = vcmask 1014784
  %v670 = vsel %vm669, %v636, %v638
  %v671 = vsel %vm669, %v638, %v640
  %v672 = vsel %vm669, %v640, %v642
  %v673 = vsel %vm669, %v642, %v644
  %v674 = vsel %vm669, %v644, %v646
  %v675 = vsel %vm669, %v646, %v648
  %v676 = vsel %vm669, %v648, %v650
  %v677 = vsel %vm669, %v650, %v652
  %v678 = vsel %vm669, %v652, %v654
  %v679 = vsel %vm669, %v654, %v656
  %v680 = vsel %vm669, %v656, %v658
  %v681 = vsel %vm669, %v658, %v660
  %v682 = vsel %vm669, %v660, %v662
  %v683 = vsel %vm669, %v662, %v664
  %v684 = vsel %vm669, %v664, %v666
  %v685 = vsel %vm669, %v666, %v668
  %v702 = vadd.f32 %v581, %v670
  %v703 = vadd.f32 %v582, %v671
  %v704 = vadd.f32 %v583, %v672
  %v705 = vadd.f32 %v584, %v673
  %v706 = vadd.f32 %v585, %v674
  %v707 = vadd.f32 %v586, %v675
  %v708 = vadd.f32 %v587, %v676
  %v709 = vadd.f32 %v588, %v677
  %v710 = vadd.f32 %v589, %v678
  %v711 = vadd.f32 %v590, %v679
  %v712 = vadd.f32 %v591, %v680
  %v713 = vadd.f32 %v592, %v681
  %v714 = vadd.f32 %v593, %v682
  %v715 = vadd.f32 %v594, %v683
  %v716 = vadd.f32 %v595, %v684
  %v717 = vadd.f32 %v596, %v685
  %718 = vset.pattern.permute.xlu0 5
  %719 = vperm.xlu0 %718, %v129
  %v720 = vpop.permute.xlu0 %719
  %v722 = vmul.f32 %v720, %v138
  %v723 = vmul.f32 %v720, %v142
  %v724 = vmul.f32 %v720, %v146
  %v725 = vmul.f32 %v720, %v150
  %v726 = vmul.f32 %v720, %v154
  %v727 = vmul.f32 %v720, %v158
  %v728 = vmul.f32 %v720, %v162
  %v729 = vmul.f32 %v720, %v166
  %v730 = vmul.f32 %v720, %v170
  %v731 = vmul.f32 %v720, %v174
  %v732 = vmul.f32 %v720, %v178
  %v733 = vmul.f32 %v720, %v182
  %v734 = vmul.f32 %v720, %v186
  %v735 = vmul.f32 %v720, %v190
  %v736 = vmul.f32 %v720, %v194
  %v737 = vmul.f32 %v720, %v198
  %v738 = vmul.f32 %v720, 0.0
  %756 = vrot.lane.b32.xlu0 %v722, 96
  %v757 = vpop.permute.xlu0 %756
  %758 = vrot.lane.b32.xlu0 %v723, 96
  %v759 = vpop.permute.xlu0 %758
  %760 = vrot.lane.b32.xlu0 %v724, 96
  %v761 = vpop.permute.xlu0 %760
  %762 = vrot.lane.b32.xlu0 %v725, 96
  %v763 = vpop.permute.xlu0 %762
  %764 = vrot.lane.b32.xlu0 %v726, 96
  %v765 = vpop.permute.xlu0 %764
  %766 = vrot.lane.b32.xlu0 %v727, 96
  %v767 = vpop.permute.xlu0 %766
  %768 = vrot.lane.b32.xlu0 %v728, 96
  %v769 = vpop.permute.xlu0 %768
  %770 = vrot.lane.b32.xlu0 %v729, 96
  %v771 = vpop.permute.xlu0 %770
  %772 = vrot.lane.b32.xlu0 %v730, 96
  %v773 = vpop.permute.xlu0 %772
  %774 = vrot.lane.b32.xlu0 %v731, 96
  %v775 = vpop.permute.xlu0 %774
  %776 = vrot.lane.b32.xlu0 %v732, 96
  %v777 = vpop.permute.xlu0 %776
  %778 = vrot.lane.b32.xlu0 %v733, 96
  %v779 = vpop.permute.xlu0 %778
  %780 = vrot.lane.b32.xlu0 %v734, 96
  %v781 = vpop.permute.xlu0 %780
  %782 = vrot.lane.b32.xlu0 %v735, 96
  %v783 = vpop.permute.xlu0 %782
  %784 = vrot.lane.b32.xlu0 %v736, 96
  %v785 = vpop.permute.xlu0 %784
  %786 = vrot.lane.b32.xlu0 %v737, 96
  %v787 = vpop.permute.xlu0 %786
  %788 = vrot.lane.b32.xlu0 %v738, 96
  %v789 = vpop.permute.xlu0 %788
  %vm790 = vcmask 785408
  %v791 = vsel %vm790, %v757, %v759
  %v792 = vsel %vm790, %v759, %v761
  %v793 = vsel %vm790, %v761, %v763
  %v794 = vsel %vm790, %v763, %v765
  %v795 = vsel %vm790, %v765, %v767
  %v796 = vsel %vm790, %v767, %v769
  %v797 = vsel %vm790, %v769, %v771
  %v798 = vsel %vm790, %v771, %v773
  %v799 = vsel %vm790, %v773, %v775
  %v800 = vsel %vm790, %v775, %v777
  %v801 = vsel %vm790, %v777, %v779
  %v802 = vsel %vm790, %v779, %v781
  %v803 = vsel %vm790, %v781, %v783
  %v804 = vsel %vm790, %v783, %v785
  %v805 = vsel %vm790, %v785, %v787
  %v806 = vsel %vm790, %v787, %v789
  %v823 = vadd.f32 %v702, %v791
  %v824 = vadd.f32 %v703, %v792
  %v825 = vadd.f32 %v704, %v793
  %v826 = vadd.f32 %v705, %v794
  %v827 = vadd.f32 %v706, %v795
  %v828 = vadd.f32 %v707, %v796
  %v829 = vadd.f32 %v708, %v797
  %v830 = vadd.f32 %v709, %v798
  %v831 = vadd.f32 %v710, %v799
  %v832 = vadd.f32 %v711, %v800
  %v833 = vadd.f32 %v712, %v801
  %v834 = vadd.f32 %v713, %v802
  %v835 = vadd.f32 %v714, %v803
  %v836 = vadd.f32 %v715, %v804
  %v837 = vadd.f32 %v716, %v805
  %v838 = vadd.f32 %v717, %v806
  %839 = vset.pattern.permute.xlu0 6
  %840 = vperm.xlu0 %839, %v129
  %v841 = vpop.permute.xlu0 %840
  %v843 = vmul.f32 %v841, %v138
  %v844 = vmul.f32 %v841, %v142
  %v845 = vmul.f32 %v841, %v146
  %v846 = vmul.f32 %v841, %v150
  %v847 = vmul.f32 %v841, %v154
  %v848 = vmul.f32 %v841, %v158
  %v849 = vmul.f32 %v841, %v162
  %v850 = vmul.f32 %v841, %v166
  %v851 = vmul.f32 %v841, %v170
  %v852 = vmul.f32 %v841, %v174
  %v853 = vmul.f32 %v841, %v178
  %v854 = vmul.f32 %v841, %v182
  %v855 = vmul.f32 %v841, %v186
  %v856 = vmul.f32 %v841, %v190
  %v857 = vmul.f32 %v841, %v194
  %v858 = vmul.f32 %v841, %v198
  %v859 = vmul.f32 %v841, 0.0
  %877 = vrot.lane.b32.xlu0 %v843, 95
  %v878 = vpop.permute.xlu0 %877
  %879 = vrot.lane.b32.xlu0 %v844, 95
  %v880 = vpop.permute.xlu0 %879
  %881 = vrot.lane.b32.xlu0 %v845, 95
  %v882 = vpop.permute.xlu0 %881
  %883 = vrot.lane.b32.xlu0 %v846, 95
  %v884 = vpop.permute.xlu0 %883
  %885 = vrot.lane.b32.xlu0 %v847, 95
  %v886 = vpop.permute.xlu0 %885
  %887 = vrot.lane.b32.xlu0 %v848, 95
  %v888 = vpop.permute.xlu0 %887
  %889 = vrot.lane.b32.xlu0 %v849, 95
  %v890 = vpop.permute.xlu0 %889
  %891 = vrot.lane.b32.xlu0 %v850, 95
  %v892 = vpop.permute.xlu0 %891
  %893 = vrot.lane.b32.xlu0 %v851, 95
  %v894 = vpop.permute.xlu0 %893
  %895 = vrot.lane.b32.xlu0 %v852, 95
  %v896 = vpop.permute.xlu0 %895
  %897 = vrot.lane.b32.xlu0 %v853, 95
  %v898 = vpop.permute.xlu0 %897
  %899 = vrot.lane.b32.xlu0 %v854, 95
  %v900 = vpop.permute.xlu0 %899
  %901 = vrot.lane.b32.xlu0 %v855, 95
  %v902 = vpop.permute.xlu0 %901
  %903 = vrot.lane.b32.xlu0 %v856, 95
  %v904 = vpop.permute.xlu0 %903
  %905 = vrot.lane.b32.xlu0 %v857, 95
  %v906 = vpop.permute.xlu0 %905
  %907 = vrot.lane.b32.xlu0 %v858, 95
  %v908 = vpop.permute.xlu0 %907
  %909 = vrot.lane.b32.xlu0 %v859, 95
  %v910 = vpop.permute.xlu0 %909
  %vm911 = vcmask 777216
  %v912 = vsel %vm911, %v878, %v880
  %v913 = vsel %vm911, %v880, %v882
  %v914 = vsel %vm911, %v882, %v884
  %v915 = vsel %vm911, %v884, %v886
  %v916 = vsel %vm911, %v886, %v888
  %v917 = vsel %vm911, %v888, %v890
  %v918 = vsel %vm911, %v890, %v892
  %v919 = vsel %vm911, %v892, %v894
  %v920 = vsel %vm911, %v894, %v896
  %v921 = vsel %vm911, %v896, %v898
  %v922 = vsel %vm911, %v898, %v900
  %v923 = vsel %vm911, %v900, %v902
  %v924 = vsel %vm911, %v902, %v904
  %v925 = vsel %vm911, %v904, %v906
  %v926 = vsel %vm911, %v906, %v908
  %v927 = vsel %vm911, %v908, %v910
  %v944 = vadd.f32 %v823, %v912
  %v945 = vadd.f32 %v824, %v913
  %v946 = vadd.f32 %v825, %v914
  %v947 = vadd.f32 %v826, %v915
  %v948 = vadd.f32 %v827, %v916
  %v949 = vadd.f32 %v828, %v917
  %v950 = vadd.f32 %v829, %v918
  %v951 = vadd.f32 %v830, %v919
  %v952 = vadd.f32 %v831, %v920
  %v953 = vadd.f32 %v832, %v921
  %v954 = vadd.f32 %v833, %v922
  %v955 = vadd.f32 %v834, %v923
  %v956 = vadd.f32 %v835, %v924
  %v957 = vadd.f32 %v836, %v925
  %v958 = vadd.f32 %v837, %v926
  %v959 = vadd.f32 %v838, %v927
  %960 = vset.pattern.permute.xlu0 7
  %961 = vperm.xlu0 %960, %v129
  %v962 = vpop.permute.xlu0 %961
  %v964 = vmul.f32 %v962, %v138
  %v965 = vmul.f32 %v962, %v142
  %v966 = vmul.f32 %v962, %v146
  %v967 = vmul.f32 %v962, %v150
  %v968 = vmul.f32 %v962, %v154
  %v969 = vmul.f32 %v962, %v158
  %v970 = vmul.f32 %v962, %v162
  %v971 = vmul.f32 %v962, %v166
  %v972 = vmul.f32 %v962, %v170
  %v973 = vmul.f32 %v962, %v174
  %v974 = vmul.f32 %v962, %v178
  %v975 = vmul.f32 %v962, %v182
  %v976 = vmul.f32 %v962, %v186
  %v977 = vmul.f32 %v962, %v190
  %v978 = vmul.f32 %v962, %v194
  %v979 = vmul.f32 %v962, %v198
  %v980 = vmul.f32 %v962, 0.0
  %998 = vrot.lane.b32.xlu0 %v964, 94
  %v999 = vpop.permute.xlu0 %998
  %1000 = vrot.lane.b32.xlu0 %v965, 94
  %v1001 = vpop.permute.xlu0 %1000
  %1002 = vrot.lane.b32.xlu0 %v966, 94
  %v1003 = vpop.permute.xlu0 %1002
  %1004 = vrot.lane.b32.xlu0 %v967, 94
  %v1005 = vpop.permute.xlu0 %1004
  %1006 = vrot.lane.b32.xlu0 %v968, 94
  %v1007 = vpop.permute.xlu0 %1006
  %1008 = vrot.lane.b32.xlu0 %v969, 94
  %v1009 = vpop.permute.xlu0 %1008
  %1010 = vrot.lane.b32.xlu0 %v970, 94
  %v1011 = vpop.permute.xlu0 %1010
  %1012 = vrot.lane.b32.xlu0 %v971, 94
  %v1013 = vpop.permute.xlu0 %1012
  %1014 = vrot.lane.b32.xlu0 %v972, 94
  %v1015 = vpop.permute.xlu0 %1014
  %1016 = vrot.lane.b32.xlu0 %v973, 94
  %v1017 = vpop.permute.xlu0 %1016
  %1018 = vrot.lane.b32.xlu0 %v974, 94
  %v1019 = vpop.permute.xlu0 %1018
  %1020 = vrot.lane.b32.xlu0 %v975, 94
  %v1021 = vpop.permute.xlu0 %1020
  %1022 = vrot.lane.b32.xlu0 %v976, 94
  %v1023 = vpop.permute.xlu0 %1022
  %1024 = vrot.lane.b32.xlu0 %v977, 94
  %v1025 = vpop.permute.xlu0 %1024
  %1026 = vrot.lane.b32.xlu0 %v978, 94
  %v1027 = vpop.permute.xlu0 %1026
  %1028 = vrot.lane.b32.xlu0 %v979, 94
  %v1029 = vpop.permute.xlu0 %1028
  %1030 = vrot.lane.b32.xlu0 %v980, 94
  %v1031 = vpop.permute.xlu0 %1030
  %vm1032 = vcmask 769024
  %v1033 = vsel %vm1032, %v999, %v1001
  %v1034 = vsel %vm1032, %v1001, %v1003
  %v1035 = vsel %vm1032, %v1003, %v1005
  %v1036 = vsel %vm1032, %v1005, %v1007
  %v1037 = vsel %vm1032, %v1007, %v1009
  %v1038 = vsel %vm1032, %v1009, %v1011
  %v1039 = vsel %vm1032, %v1011, %v1013
  %v1040 = vsel %vm1032, %v1013, %v1015
  %v1041 = vsel %vm1032, %v1015, %v1017
  %v1042 = vsel %vm1032, %v1017, %v1019
  %v1043 = vsel %vm1032, %v1019, %v1021
  %v1044 = vsel %vm1032, %v1021, %v1023
  %v1045 = vsel %vm1032, %v1023, %v1025
  %v1046 = vsel %vm1032, %v1025, %v1027
  %v1047 = vsel %vm1032, %v1027, %v1029
  %v1048 = vsel %vm1032, %v1029, %v1031
  %v1065 = vadd.f32 %v944, %v1033
  %v1066 = vadd.f32 %v945, %v1034
  %v1067 = vadd.f32 %v946, %v1035
  %v1068 = vadd.f32 %v947, %v1036
  %v1069 = vadd.f32 %v948, %v1037
  %v1070 = vadd.f32 %v949, %v1038
  %v1071 = vadd.f32 %v950, %v1039
  %v1072 = vadd.f32 %v951, %v1040
  %v1073 = vadd.f32 %v952, %v1041
  %v1074 = vadd.f32 %v953, %v1042
  %v1075 = vadd.f32 %v954, %v1043
  %v1076 = vadd.f32 %v955, %v1044
  %v1077 = vadd.f32 %v956, %v1045
  %v1078 = vadd.f32 %v957, %v1046
  %v1079 = vadd.f32 %v958, %v1047
  %v1080 = vadd.f32 %v959, %v1048
  %1081 = vset.pattern.permute.xlu0 8
  %1082 = vperm.xlu0 %1081, %v129
  %v1083 = vpop.permute.xlu0 %1082
  %v1085 = vmul.f32 %v1083, %v138
  %v1086 = vmul.f32 %v1083, %v142
  %v1087 = vmul.f32 %v1083, %v146
  %v1088 = vmul.f32 %v1083, %v150
  %v1089 = vmul.f32 %v1083, %v154
  %v1090 = vmul.f32 %v1083, %v158
  %v1091 = vmul.f32 %v1083, %v162
  %v1092 = vmul.f32 %v1083, %v166
  %v1093 = vmul.f32 %v1083, %v170
  %v1094 = vmul.f32 %v1083, %v174
  %v1095 = vmul.f32 %v1083, %v178
  %v1096 = vmul.f32 %v1083, %v182
  %v1097 = vmul.f32 %v1083, %v186
  %v1098 = vmul.f32 %v1083, %v190
  %v1099 = vmul.f32 %v1083, %v194
  %v1100 = vmul.f32 %v1083, %v198
  %v1101 = vmul.f32 %v1083, 0.0
  %1119 = vrot.lane.b32.xlu0 %v1085, 93
  %v1120 = vpop.permute.xlu0 %1119
  %1121 = vrot.lane.b32.xlu0 %v1086, 93
  %v1122 = vpop.permute.xlu0 %1121
  %1123 = vrot.lane.b32.xlu0 %v1087, 93
  %v1124 = vpop.permute.xlu0 %1123
  %1125 = vrot.lane.b32.xlu0 %v1088, 93
  %v1126 = vpop.permute.xlu0 %1125
  %1127 = vrot.lane.b32.xlu0 %v1089, 93
  %v1128 = vpop.permute.xlu0 %1127
  %1129 = vrot.lane.b32.xlu0 %v1090, 93
  %v1130 = vpop.permute.xlu0 %1129
  %1131 = vrot.lane.b32.xlu0 %v1091, 93
  %v1132 = vpop.permute.xlu0 %1131
  %1133 = vrot.lane.b32.xlu0 %v1092, 93
  %v1134 = vpop.permute.xlu0 %1133
  %1135 = vrot.lane.b32.xlu0 %v1093, 93
  %v1136 = vpop.permute.xlu0 %1135
  %1137 = vrot.lane.b32.xlu0 %v1094, 93
  %v1138 = vpop.permute.xlu0 %1137
  %1139 = vrot.lane.b32.xlu0 %v1095, 93
  %v1140 = vpop.permute.xlu0 %1139
  %1141 = vrot.lane.b32.xlu0 %v1096, 93
  %v1142 = vpop.permute.xlu0 %1141
  %1143 = vrot.lane.b32.xlu0 %v1097, 93
  %v1144 = vpop.permute.xlu0 %1143
  %1145 = vrot.lane.b32.xlu0 %v1098, 93
  %v1146 = vpop.permute.xlu0 %1145
  %1147 = vrot.lane.b32.xlu0 %v1099, 93
  %v1148 = vpop.permute.xlu0 %1147
  %1149 = vrot.lane.b32.xlu0 %v1100, 93
  %v1150 = vpop.permute.xlu0 %1149
  %1151 = vrot.lane.b32.xlu0 %v1101, 93
  %v1152 = vpop.permute.xlu0 %1151
  %vm1153 = vcmask 760832
  %v1154 = vsel %vm1153, %v1120, %v1122
  %v1155 = vsel %vm1153, %v1122, %v1124
  %v1156 = vsel %vm1153, %v1124, %v1126
  %v1157 = vsel %vm1153, %v1126, %v1128
  %v1158 = vsel %vm1153, %v1128, %v1130
  %v1159 = vsel %vm1153, %v1130, %v1132
  %v1160 = vsel %vm1153, %v1132, %v1134
  %v1161 = vsel %vm1153, %v1134, %v1136
  %v1162 = vsel %vm1153, %v1136, %v1138
  %v1163 = vsel %vm1153, %v1138, %v1140
  %v1164 = vsel %vm1153, %v1140, %v1142
  %v1165 = vsel %vm1153, %v1142, %v1144
  %v1166 = vsel %vm1153, %v1144, %v1146
  %v1167 = vsel %vm1153, %v1146, %v1148
  %v1168 = vsel %vm1153, %v1148, %v1150
  %v1169 = vsel %vm1153, %v1150, %v1152
  %v1186 = vadd.f32 %v1065, %v1154
  %v1187 = vadd.f32 %v1066, %v1155
  %v1188 = vadd.f32 %v1067, %v1156
  %v1189 = vadd.f32 %v1068, %v1157
  %v1190 = vadd.f32 %v1069, %v1158
  %v1191 = vadd.f32 %v1070, %v1159
  %v1192 = vadd.f32 %v1071, %v1160
  %v1193 = vadd.f32 %v1072, %v1161
  %v1194 = vadd.f32 %v1073, %v1162
  %v1195 = vadd.f32 %v1074, %v1163
  %v1196 = vadd.f32 %v1075, %v1164
  %v1197 = vadd.f32 %v1076, %v1165
  %v1198 = vadd.f32 %v1077, %v1166
  %v1199 = vadd.f32 %v1078, %v1167
  %v1200 = vadd.f32 %v1079, %v1168
  %v1201 = vadd.f32 %v1080, %v1169
  %1202 = vset.pattern.permute.xlu0 9
  %1203 = vperm.xlu0 %1202, %v129
  %v1204 = vpop.permute.xlu0 %1203
  %v1206 = vmul.f32 %v1204, %v138
  %v1207 = vmul.f32 %v1204, %v142
  %v1208 = vmul.f32 %v1204, %v146
  %v1209 = vmul.f32 %v1204, %v150
  %v1210 = vmul.f32 %v1204, %v154
  %v1211 = vmul.f32 %v1204, %v158
  %v1212 = vmul.f32 %v1204, %v162
  %v1213 = vmul.f32 %v1204, %v166
  %v1214 = vmul.f32 %v1204, %v170
  %v1215 = vmul.f32 %v1204, %v174
  %v1216 = vmul.f32 %v1204, %v178
  %v1217 = vmul.f32 %v1204, %v182
  %v1218 = vmul.f32 %v1204, %v186
  %v1219 = vmul.f32 %v1204, %v190
  %v1220 = vmul.f32 %v1204, %v194
  %v1221 = vmul.f32 %v1204, %v198
  %v1222 = vmul.f32 %v1204, 0.0
  %1240 = vrot.lane.b32.xlu0 %v1206, 92
  %v1241 = vpop.permute.xlu0 %1240
  %1242 = vrot.lane.b32.xlu0 %v1207, 92
  %v1243 = vpop.permute.xlu0 %1242
  %1244 = vrot.lane.b32.xlu0 %v1208, 92
  %v1245 = vpop.permute.xlu0 %1244
  %1246 = vrot.lane.b32.xlu0 %v1209, 92
  %v1247 = vpop.permute.xlu0 %1246
  %1248 = vrot.lane.b32.xlu0 %v1210, 92
  %v1249 = vpop.permute.xlu0 %1248
  %1250 = vrot.lane.b32.xlu0 %v1211, 92
  %v1251 = vpop.permute.xlu0 %1250
  %1252 = vrot.lane.b32.xlu0 %v1212, 92
  %v1253 = vpop.permute.xlu0 %1252
  %1254 = vrot.lane.b32.xlu0 %v1213, 92
  %v1255 = vpop.permute.xlu0 %1254
  %1256 = vrot.lane.b32.xlu0 %v1214, 92
  %v1257 = vpop.permute.xlu0 %1256
  %1258 = vrot.lane.b32.xlu0 %v1215, 92
  %v1259 = vpop.permute.xlu0 %1258
  %1260 = vrot.lane.b32.xlu0 %v1216, 92
  %v1261 = vpop.permute.xlu0 %1260
  %1262 = vrot.lane.b32.xlu0 %v1217, 92
  %v1263 = vpop.permute.xlu0 %1262
  %1264 = vrot.lane.b32.xlu0 %v1218, 92
  %v1265 = vpop.permute.xlu0 %1264
  %1266 = vrot.lane.b32.xlu0 %v1219, 92
  %v1267 = vpop.permute.xlu0 %1266
  %1268 = vrot.lane.b32.xlu0 %v1220, 92
  %v1269 = vpop.permute.xlu0 %1268
  %1270 = vrot.lane.b32.xlu0 %v1221, 92
  %v1271 = vpop.permute.xlu0 %1270
  %1272 = vrot.lane.b32.xlu0 %v1222, 92
  %v1273 = vpop.permute.xlu0 %1272
  %vm1274 = vcmask 752640
  %v1275 = vsel %vm1274, %v1241, %v1243
  %v1276 = vsel %vm1274, %v1243, %v1245
  %v1277 = vsel %vm1274, %v1245, %v1247
  %v1278 = vsel %vm1274, %v1247, %v1249
  %v1279 = vsel %vm1274, %v1249, %v1251
  %v1280 = vsel %vm1274, %v1251, %v1253
  %v1281 = vsel %vm1274, %v1253, %v1255
  %v1282 = vsel %vm1274, %v1255, %v1257
  %v1283 = vsel %vm1274, %v1257, %v1259
  %v1284 = vsel %vm1274, %v1259, %v1261
  %v1285 = vsel %vm1274, %v1261, %v1263
  %v1286 = vsel %vm1274, %v1263, %v1265
  %v1287 = vsel %vm1274, %v1265, %v1267
  %v1288 = vsel %vm1274, %v1267, %v1269
  %v1289 = vsel %vm1274, %v1269, %v1271
  %v1290 = vsel %vm1274, %v1271, %v1273
  %v1307 = vadd.f32 %v1186, %v1275
  %v1308 = vadd.f32 %v1187, %v1276
  %v1309 = vadd.f32 %v1188, %v1277
  %v1310 = vadd.f32 %v1189, %v1278
  %v1311 = vadd.f32 %v1190, %v1279
  %v1312 = vadd.f32 %v1191, %v1280
  %v1313 = vadd.f32 %v1192, %v1281
  %v1314 = vadd.f32 %v1193, %v1282
  %v1315 = vadd.f32 %v1194, %v1283
  %v1316 = vadd.f32 %v1195, %v1284
  %v1317 = vadd.f32 %v1196, %v1285
  %v1318 = vadd.f32 %v1197, %v1286
  %v1319 = vadd.f32 %v1198, %v1287
  %v1320 = vadd.f32 %v1199, %v1288
  %v1321 = vadd.f32 %v1200, %v1289
  %v1322 = vadd.f32 %v1201, %v1290
  %1323 = vset.pattern.permute.xlu0 10
  %1324 = vperm.xlu0 %1323, %v129
  %v1325 = vpop.permute.xlu0 %1324
  %v1327 = vmul.f32 %v1325, %v138
  %v1328 = vmul.f32 %v1325, %v142
  %v1329 = vmul.f32 %v1325, %v146
  %v1330 = vmul.f32 %v1325, %v150
  %v1331 = vmul.f32 %v1325, %v154
  %v1332 = vmul.f32 %v1325, %v158
  %v1333 = vmul.f32 %v1325, %v162
  %v1334 = vmul.f32 %v1325, %v166
  %v1335 = vmul.f32 %v1325, %v170
  %v1336 = vmul.f32 %v1325, %v174
  %v1337 = vmul.f32 %v1325, %v178
  %v1338 = vmul.f32 %v1325, %v182
  %v1339 = vmul.f32 %v1325, %v186
  %v1340 = vmul.f32 %v1325, %v190
  %v1341 = vmul.f32 %v1325, %v194
  %v1342 = vmul.f32 %v1325, %v198
  %v1343 = vmul.f32 %v1325, 0.0
  %1361 = vrot.lane.b32.xlu0 %v1327, 64
  %v1362 = vpop.permute.xlu0 %1361
  %1363 = vrot.lane.b32.xlu0 %v1328, 64
  %v1364 = vpop.permute.xlu0 %1363
  %1365 = vrot.lane.b32.xlu0 %v1329, 64
  %v1366 = vpop.permute.xlu0 %1365
  %1367 = vrot.lane.b32.xlu0 %v1330, 64
  %v1368 = vpop.permute.xlu0 %1367
  %1369 = vrot.lane.b32.xlu0 %v1331, 64
  %v1370 = vpop.permute.xlu0 %1369
  %1371 = vrot.lane.b32.xlu0 %v1332, 64
  %v1372 = vpop.permute.xlu0 %1371
  %1373 = vrot.lane.b32.xlu0 %v1333, 64
  %v1374 = vpop.permute.xlu0 %1373
  %1375 = vrot.lane.b32.xlu0 %v1334, 64
  %v1376 = vpop.permute.xlu0 %1375
  %1377 = vrot.lane.b32.xlu0 %v1335, 64
  %v1378 = vpop.permute.xlu0 %1377
  %1379 = vrot.lane.b32.xlu0 %v1336, 64
  %v1380 = vpop.permute.xlu0 %1379
  %1381 = vrot.lane.b32.xlu0 %v1337, 64
  %v1382 = vpop.permute.xlu0 %1381
  %1383 = vrot.lane.b32.xlu0 %v1338, 64
  %v1384 = vpop.permute.xlu0 %1383
  %1385 = vrot.lane.b32.xlu0 %v1339, 64
  %v1386 = vpop.permute.xlu0 %1385
  %1387 = vrot.lane.b32.xlu0 %v1340, 64
  %v1388 = vpop.permute.xlu0 %1387
  %1389 = vrot.lane.b32.xlu0 %v1341, 64
  %v1390 = vpop.permute.xlu0 %1389
  %1391 = vrot.lane.b32.xlu0 %v1342, 64
  %v1392 = vpop.permute.xlu0 %1391
  %1393 = vrot.lane.b32.xlu0 %v1343, 64
  %v1394 = vpop.permute.xlu0 %1393
  %vm1395 = vcmask 523264
  %v1396 = vsel %vm1395, %v1362, %v1364
  %v1397 = vsel %vm1395, %v1364, %v1366
  %v1398 = vsel %vm1395, %v1366, %v1368
  %v1399 = vsel %vm1395, %v1368, %v1370
  %v1400 = vsel %vm1395, %v1370, %v1372
  %v1401 = vsel %vm1395, %v1372, %v1374
  %v1402 = vsel %vm1395, %v1374, %v1376
  %v1403 = vsel %vm1395, %v1376, %v1378
  %v1404 = vsel %vm1395, %v1378, %v1380
  %v1405 = vsel %vm1395, %v1380, %v1382
  %v1406 = vsel %vm1395, %v1382, %v1384
  %v1407 = vsel %vm1395, %v1384, %v1386
  %v1408 = vsel %vm1395, %v1386, %v1388
  %v1409 = vsel %vm1395, %v1388, %v1390
  %v1410 = vsel %vm1395, %v1390, %v1392
  %v1411 = vsel %vm1395, %v1392, %v1394
  %v1428 = vadd.f32 %v1307, %v1396
  %v1429 = vadd.f32 %v1308, %v1397
  %v1430 = vadd.f32 %v1309, %v1398
  %v1431 = vadd.f32 %v1310, %v1399
  %v1432 = vadd.f32 %v1311, %v1400
  %v1433 = vadd.f32 %v1312, %v1401
  %v1434 = vadd.f32 %v1313, %v1402
  %v1435 = vadd.f32 %v1314, %v1403
  %v1436 = vadd.f32 %v1315, %v1404
  %v1437 = vadd.f32 %v1316, %v1405
  %v1438 = vadd.f32 %v1317, %v1406
  %v1439 = vadd.f32 %v1318, %v1407
  %v1440 = vadd.f32 %v1319, %v1408
  %v1441 = vadd.f32 %v1320, %v1409
  %v1442 = vadd.f32 %v1321, %v1410
  %v1443 = vadd.f32 %v1322, %v1411
  %1444 = vset.pattern.permute.xlu0 11
  %1445 = vperm.xlu0 %1444, %v129
  %v1446 = vpop.permute.xlu0 %1445
  %v1448 = vmul.f32 %v1446, %v138
  %v1449 = vmul.f32 %v1446, %v142
  %v1450 = vmul.f32 %v1446, %v146
  %v1451 = vmul.f32 %v1446, %v150
  %v1452 = vmul.f32 %v1446, %v154
  %v1453 = vmul.f32 %v1446, %v158
  %v1454 = vmul.f32 %v1446, %v162
  %v1455 = vmul.f32 %v1446, %v166
  %v1456 = vmul.f32 %v1446, %v170
  %v1457 = vmul.f32 %v1446, %v174
  %v1458 = vmul.f32 %v1446, %v178
  %v1459 = vmul.f32 %v1446, %v182
  %v1460 = vmul.f32 %v1446, %v186
  %v1461 = vmul.f32 %v1446, %v190
  %v1462 = vmul.f32 %v1446, %v194
  %v1463 = vmul.f32 %v1446, %v198
  %v1464 = vmul.f32 %v1446, 0.0
  %1482 = vrot.lane.b32.xlu0 %v1448, 63
  %v1483 = vpop.permute.xlu0 %1482
  %1484 = vrot.lane.b32.xlu0 %v1449, 63
  %v1485 = vpop.permute.xlu0 %1484
  %1486 = vrot.lane.b32.xlu0 %v1450, 63
  %v1487 = vpop.permute.xlu0 %1486
  %1488 = vrot.lane.b32.xlu0 %v1451, 63
  %v1489 = vpop.permute.xlu0 %1488
  %1490 = vrot.lane.b32.xlu0 %v1452, 63
  %v1491 = vpop.permute.xlu0 %1490
  %1492 = vrot.lane.b32.xlu0 %v1453, 63
  %v1493 = vpop.permute.xlu0 %1492
  %1494 = vrot.lane.b32.xlu0 %v1454, 63
  %v1495 = vpop.permute.xlu0 %1494
  %1496 = vrot.lane.b32.xlu0 %v1455, 63
  %v1497 = vpop.permute.xlu0 %1496
  %1498 = vrot.lane.b32.xlu0 %v1456, 63
  %v1499 = vpop.permute.xlu0 %1498
  %1500 = vrot.lane.b32.xlu0 %v1457, 63
  %v1501 = vpop.permute.xlu0 %1500
  %1502 = vrot.lane.b32.xlu0 %v1458, 63
  %v1503 = vpop.permute.xlu0 %1502
  %1504 = vrot.lane.b32.xlu0 %v1459, 63
  %v1505 = vpop.permute.xlu0 %1504
  %1506 = vrot.lane.b32.xlu0 %v1460, 63
  %v1507 = vpop.permute.xlu0 %1506
  %1508 = vrot.lane.b32.xlu0 %v1461, 63
  %v1509 = vpop.permute.xlu0 %1508
  %1510 = vrot.lane.b32.xlu0 %v1462, 63
  %v1511 = vpop.permute.xlu0 %1510
  %1512 = vrot.lane.b32.xlu0 %v1463, 63
  %v1513 = vpop.permute.xlu0 %1512
  %1514 = vrot.lane.b32.xlu0 %v1464, 63
  %v1515 = vpop.permute.xlu0 %1514
  %vm1516 = vcmask 515072
  %v1517 = vsel %vm1516, %v1483, %v1485
  %v1518 = vsel %vm1516, %v1485, %v1487
  %v1519 = vsel %vm1516, %v1487, %v1489
  %v1520 = vsel %vm1516, %v1489, %v1491
  %v1521 = vsel %vm1516, %v1491, %v1493
  %v1522 = vsel %vm1516, %v1493, %v1495
  %v1523 = vsel %vm1516, %v1495, %v1497
  %v1524 = vsel %vm1516, %v1497, %v1499
  %v1525 = vsel %vm1516, %v1499, %v1501
  %v1526 = vsel %vm1516, %v1501, %v1503
  %v1527 = vsel %vm1516, %v1503, %v1505
  %v1528 = vsel %vm1516, %v1505, %v1507
  %v1529 = vsel %vm1516, %v1507, %v1509
  %v1530 = vsel %vm1516, %v1509, %v1511
  %v1531 = vsel %vm1516, %v1511, %v1513
  %v1532 = vsel %vm1516, %v1513, %v1515
  %v1549 = vadd.f32 %v1428, %v1517
  %v1550 = vadd.f32 %v1429, %v1518
  %v1551 = vadd.f32 %v1430, %v1519
  %v1552 = vadd.f32 %v1431, %v1520
  %v1553 = vadd.f32 %v1432, %v1521
  %v1554 = vadd.f32 %v1433, %v1522
  %v1555 = vadd.f32 %v1434, %v1523
  %v1556 = vadd.f32 %v1435, %v1524
  %v1557 = vadd.f32 %v1436, %v1525
  %v1558 = vadd.f32 %v1437, %v1526
  %v1559 = vadd.f32 %v1438, %v1527
  %v1560 = vadd.f32 %v1439, %v1528
  %v1561 = vadd.f32 %v1440, %v1529
  %v1562 = vadd.f32 %v1441, %v1530
  %v1563 = vadd.f32 %v1442, %v1531
  %v1564 = vadd.f32 %v1443, %v1532
  %1565 = vset.pattern.permute.xlu0 12
  %1566 = vperm.xlu0 %1565, %v129
  %v1567 = vpop.permute.xlu0 %1566
  %v1569 = vmul.f32 %v1567, %v138
  %v1570 = vmul.f32 %v1567, %v142
  %v1571 = vmul.f32 %v1567, %v146
  %v1572 = vmul.f32 %v1567, %v150
  %v1573 = vmul.f32 %v1567, %v154
  %v1574 = vmul.f32 %v1567, %v158
  %v1575 = vmul.f32 %v1567, %v162
  %v1576 = vmul.f32 %v1567, %v166
  %v1577 = vmul.f32 %v1567, %v170
  %v1578 = vmul.f32 %v1567, %v174
  %v1579 = vmul.f32 %v1567, %v178
  %v1580 = vmul.f32 %v1567, %v182
  %v1581 = vmul.f32 %v1567, %v186
  %v1582 = vmul.f32 %v1567, %v190
  %v1583 = vmul.f32 %v1567, %v194
  %v1584 = vmul.f32 %v1567, %v198
  %v1585 = vmul.f32 %v1567, 0.0
  %1603 = vrot.lane.b32.xlu0 %v1569, 62
  %v1604 = vpop.permute.xlu0 %1603
  %1605 = vrot.lane.b32.xlu0 %v1570, 62
  %v1606 = vpop.permute.xlu0 %1605
  %1607 = vrot.lane.b32.xlu0 %v1571, 62
  %v1608 = vpop.permute.xlu0 %1607
  %1609 = vrot.lane.b32.xlu0 %v1572, 62
  %v1610 = vpop.permute.xlu0 %1609
  %1611 = vrot.lane.b32.xlu0 %v1573, 62
  %v1612 = vpop.permute.xlu0 %1611
  %1613 = vrot.lane.b32.xlu0 %v1574, 62
  %v1614 = vpop.permute.xlu0 %1613
  %1615 = vrot.lane.b32.xlu0 %v1575, 62
  %v1616 = vpop.permute.xlu0 %1615
  %1617 = vrot.lane.b32.xlu0 %v1576, 62
  %v1618 = vpop.permute.xlu0 %1617
  %1619 = vrot.lane.b32.xlu0 %v1577, 62
  %v1620 = vpop.permute.xlu0 %1619
  %1621 = vrot.lane.b32.xlu0 %v1578, 62
  %v1622 = vpop.permute.xlu0 %1621
  %1623 = vrot.lane.b32.xlu0 %v1579, 62
  %v1624 = vpop.permute.xlu0 %1623
  %1625 = vrot.lane.b32.xlu0 %v1580, 62
  %v1626 = vpop.permute.xlu0 %1625
  %1627 = vrot.lane.b32.xlu0 %v1581, 62
  %v1628 = vpop.permute.xlu0 %1627
  %1629 = vrot.lane.b32.xlu0 %v1582, 62
  %v1630 = vpop.permute.xlu0 %1629
  %1631 = vrot.lane.b32.xlu0 %v1583, 62
  %v1632 = vpop.permute.xlu0 %1631
  %1633 = vrot.lane.b32.xlu0 %v1584, 62
  %v1634 = vpop.permute.xlu0 %1633
  %1635 = vrot.lane.b32.xlu0 %v1585, 62
  %v1636 = vpop.permute.xlu0 %1635
  %vm1637 = vcmask 506880
  %v1638 = vsel %vm1637, %v1604, %v1606
  %v1639 = vsel %vm1637, %v1606, %v1608
  %v1640 = vsel %vm1637, %v1608, %v1610
  %v1641 = vsel %vm1637, %v1610, %v1612
  %v1642 = vsel %vm1637, %v1612, %v1614
  %v1643 = vsel %vm1637, %v1614, %v1616
  %v1644 = vsel %vm1637, %v1616, %v1618
  %v1645 = vsel %vm1637, %v1618, %v1620
  %v1646 = vsel %vm1637, %v1620, %v1622
  %v1647 = vsel %vm1637, %v1622, %v1624
  %v1648 = vsel %vm1637, %v1624, %v1626
  %v1649 = vsel %vm1637, %v1626, %v1628
  %v1650 = vsel %vm1637, %v1628, %v1630
  %v1651 = vsel %vm1637, %v1630, %v1632
  %v1652 = vsel %vm1637, %v1632, %v1634
  %v1653 = vsel %vm1637, %v1634, %v1636
  %v1670 = vadd.f32 %v1549, %v1638
  %v1671 = vadd.f32 %v1550, %v1639
  %v1672 = vadd.f32 %v1551, %v1640
  %v1673 = vadd.f32 %v1552, %v1641
  %v1674 = vadd.f32 %v1553, %v1642
  %v1675 = vadd.f32 %v1554, %v1643
  %v1676 = vadd.f32 %v1555, %v1644
  %v1677 = vadd.f32 %v1556, %v1645
  %v1678 = vadd.f32 %v1557, %v1646
  %v1679 = vadd.f32 %v1558, %v1647
  %v1680 = vadd.f32 %v1559, %v1648
  %v1681 = vadd.f32 %v1560, %v1649
  %v1682 = vadd.f32 %v1561, %v1650
  %v1683 = vadd.f32 %v1562, %v1651
  %v1684 = vadd.f32 %v1563, %v1652
  %v1685 = vadd.f32 %v1564, %v1653
  %1686 = vset.pattern.permute.xlu0 13
  %1687 = vperm.xlu0 %1686, %v129
  %v1688 = vpop.permute.xlu0 %1687
  %v1690 = vmul.f32 %v1688, %v138
  %v1691 = vmul.f32 %v1688, %v142
  %v1692 = vmul.f32 %v1688, %v146
  %v1693 = vmul.f32 %v1688, %v150
  %v1694 = vmul.f32 %v1688, %v154
  %v1695 = vmul.f32 %v1688, %v158
  %v1696 = vmul.f32 %v1688, %v162
  %v1697 = vmul.f32 %v1688, %v166
  %v1698 = vmul.f32 %v1688, %v170
  %v1699 = vmul.f32 %v1688, %v174
  %v1700 = vmul.f32 %v1688, %v178
  %v1701 = vmul.f32 %v1688, %v182
  %v1702 = vmul.f32 %v1688, %v186
  %v1703 = vmul.f32 %v1688, %v190
  %v1704 = vmul.f32 %v1688, %v194
  %v1705 = vmul.f32 %v1688, %v198
  %v1706 = vmul.f32 %v1688, 0.0
  %1724 = vrot.lane.b32.xlu0 %v1690, 61
  %v1725 = vpop.permute.xlu0 %1724
  %1726 = vrot.lane.b32.xlu0 %v1691, 61
  %v1727 = vpop.permute.xlu0 %1726
  %1728 = vrot.lane.b32.xlu0 %v1692, 61
  %v1729 = vpop.permute.xlu0 %1728
  %1730 = vrot.lane.b32.xlu0 %v1693, 61
  %v1731 = vpop.permute.xlu0 %1730
  %1732 = vrot.lane.b32.xlu0 %v1694, 61
  %v1733 = vpop.permute.xlu0 %1732
  %1734 = vrot.lane.b32.xlu0 %v1695, 61
  %v1735 = vpop.permute.xlu0 %1734
  %1736 = vrot.lane.b32.xlu0 %v1696, 61
  %v1737 = vpop.permute.xlu0 %1736
  %1738 = vrot.lane.b32.xlu0 %v1697, 61
  %v1739 = vpop.permute.xlu0 %1738
  %1740 = vrot.lane.b32.xlu0 %v1698, 61
  %v1741 = vpop.permute.xlu0 %1740
  %1742 = vrot.lane.b32.xlu0 %v1699, 61
  %v1743 = vpop.permute.xlu0 %1742
  %1744 = vrot.lane.b32.xlu0 %v1700, 61
  %v1745 = vpop.permute.xlu0 %1744
  %1746 = vrot.lane.b32.xlu0 %v1701, 61
  %v1747 = vpop.permute.xlu0 %1746
  %1748 = vrot.lane.b32.xlu0 %v1702, 61
  %v1749 = vpop.permute.xlu0 %1748
  %1750 = vrot.lane.b32.xlu0 %v1703, 61
  %v1751 = vpop.permute.xlu0 %1750
  %1752 = vrot.lane.b32.xlu0 %v1704, 61
  %v1753 = vpop.permute.xlu0 %1752
  %1754 = vrot.lane.b32.xlu0 %v1705, 61
  %v1755 = vpop.permute.xlu0 %1754
  %1756 = vrot.lane.b32.xlu0 %v1706, 61
  %v1757 = vpop.permute.xlu0 %1756
  %vm1758 = vcmask 498688
  %v1759 = vsel %vm1758, %v1725, %v1727
  %v1760 = vsel %vm1758, %v1727, %v1729
  %v1761 = vsel %vm1758, %v1729, %v1731
  %v1762 = vsel %vm1758, %v1731, %v1733
  %v1763 = vsel %vm1758, %v1733, %v1735
  %v1764 = vsel %vm1758, %v1735, %v1737
  %v1765 = vsel %vm1758, %v1737, %v1739
  %v1766 = vsel %vm1758, %v1739, %v1741
  %v1767 = vsel %vm1758, %v1741, %v1743
  %v1768 = vsel %vm1758, %v1743, %v1745
  %v1769 = vsel %vm1758, %v1745, %v1747
  %v1770 = vsel %vm1758, %v1747, %v1749
  %v1771 = vsel %vm1758, %v1749, %v1751
  %v1772 = vsel %vm1758, %v1751, %v1753
  %v1773 = vsel %vm1758, %v1753, %v1755
  %v1774 = vsel %vm1758, %v1755, %v1757
  %v1791 = vadd.f32 %v1670, %v1759
  %v1792 = vadd.f32 %v1671, %v1760
  %v1793 = vadd.f32 %v1672, %v1761
  %v1794 = vadd.f32 %v1673, %v1762
  %v1795 = vadd.f32 %v1674, %v1763
  %v1796 = vadd.f32 %v1675, %v1764
  %v1797 = vadd.f32 %v1676, %v1765
  %v1798 = vadd.f32 %v1677, %v1766
  %v1799 = vadd.f32 %v1678, %v1767
  %v1800 = vadd.f32 %v1679, %v1768
  %v1801 = vadd.f32 %v1680, %v1769
  %v1802 = vadd.f32 %v1681, %v1770
  %v1803 = vadd.f32 %v1682, %v1771
  %v1804 = vadd.f32 %v1683, %v1772
  %v1805 = vadd.f32 %v1684, %v1773
  %v1806 = vadd.f32 %v1685, %v1774
  %1807 = vset.pattern.permute.xlu0 14
  %1808 = vperm.xlu0 %1807, %v129
  %v1809 = vpop.permute.xlu0 %1808
  %v1811 = vmul.f32 %v1809, %v138
  %v1812 = vmul.f32 %v1809, %v142
  %v1813 = vmul.f32 %v1809, %v146
  %v1814 = vmul.f32 %v1809, %v150
  %v1815 = vmul.f32 %v1809, %v154
  %v1816 = vmul.f32 %v1809, %v158
  %v1817 = vmul.f32 %v1809, %v162
  %v1818 = vmul.f32 %v1809, %v166
  %v1819 = vmul.f32 %v1809, %v170
  %v1820 = vmul.f32 %v1809, %v174
  %v1821 = vmul.f32 %v1809, %v178
  %v1822 = vmul.f32 %v1809, %v182
  %v1823 = vmul.f32 %v1809, %v186
  %v1824 = vmul.f32 %v1809, %v190
  %v1825 = vmul.f32 %v1809, %v194
  %v1826 = vmul.f32 %v1809, %v198
  %v1827 = vmul.f32 %v1809, 0.0
  %1845 = vrot.lane.b32.xlu0 %v1811, 60
  %v1846 = vpop.permute.xlu0 %1845
  %1847 = vrot.lane.b32.xlu0 %v1812, 60
  %v1848 = vpop.permute.xlu0 %1847
  %1849 = vrot.lane.b32.xlu0 %v1813, 60
  %v1850 = vpop.permute.xlu0 %1849
  %1851 = vrot.lane.b32.xlu0 %v1814, 60
  %v1852 = vpop.permute.xlu0 %1851
  %1853 = vrot.lane.b32.xlu0 %v1815, 60
  %v1854 = vpop.permute.xlu0 %1853
  %1855 = vrot.lane.b32.xlu0 %v1816, 60
  %v1856 = vpop.permute.xlu0 %1855
  %1857 = vrot.lane.b32.xlu0 %v1817, 60
  %v1858 = vpop.permute.xlu0 %1857
  %1859 = vrot.lane.b32.xlu0 %v1818, 60
  %v1860 = vpop.permute.xlu0 %1859
  %1861 = vrot.lane.b32.xlu0 %v1819, 60
  %v1862 = vpop.permute.xlu0 %1861
  %1863 = vrot.lane.b32.xlu0 %v1820, 60
  %v1864 = vpop.permute.xlu0 %1863
  %1865 = vrot.lane.b32.xlu0 %v1821, 60
  %v1866 = vpop.permute.xlu0 %1865
  %1867 = vrot.lane.b32.xlu0 %v1822, 60
  %v1868 = vpop.permute.xlu0 %1867
  %1869 = vrot.lane.b32.xlu0 %v1823, 60
  %v1870 = vpop.permute.xlu0 %1869
  %1871 = vrot.lane.b32.xlu0 %v1824, 60
  %v1872 = vpop.permute.xlu0 %1871
  %1873 = vrot.lane.b32.xlu0 %v1825, 60
  %v1874 = vpop.permute.xlu0 %1873
  %1875 = vrot.lane.b32.xlu0 %v1826, 60
  %v1876 = vpop.permute.xlu0 %1875
  %1877 = vrot.lane.b32.xlu0 %v1827, 60
  %v1878 = vpop.permute.xlu0 %1877
  %vm1879 = vcmask 490496
  %v1880 = vsel %vm1879, %v1846, %v1848
  %v1881 = vsel %vm1879, %v1848, %v1850
  %v1882 = vsel %vm1879, %v1850, %v1852
  %v1883 = vsel %vm1879, %v1852, %v1854
  %v1884 = vsel %vm1879, %v1854, %v1856
  %v1885 = vsel %vm1879, %v1856, %v1858
  %v1886 = vsel %vm1879, %v1858, %v1860
  %v1887 = vsel %vm1879, %v1860, %v1862
  %v1888 = vsel %vm1879, %v1862, %v1864
  %v1889 = vsel %vm1879, %v1864, %v1866
  %v1890 = vsel %vm1879, %v1866, %v1868
  %v1891 = vsel %vm1879, %v1868, %v1870
  %v1892 = vsel %vm1879, %v1870, %v1872
  %v1893 = vsel %vm1879, %v1872, %v1874
  %v1894 = vsel %vm1879, %v1874, %v1876
  %v1895 = vsel %vm1879, %v1876, %v1878
  %v1912 = vadd.f32 %v1791, %v1880
  %v1913 = vadd.f32 %v1792, %v1881
  %v1914 = vadd.f32 %v1793, %v1882
  %v1915 = vadd.f32 %v1794, %v1883
  %v1916 = vadd.f32 %v1795, %v1884
  %v1917 = vadd.f32 %v1796, %v1885
  %v1918 = vadd.f32 %v1797, %v1886
  %v1919 = vadd.f32 %v1798, %v1887
  %v1920 = vadd.f32 %v1799, %v1888
  %v1921 = vadd.f32 %v1800, %v1889
  %v1922 = vadd.f32 %v1801, %v1890
  %v1923 = vadd.f32 %v1802, %v1891
  %v1924 = vadd.f32 %v1803, %v1892
  %v1925 = vadd.f32 %v1804, %v1893
  %v1926 = vadd.f32 %v1805, %v1894
  %v1927 = vadd.f32 %v1806, %v1895
  %1928 = vset.pattern.permute.xlu0 15
  %1929 = vperm.xlu0 %1928, %v129
  %v1930 = vpop.permute.xlu0 %1929
  %v1932 = vmul.f32 %v1930, %v138
  %v1933 = vmul.f32 %v1930, %v142
  %v1934 = vmul.f32 %v1930, %v146
  %v1935 = vmul.f32 %v1930, %v150
  %v1936 = vmul.f32 %v1930, %v154
  %v1937 = vmul.f32 %v1930, %v158
  %v1938 = vmul.f32 %v1930, %v162
  %v1939 = vmul.f32 %v1930, %v166
  %v1940 = vmul.f32 %v1930, %v170
  %v1941 = vmul.f32 %v1930, %v174
  %v1942 = vmul.f32 %v1930, %v178
  %v1943 = vmul.f32 %v1930, %v182
  %v1944 = vmul.f32 %v1930, %v186
  %v1945 = vmul.f32 %v1930, %v190
  %v1946 = vmul.f32 %v1930, %v194
  %v1947 = vmul.f32 %v1930, %v198
  %v1948 = vmul.f32 %v1930, 0.0
  %1966 = vrot.lane.b32.xlu0 %v1932, 32
  %v1967 = vpop.permute.xlu0 %1966
  %1968 = vrot.lane.b32.xlu0 %v1933, 32
  %v1969 = vpop.permute.xlu0 %1968
  %1970 = vrot.lane.b32.xlu0 %v1934, 32
  %v1971 = vpop.permute.xlu0 %1970
  %1972 = vrot.lane.b32.xlu0 %v1935, 32
  %v1973 = vpop.permute.xlu0 %1972
  %1974 = vrot.lane.b32.xlu0 %v1936, 32
  %v1975 = vpop.permute.xlu0 %1974
  %1976 = vrot.lane.b32.xlu0 %v1937, 32
  %v1977 = vpop.permute.xlu0 %1976
  %1978 = vrot.lane.b32.xlu0 %v1938, 32
  %v1979 = vpop.permute.xlu0 %1978
  %1980 = vrot.lane.b32.xlu0 %v1939, 32
  %v1981 = vpop.permute.xlu0 %1980
  %1982 = vrot.lane.b32.xlu0 %v1940, 32
  %v1983 = vpop.permute.xlu0 %1982
  %1984 = vrot.lane.b32.xlu0 %v1941, 32
  %v1985 = vpop.permute.xlu0 %1984
  %1986 = vrot.lane.b32.xlu0 %v1942, 32
  %v1987 = vpop.permute.xlu0 %1986
  %1988 = vrot.lane.b32.xlu0 %v1943, 32
  %v1989 = vpop.permute.xlu0 %1988
  %1990 = vrot.lane.b32.xlu0 %v1944, 32
  %v1991 = vpop.permute.xlu0 %1990
  %1992 = vrot.lane.b32.xlu0 %v1945, 32
  %v1993 = vpop.permute.xlu0 %1992
  %1994 = vrot.lane.b32.xlu0 %v1946, 32
  %v1995 = vpop.permute.xlu0 %1994
  %1996 = vrot.lane.b32.xlu0 %v1947, 32
  %v1997 = vpop.permute.xlu0 %1996
  %1998 = vrot.lane.b32.xlu0 %v1948, 32
  %v1999 = vpop.permute.xlu0 %1998
  %vm2000 = vcmask 261120
  %v2001 = vsel %vm2000, %v1967, %v1969
  %v2002 = vsel %vm2000, %v1969, %v1971
  %v2003 = vsel %vm2000, %v1971, %v1973
  %v2004 = vsel %vm2000, %v1973, %v1975
  %v2005 = vsel %vm2000, %v1975, %v1977
  %v2006 = vsel %vm2000, %v1977, %v1979
  %v2007 = vsel %vm2000, %v1979, %v1981
  %v2008 = vsel %vm2000, %v1981, %v1983
  %v2009 = vsel %vm2000, %v1983, %v1985
  %v2010 = vsel %vm2000, %v1985, %v1987
  %v2011 = vsel %vm2000, %v1987, %v1989
  %v2012 = vsel %vm2000, %v1989, %v1991
  %v2013 = vsel %vm2000, %v1991, %v1993
  %v2014 = vsel %vm2000, %v1993, %v1995
  %v2015 = vsel %vm2000, %v1995, %v1997
  %v2016 = vsel %vm2000, %v1997, %v1999
  %v2033 = vadd.f32 %v1912, %v2001
  %v2034 = vadd.f32 %v1913, %v2002
  %v2035 = vadd.f32 %v1914, %v2003
  %v2036 = vadd.f32 %v1915, %v2004
  %v2037 = vadd.f32 %v1916, %v2005
  %v2038 = vadd.f32 %v1917, %v2006
  %v2039 = vadd.f32 %v1918, %v2007
  %v2040 = vadd.f32 %v1919, %v2008
  %v2041 = vadd.f32 %v1920, %v2009
  %v2042 = vadd.f32 %v1921, %v2010
  %v2043 = vadd.f32 %v1922, %v2011
  %v2044 = vadd.f32 %v1923, %v2012
  %v2045 = vadd.f32 %v1924, %v2013
  %v2046 = vadd.f32 %v1925, %v2014
  %v2047 = vadd.f32 %v1926, %v2015
  %v2048 = vadd.f32 %v1927, %v2016
  %2049 = vset.pattern.permute.xlu0 16
  %2050 = vperm.xlu0 %2049, %v129
  %v2051 = vpop.permute.xlu0 %2050
  %v2053 = vmul.f32 %v2051, %v138
  %v2054 = vmul.f32 %v2051, %v142
  %v2055 = vmul.f32 %v2051, %v146
  %v2056 = vmul.f32 %v2051, %v150
  %v2057 = vmul.f32 %v2051, %v154
  %v2058 = vmul.f32 %v2051, %v158
  %v2059 = vmul.f32 %v2051, %v162
  %v2060 = vmul.f32 %v2051, %v166
  %v2061 = vmul.f32 %v2051, %v170
  %v2062 = vmul.f32 %v2051, %v174
  %v2063 = vmul.f32 %v2051, %v178
  %v2064 = vmul.f32 %v2051, %v182
  %v2065 = vmul.f32 %v2051, %v186
  %v2066 = vmul.f32 %v2051, %v190
  %v2067 = vmul.f32 %v2051, %v194
  %v2068 = vmul.f32 %v2051, %v198
  %v2069 = vmul.f32 %v2051, 0.0
  %2087 = vrot.lane.b32.xlu0 %v2053, 31
  %v2088 = vpop.permute.xlu0 %2087
  %2089 = vrot.lane.b32.xlu0 %v2054, 31
  %v2090 = vpop.permute.xlu0 %2089
  %2091 = vrot.lane.b32.xlu0 %v2055, 31
  %v2092 = vpop.permute.xlu0 %2091
  %2093 = vrot.lane.b32.xlu0 %v2056, 31
  %v2094 = vpop.permute.xlu0 %2093
  %2095 = vrot.lane.b32.xlu0 %v2057, 31
  %v2096 = vpop.permute.xlu0 %2095
  %2097 = vrot.lane.b32.xlu0 %v2058, 31
  %v2098 = vpop.permute.xlu0 %2097
  %2099 = vrot.lane.b32.xlu0 %v2059, 31
  %v2100 = vpop.permute.xlu0 %2099
  %2101 = vrot.lane.b32.xlu0 %v2060, 31
  %v2102 = vpop.permute.xlu0 %2101
  %2103 = vrot.lane.b32.xlu0 %v2061, 31
  %v2104 = vpop.permute.xlu0 %2103
  %2105 = vrot.lane.b32.xlu0 %v2062, 31
  %v2106 = vpop.permute.xlu0 %2105
  %2107 = vrot.lane.b32.xlu0 %v2063, 31
  %v2108 = vpop.permute.xlu0 %2107
  %2109 = vrot.lane.b32.xlu0 %v2064, 31
  %v2110 = vpop.permute.xlu0 %2109
  %2111 = vrot.lane.b32.xlu0 %v2065, 31
  %v2112 = vpop.permute.xlu0 %2111
  %2113 = vrot.lane.b32.xlu0 %v2066, 31
  %v2114 = vpop.permute.xlu0 %2113
  %2115 = vrot.lane.b32.xlu0 %v2067, 31
  %v2116 = vpop.permute.xlu0 %2115
  %2117 = vrot.lane.b32.xlu0 %v2068, 31
  %v2118 = vpop.permute.xlu0 %2117
  %2119 = vrot.lane.b32.xlu0 %v2069, 31
  %v2120 = vpop.permute.xlu0 %2119
  %vm2121 = vcmask 252928
  %v2122 = vsel %vm2121, %v2088, %v2090
  %v2123 = vsel %vm2121, %v2090, %v2092
  %v2124 = vsel %vm2121, %v2092, %v2094
  %v2125 = vsel %vm2121, %v2094, %v2096
  %v2126 = vsel %vm2121, %v2096, %v2098
  %v2127 = vsel %vm2121, %v2098, %v2100
  %v2128 = vsel %vm2121, %v2100, %v2102
  %v2129 = vsel %vm2121, %v2102, %v2104
  %v2130 = vsel %vm2121, %v2104, %v2106
  %v2131 = vsel %vm2121, %v2106, %v2108
  %v2132 = vsel %vm2121, %v2108, %v2110
  %v2133 = vsel %vm2121, %v2110, %v2112
  %v2134 = vsel %vm2121, %v2112, %v2114
  %v2135 = vsel %vm2121, %v2114, %v2116
  %v2136 = vsel %vm2121, %v2116, %v2118
  %v2137 = vsel %vm2121, %v2118, %v2120
  %v2154 = vadd.f32 %v2033, %v2122
  %v2155 = vadd.f32 %v2034, %v2123
  %v2156 = vadd.f32 %v2035, %v2124
  %v2157 = vadd.f32 %v2036, %v2125
  %v2158 = vadd.f32 %v2037, %v2126
  %v2159 = vadd.f32 %v2038, %v2127
  %v2160 = vadd.f32 %v2039, %v2128
  %v2161 = vadd.f32 %v2040, %v2129
  %v2162 = vadd.f32 %v2041, %v2130
  %v2163 = vadd.f32 %v2042, %v2131
  %v2164 = vadd.f32 %v2043, %v2132
  %v2165 = vadd.f32 %v2044, %v2133
  %v2166 = vadd.f32 %v2045, %v2134
  %v2167 = vadd.f32 %v2046, %v2135
  %v2168 = vadd.f32 %v2047, %v2136
  %v2169 = vadd.f32 %v2048, %v2137
  %2170 = vset.pattern.permute.xlu0 17
  %2171 = vperm.xlu0 %2170, %v129
  %v2172 = vpop.permute.xlu0 %2171
  %v2174 = vmul.f32 %v2172, %v138
  %v2175 = vmul.f32 %v2172, %v142
  %v2176 = vmul.f32 %v2172, %v146
  %v2177 = vmul.f32 %v2172, %v150
  %v2178 = vmul.f32 %v2172, %v154
  %v2179 = vmul.f32 %v2172, %v158
  %v2180 = vmul.f32 %v2172, %v162
  %v2181 = vmul.f32 %v2172, %v166
  %v2182 = vmul.f32 %v2172, %v170
  %v2183 = vmul.f32 %v2172, %v174
  %v2184 = vmul.f32 %v2172, %v178
  %v2185 = vmul.f32 %v2172, %v182
  %v2186 = vmul.f32 %v2172, %v186
  %v2187 = vmul.f32 %v2172, %v190
  %v2188 = vmul.f32 %v2172, %v194
  %v2189 = vmul.f32 %v2172, %v198
  %v2190 = vmul.f32 %v2172, 0.0
  %2208 = vrot.lane.b32.xlu0 %v2174, 30
  %v2209 = vpop.permute.xlu0 %2208
  %2210 = vrot.lane.b32.xlu0 %v2175, 30
  %v2211 = vpop.permute.xlu0 %2210
  %2212 = vrot.lane.b32.xlu0 %v2176, 30
  %v2213 = vpop.permute.xlu0 %2212
  %2214 = vrot.lane.b32.xlu0 %v2177, 30
  %v2215 = vpop.permute.xlu0 %2214
  %2216 = vrot.lane.b32.xlu0 %v2178, 30
  %v2217 = vpop.permute.xlu0 %2216
  %2218 = vrot.lane.b32.xlu0 %v2179, 30
  %v2219 = vpop.permute.xlu0 %2218
  %2220 = vrot.lane.b32.xlu0 %v2180, 30
  %v2221 = vpop.permute.xlu0 %2220
  %2222 = vrot.lane.b32.xlu0 %v2181, 30
  %v2223 = vpop.permute.xlu0 %2222
  %2224 = vrot.lane.b32.xlu0 %v2182, 30
  %v2225 = vpop.permute.xlu0 %2224
  %2226 = vrot.lane.b32.xlu0 %v2183, 30
  %v2227 = vpop.permute.xlu0 %2226
  %2228 = vrot.lane.b32.xlu0 %v2184, 30
  %v2229 = vpop.permute.xlu0 %2228
  %2230 = vrot.lane.b32.xlu0 %v2185, 30
  %v2231 = vpop.permute.xlu0 %2230
  %2232 = vrot.lane.b32.xlu0 %v2186, 30
  %v2233 = vpop.permute.xlu0 %2232
  %2234 = vrot.lane.b32.xlu0 %v2187, 30
  %v2235 = vpop.permute.xlu0 %2234
  %2236 = vrot.lane.b32.xlu0 %v2188, 30
  %v2237 = vpop.permute.xlu0 %2236
  %2238 = vrot.lane.b32.xlu0 %v2189, 30
  %v2239 = vpop.permute.xlu0 %2238
  %2240 = vrot.lane.b32.xlu0 %v2190, 30
  %v2241 = vpop.permute.xlu0 %2240
  %vm2242 = vcmask 244736
  %v2243 = vsel %vm2242, %v2209, %v2211
  %v2244 = vsel %vm2242, %v2211, %v2213
  %v2245 = vsel %vm2242, %v2213, %v2215
  %v2246 = vsel %vm2242, %v2215, %v2217
  %v2247 = vsel %vm2242, %v2217, %v2219
  %v2248 = vsel %vm2242, %v2219, %v2221
  %v2249 = vsel %vm2242, %v2221, %v2223
  %v2250 = vsel %vm2242, %v2223, %v2225
  %v2251 = vsel %vm2242, %v2225, %v2227
  %v2252 = vsel %vm2242, %v2227, %v2229
  %v2253 = vsel %vm2242, %v2229, %v2231
  %v2254 = vsel %vm2242, %v2231, %v2233
  %v2255 = vsel %vm2242, %v2233, %v2235
  %v2256 = vsel %vm2242, %v2235, %v2237
  %v2257 = vsel %vm2242, %v2237, %v2239
  %v2258 = vsel %vm2242, %v2239, %v2241
  %v2275 = vadd.f32 %v2154, %v2243
  %v2276 = vadd.f32 %v2155, %v2244
  %v2277 = vadd.f32 %v2156, %v2245
  %v2278 = vadd.f32 %v2157, %v2246
  %v2279 = vadd.f32 %v2158, %v2247
  %v2280 = vadd.f32 %v2159, %v2248
  %v2281 = vadd.f32 %v2160, %v2249
  %v2282 = vadd.f32 %v2161, %v2250
  %v2283 = vadd.f32 %v2162, %v2251
  %v2284 = vadd.f32 %v2163, %v2252
  %v2285 = vadd.f32 %v2164, %v2253
  %v2286 = vadd.f32 %v2165, %v2254
  %v2287 = vadd.f32 %v2166, %v2255
  %v2288 = vadd.f32 %v2167, %v2256
  %v2289 = vadd.f32 %v2168, %v2257
  %v2290 = vadd.f32 %v2169, %v2258
  %2291 = vset.pattern.permute.xlu0 18
  %2292 = vperm.xlu0 %2291, %v129
  %v2293 = vpop.permute.xlu0 %2292
  %v2295 = vmul.f32 %v2293, %v138
  %v2296 = vmul.f32 %v2293, %v142
  %v2297 = vmul.f32 %v2293, %v146
  %v2298 = vmul.f32 %v2293, %v150
  %v2299 = vmul.f32 %v2293, %v154
  %v2300 = vmul.f32 %v2293, %v158
  %v2301 = vmul.f32 %v2293, %v162
  %v2302 = vmul.f32 %v2293, %v166
  %v2303 = vmul.f32 %v2293, %v170
  %v2304 = vmul.f32 %v2293, %v174
  %v2305 = vmul.f32 %v2293, %v178
  %v2306 = vmul.f32 %v2293, %v182
  %v2307 = vmul.f32 %v2293, %v186
  %v2308 = vmul.f32 %v2293, %v190
  %v2309 = vmul.f32 %v2293, %v194
  %v2310 = vmul.f32 %v2293, %v198
  %v2311 = vmul.f32 %v2293, 0.0
  %2329 = vrot.lane.b32.xlu0 %v2295, 29
  %v2330 = vpop.permute.xlu0 %2329
  %2331 = vrot.lane.b32.xlu0 %v2296, 29
  %v2332 = vpop.permute.xlu0 %2331
  %2333 = vrot.lane.b32.xlu0 %v2297, 29
  %v2334 = vpop.permute.xlu0 %2333
  %2335 = vrot.lane.b32.xlu0 %v2298, 29
  %v2336 = vpop.permute.xlu0 %2335
  %2337 = vrot.lane.b32.xlu0 %v2299, 29
  %v2338 = vpop.permute.xlu0 %2337
  %2339 = vrot.lane.b32.xlu0 %v2300, 29
  %v2340 = vpop.permute.xlu0 %2339
  %2341 = vrot.lane.b32.xlu0 %v2301, 29
  %v2342 = vpop.permute.xlu0 %2341
  %2343 = vrot.lane.b32.xlu0 %v2302, 29
  %v2344 = vpop.permute.xlu0 %2343
  %2345 = vrot.lane.b32.xlu0 %v2303, 29
  %v2346 = vpop.permute.xlu0 %2345
  %2347 = vrot.lane.b32.xlu0 %v2304, 29
  %v2348 = vpop.permute.xlu0 %2347
  %2349 = vrot.lane.b32.xlu0 %v2305, 29
  %v2350 = vpop.permute.xlu0 %2349
  %2351 = vrot.lane.b32.xlu0 %v2306, 29
  %v2352 = vpop.permute.xlu0 %2351
  %2353 = vrot.lane.b32.xlu0 %v2307, 29
  %v2354 = vpop.permute.xlu0 %2353
  %2355 = vrot.lane.b32.xlu0 %v2308, 29
  %v2356 = vpop.permute.xlu0 %2355
  %2357 = vrot.lane.b32.xlu0 %v2309, 29
  %v2358 = vpop.permute.xlu0 %2357
  %2359 = vrot.lane.b32.xlu0 %v2310, 29
  %v2360 = vpop.permute.xlu0 %2359
  %2361 = vrot.lane.b32.xlu0 %v2311, 29
  %v2362 = vpop.permute.xlu0 %2361
  %vm2363 = vcmask 236544
  %v2364 = vsel %vm2363, %v2330, %v2332
  %v2365 = vsel %vm2363, %v2332, %v2334
  %v2366 = vsel %vm2363, %v2334, %v2336
  %v2367 = vsel %vm2363, %v2336, %v2338
  %v2368 = vsel %vm2363, %v2338, %v2340
  %v2369 = vsel %vm2363, %v2340, %v2342
  %v2370 = vsel %vm2363, %v2342, %v2344
  %v2371 = vsel %vm2363, %v2344, %v2346
  %v2372 = vsel %vm2363, %v2346, %v2348
  %v2373 = vsel %vm2363, %v2348, %v2350
  %v2374 = vsel %vm2363, %v2350, %v2352
  %v2375 = vsel %vm2363, %v2352, %v2354
  %v2376 = vsel %vm2363, %v2354, %v2356
  %v2377 = vsel %vm2363, %v2356, %v2358
  %v2378 = vsel %vm2363, %v2358, %v2360
  %v2379 = vsel %vm2363, %v2360, %v2362
  %v2396 = vadd.f32 %v2275, %v2364
  %v2397 = vadd.f32 %v2276, %v2365
  %v2398 = vadd.f32 %v2277, %v2366
  %v2399 = vadd.f32 %v2278, %v2367
  %v2400 = vadd.f32 %v2279, %v2368
  %v2401 = vadd.f32 %v2280, %v2369
  %v2402 = vadd.f32 %v2281, %v2370
  %v2403 = vadd.f32 %v2282, %v2371
  %v2404 = vadd.f32 %v2283, %v2372
  %v2405 = vadd.f32 %v2284, %v2373
  %v2406 = vadd.f32 %v2285, %v2374
  %v2407 = vadd.f32 %v2286, %v2375
  %v2408 = vadd.f32 %v2287, %v2376
  %v2409 = vadd.f32 %v2288, %v2377
  %v2410 = vadd.f32 %v2289, %v2378
  %v2411 = vadd.f32 %v2290, %v2379
  %2412 = vset.pattern.permute.xlu0 19
  %2413 = vperm.xlu0 %2412, %v129
  %v2414 = vpop.permute.xlu0 %2413
  %v2416 = vmul.f32 %v2414, %v138
  %v2417 = vmul.f32 %v2414, %v142
  %v2418 = vmul.f32 %v2414, %v146
  %v2419 = vmul.f32 %v2414, %v150
  %v2420 = vmul.f32 %v2414, %v154
  %v2421 = vmul.f32 %v2414, %v158
  %v2422 = vmul.f32 %v2414, %v162
  %v2423 = vmul.f32 %v2414, %v166
  %v2424 = vmul.f32 %v2414, %v170
  %v2425 = vmul.f32 %v2414, %v174
  %v2426 = vmul.f32 %v2414, %v178
  %v2427 = vmul.f32 %v2414, %v182
  %v2428 = vmul.f32 %v2414, %v186
  %v2429 = vmul.f32 %v2414, %v190
  %v2430 = vmul.f32 %v2414, %v194
  %v2431 = vmul.f32 %v2414, %v198
  %v2432 = vmul.f32 %v2414, 0.0
  %2450 = vrot.lane.b32.xlu0 %v2416, 28
  %v2451 = vpop.permute.xlu0 %2450
  %2452 = vrot.lane.b32.xlu0 %v2417, 28
  %v2453 = vpop.permute.xlu0 %2452
  %2454 = vrot.lane.b32.xlu0 %v2418, 28
  %v2455 = vpop.permute.xlu0 %2454
  %2456 = vrot.lane.b32.xlu0 %v2419, 28
  %v2457 = vpop.permute.xlu0 %2456
  %2458 = vrot.lane.b32.xlu0 %v2420, 28
  %v2459 = vpop.permute.xlu0 %2458
  %2460 = vrot.lane.b32.xlu0 %v2421, 28
  %v2461 = vpop.permute.xlu0 %2460
  %2462 = vrot.lane.b32.xlu0 %v2422, 28
  %v2463 = vpop.permute.xlu0 %2462
  %2464 = vrot.lane.b32.xlu0 %v2423, 28
  %v2465 = vpop.permute.xlu0 %2464
  %2466 = vrot.lane.b32.xlu0 %v2424, 28
  %v2467 = vpop.permute.xlu0 %2466
  %2468 = vrot.lane.b32.xlu0 %v2425, 28
  %v2469 = vpop.permute.xlu0 %2468
  %2470 = vrot.lane.b32.xlu0 %v2426, 28
  %v2471 = vpop.permute.xlu0 %2470
  %2472 = vrot.lane.b32.xlu0 %v2427, 28
  %v2473 = vpop.permute.xlu0 %2472
  %2474 = vrot.lane.b32.xlu0 %v2428, 28
  %v2475 = vpop.permute.xlu0 %2474
  %2476 = vrot.lane.b32.xlu0 %v2429, 28
  %v2477 = vpop.permute.xlu0 %2476
  %2478 = vrot.lane.b32.xlu0 %v2430, 28
  %v2479 = vpop.permute.xlu0 %2478
  %2480 = vrot.lane.b32.xlu0 %v2431, 28
  %v2481 = vpop.permute.xlu0 %2480
  %2482 = vrot.lane.b32.xlu0 %v2432, 28
  %v2483 = vpop.permute.xlu0 %2482
  %vm2484 = vcmask 228352
  %v2485 = vsel %vm2484, %v2451, %v2453
  %v2486 = vsel %vm2484, %v2453, %v2455
  %v2487 = vsel %vm2484, %v2455, %v2457
  %v2488 = vsel %vm2484, %v2457, %v2459
  %v2489 = vsel %vm2484, %v2459, %v2461
  %v2490 = vsel %vm2484, %v2461, %v2463
  %v2491 = vsel %vm2484, %v2463, %v2465
  %v2492 = vsel %vm2484, %v2465, %v2467
  %v2493 = vsel %vm2484, %v2467, %v2469
  %v2494 = vsel %vm2484, %v2469, %v2471
  %v2495 = vsel %vm2484, %v2471, %v2473
  %v2496 = vsel %vm2484, %v2473, %v2475
  %v2497 = vsel %vm2484, %v2475, %v2477
  %v2498 = vsel %vm2484, %v2477, %v2479
  %v2499 = vsel %vm2484, %v2479, %v2481
  %v2500 = vsel %vm2484, %v2481, %v2483
  %v2517 = vadd.f32 %v2396, %v2485
  %v2518 = vadd.f32 %v2397, %v2486
  %v2519 = vadd.f32 %v2398, %v2487
  %v2520 = vadd.f32 %v2399, %v2488
  %v2521 = vadd.f32 %v2400, %v2489
  %v2522 = vadd.f32 %v2401, %v2490
  %v2523 = vadd.f32 %v2402, %v2491
  %v2524 = vadd.f32 %v2403, %v2492
  %v2525 = vadd.f32 %v2404, %v2493
  %v2526 = vadd.f32 %v2405, %v2494
  %v2527 = vadd.f32 %v2406, %v2495
  %v2528 = vadd.f32 %v2407, %v2496
  %v2529 = vadd.f32 %v2408, %v2497
  %v2530 = vadd.f32 %v2409, %v2498
  %v2531 = vadd.f32 %v2410, %v2499
  %v2532 = vadd.f32 %v2411, %v2500
  %2533 = vset.pattern.permute.xlu0 20
  %2534 = vperm.xlu0 %2533, %v129
  %v2535 = vpop.permute.xlu0 %2534
  %v2537 = vmul.f32 %v2535, %v142
  %v2538 = vmul.f32 %v2535, %v146
  %v2539 = vmul.f32 %v2535, %v150
  %v2540 = vmul.f32 %v2535, %v154
  %v2541 = vmul.f32 %v2535, %v158
  %v2542 = vmul.f32 %v2535, %v162
  %v2543 = vmul.f32 %v2535, %v166
  %v2544 = vmul.f32 %v2535, %v170
  %v2545 = vmul.f32 %v2535, %v174
  %v2546 = vmul.f32 %v2535, %v178
  %v2547 = vmul.f32 %v2535, %v182
  %v2548 = vmul.f32 %v2535, %v186
  %v2549 = vmul.f32 %v2535, %v190
  %v2550 = vmul.f32 %v2535, %v194
  %v2551 = vmul.f32 %v2535, %v198
  %v2552 = vmul.f32 %v2535, 0.0
  %v2553 = vadd.f32 %v2517, %v2537
  %v2554 = vadd.f32 %v2518, %v2538
  %v2555 = vadd.f32 %v2519, %v2539
  %v2556 = vadd.f32 %v2520, %v2540
  %v2557 = vadd.f32 %v2521, %v2541
  %v2558 = vadd.f32 %v2522, %v2542
  %v2559 = vadd.f32 %v2523, %v2543
  %v2560 = vadd.f32 %v2524, %v2544
  %v2561 = vadd.f32 %v2525, %v2545
  %v2562 = vadd.f32 %v2526, %v2546
  %v2563 = vadd.f32 %v2527, %v2547
  %v2564 = vadd.f32 %v2528, %v2548
  %v2565 = vadd.f32 %v2529, %v2549
  %v2566 = vadd.f32 %v2530, %v2550
  %v2567 = vadd.f32 %v2531, %v2551
  %v2568 = vadd.f32 %v2532, %v2552
  %2569 = vset.pattern.permute.xlu0 21
  %2570 = vperm.xlu0 %2569, %v129
  %v2571 = vpop.permute.xlu0 %2570
  %v2573 = vmul.f32 %v2571, %v142
  %v2574 = vmul.f32 %v2571, %v146
  %v2575 = vmul.f32 %v2571, %v150
  %v2576 = vmul.f32 %v2571, %v154
  %v2577 = vmul.f32 %v2571, %v158
  %v2578 = vmul.f32 %v2571, %v162
  %v2579 = vmul.f32 %v2571, %v166
  %v2580 = vmul.f32 %v2571, %v170
  %v2581 = vmul.f32 %v2571, %v174
  %v2582 = vmul.f32 %v2571, %v178
  %v2583 = vmul.f32 %v2571, %v182
  %v2584 = vmul.f32 %v2571, %v186
  %v2585 = vmul.f32 %v2571, %v190
  %v2586 = vmul.f32 %v2571, %v194
  %v2587 = vmul.f32 %v2571, %v198
  %v2588 = vmul.f32 %v2571, 0.0
  %2605 = vrot.lane.b32.xlu0 %v2573, 127
  %v2606 = vpop.permute.xlu0 %2605
  %2607 = vrot.lane.b32.xlu0 %v2574, 127
  %v2608 = vpop.permute.xlu0 %2607
  %2609 = vrot.lane.b32.xlu0 %v2575, 127
  %v2610 = vpop.permute.xlu0 %2609
  %2611 = vrot.lane.b32.xlu0 %v2576, 127
  %v2612 = vpop.permute.xlu0 %2611
  %2613 = vrot.lane.b32.xlu0 %v2577, 127
  %v2614 = vpop.permute.xlu0 %2613
  %2615 = vrot.lane.b32.xlu0 %v2578, 127
  %v2616 = vpop.permute.xlu0 %2615
  %2617 = vrot.lane.b32.xlu0 %v2579, 127
  %v2618 = vpop.permute.xlu0 %2617
  %2619 = vrot.lane.b32.xlu0 %v2580, 127
  %v2620 = vpop.permute.xlu0 %2619
  %2621 = vrot.lane.b32.xlu0 %v2581, 127
  %v2622 = vpop.permute.xlu0 %2621
  %2623 = vrot.lane.b32.xlu0 %v2582, 127
  %v2624 = vpop.permute.xlu0 %2623
  %2625 = vrot.lane.b32.xlu0 %v2583, 127
  %v2626 = vpop.permute.xlu0 %2625
  %2627 = vrot.lane.b32.xlu0 %v2584, 127
  %v2628 = vpop.permute.xlu0 %2627
  %2629 = vrot.lane.b32.xlu0 %v2585, 127
  %v2630 = vpop.permute.xlu0 %2629
  %2631 = vrot.lane.b32.xlu0 %v2586, 127
  %v2632 = vpop.permute.xlu0 %2631
  %2633 = vrot.lane.b32.xlu0 %v2587, 127
  %v2634 = vpop.permute.xlu0 %2633
  %2635 = vrot.lane.b32.xlu0 %v2588, 127
  %v2636 = vpop.permute.xlu0 %2635
  %v2637 = vsel %vm306, %v2606, %v2608
  %v2638 = vsel %vm306, %v2608, %v2610
  %v2639 = vsel %vm306, %v2610, %v2612
  %v2640 = vsel %vm306, %v2612, %v2614
  %v2641 = vsel %vm306, %v2614, %v2616
  %v2642 = vsel %vm306, %v2616, %v2618
  %v2643 = vsel %vm306, %v2618, %v2620
  %v2644 = vsel %vm306, %v2620, %v2622
  %v2645 = vsel %vm306, %v2622, %v2624
  %v2646 = vsel %vm306, %v2624, %v2626
  %v2647 = vsel %vm306, %v2626, %v2628
  %v2648 = vsel %vm306, %v2628, %v2630
  %v2649 = vsel %vm306, %v2630, %v2632
  %v2650 = vsel %vm306, %v2632, %v2634
  %v2651 = vsel %vm306, %v2634, %v2636
  %v2668 = vadd.f32 %v2553, %v2637
  %v2669 = vadd.f32 %v2554, %v2638
  %v2670 = vadd.f32 %v2555, %v2639
  %v2671 = vadd.f32 %v2556, %v2640
  %v2672 = vadd.f32 %v2557, %v2641
  %v2673 = vadd.f32 %v2558, %v2642
  %v2674 = vadd.f32 %v2559, %v2643
  %v2675 = vadd.f32 %v2560, %v2644
  %v2676 = vadd.f32 %v2561, %v2645
  %v2677 = vadd.f32 %v2562, %v2646
  %v2678 = vadd.f32 %v2563, %v2647
  %v2679 = vadd.f32 %v2564, %v2648
  %v2680 = vadd.f32 %v2565, %v2649
  %v2681 = vadd.f32 %v2566, %v2650
  %v2682 = vadd.f32 %v2567, %v2651
  %v2683 = vadd.f32 %v2568, %v2636
  %2684 = vset.pattern.permute.xlu0 22
  %2685 = vperm.xlu0 %2684, %v129
  %v2686 = vpop.permute.xlu0 %2685
  %v2688 = vmul.f32 %v2686, %v142
  %v2689 = vmul.f32 %v2686, %v146
  %v2690 = vmul.f32 %v2686, %v150
  %v2691 = vmul.f32 %v2686, %v154
  %v2692 = vmul.f32 %v2686, %v158
  %v2693 = vmul.f32 %v2686, %v162
  %v2694 = vmul.f32 %v2686, %v166
  %v2695 = vmul.f32 %v2686, %v170
  %v2696 = vmul.f32 %v2686, %v174
  %v2697 = vmul.f32 %v2686, %v178
  %v2698 = vmul.f32 %v2686, %v182
  %v2699 = vmul.f32 %v2686, %v186
  %v2700 = vmul.f32 %v2686, %v190
  %v2701 = vmul.f32 %v2686, %v194
  %v2702 = vmul.f32 %v2686, %v198
  %v2703 = vmul.f32 %v2686, 0.0
  %2720 = vrot.lane.b32.xlu0 %v2688, 126
  %v2721 = vpop.permute.xlu0 %2720
  %2722 = vrot.lane.b32.xlu0 %v2689, 126
  %v2723 = vpop.permute.xlu0 %2722
  %2724 = vrot.lane.b32.xlu0 %v2690, 126
  %v2725 = vpop.permute.xlu0 %2724
  %2726 = vrot.lane.b32.xlu0 %v2691, 126
  %v2727 = vpop.permute.xlu0 %2726
  %2728 = vrot.lane.b32.xlu0 %v2692, 126
  %v2729 = vpop.permute.xlu0 %2728
  %2730 = vrot.lane.b32.xlu0 %v2693, 126
  %v2731 = vpop.permute.xlu0 %2730
  %2732 = vrot.lane.b32.xlu0 %v2694, 126
  %v2733 = vpop.permute.xlu0 %2732
  %2734 = vrot.lane.b32.xlu0 %v2695, 126
  %v2735 = vpop.permute.xlu0 %2734
  %2736 = vrot.lane.b32.xlu0 %v2696, 126
  %v2737 = vpop.permute.xlu0 %2736
  %2738 = vrot.lane.b32.xlu0 %v2697, 126
  %v2739 = vpop.permute.xlu0 %2738
  %2740 = vrot.lane.b32.xlu0 %v2698, 126
  %v2741 = vpop.permute.xlu0 %2740
  %2742 = vrot.lane.b32.xlu0 %v2699, 126
  %v2743 = vpop.permute.xlu0 %2742
  %2744 = vrot.lane.b32.xlu0 %v2700, 126
  %v2745 = vpop.permute.xlu0 %2744
  %2746 = vrot.lane.b32.xlu0 %v2701, 126
  %v2747 = vpop.permute.xlu0 %2746
  %2748 = vrot.lane.b32.xlu0 %v2702, 126
  %v2749 = vpop.permute.xlu0 %2748
  %2750 = vrot.lane.b32.xlu0 %v2703, 126
  %v2751 = vpop.permute.xlu0 %2750
  %v2752 = vsel %vm427, %v2721, %v2723
  %v2753 = vsel %vm427, %v2723, %v2725
  %v2754 = vsel %vm427, %v2725, %v2727
  %v2755 = vsel %vm427, %v2727, %v2729
  %v2756 = vsel %vm427, %v2729, %v2731
  %v2757 = vsel %vm427, %v2731, %v2733
  %v2758 = vsel %vm427, %v2733, %v2735
  %v2759 = vsel %vm427, %v2735, %v2737
  %v2760 = vsel %vm427, %v2737, %v2739
  %v2761 = vsel %vm427, %v2739, %v2741
  %v2762 = vsel %vm427, %v2741, %v2743
  %v2763 = vsel %vm427, %v2743, %v2745
  %v2764 = vsel %vm427, %v2745, %v2747
  %v2765 = vsel %vm427, %v2747, %v2749
  %v2766 = vsel %vm427, %v2749, %v2751
  %v2783 = vadd.f32 %v2668, %v2752
  %v2784 = vadd.f32 %v2669, %v2753
  %v2785 = vadd.f32 %v2670, %v2754
  %v2786 = vadd.f32 %v2671, %v2755
  %v2787 = vadd.f32 %v2672, %v2756
  %v2788 = vadd.f32 %v2673, %v2757
  %v2789 = vadd.f32 %v2674, %v2758
  %v2790 = vadd.f32 %v2675, %v2759
  %v2791 = vadd.f32 %v2676, %v2760
  %v2792 = vadd.f32 %v2677, %v2761
  %v2793 = vadd.f32 %v2678, %v2762
  %v2794 = vadd.f32 %v2679, %v2763
  %v2795 = vadd.f32 %v2680, %v2764
  %v2796 = vadd.f32 %v2681, %v2765
  %v2797 = vadd.f32 %v2682, %v2766
  %v2798 = vadd.f32 %v2683, %v2751
  %2799 = vset.pattern.permute.xlu0 23
  %2800 = vperm.xlu0 %2799, %v129
  %v2801 = vpop.permute.xlu0 %2800
  %v2803 = vmul.f32 %v2801, %v142
  %v2804 = vmul.f32 %v2801, %v146
  %v2805 = vmul.f32 %v2801, %v150
  %v2806 = vmul.f32 %v2801, %v154
  %v2807 = vmul.f32 %v2801, %v158
  %v2808 = vmul.f32 %v2801, %v162
  %v2809 = vmul.f32 %v2801, %v166
  %v2810 = vmul.f32 %v2801, %v170
  %v2811 = vmul.f32 %v2801, %v174
  %v2812 = vmul.f32 %v2801, %v178
  %v2813 = vmul.f32 %v2801, %v182
  %v2814 = vmul.f32 %v2801, %v186
  %v2815 = vmul.f32 %v2801, %v190
  %v2816 = vmul.f32 %v2801, %v194
  %v2817 = vmul.f32 %v2801, %v198
  %v2818 = vmul.f32 %v2801, 0.0
  %2835 = vrot.lane.b32.xlu0 %v2803, 125
  %v2836 = vpop.permute.xlu0 %2835
  %2837 = vrot.lane.b32.xlu0 %v2804, 125
  %v2838 = vpop.permute.xlu0 %2837
  %2839 = vrot.lane.b32.xlu0 %v2805, 125
  %v2840 = vpop.permute.xlu0 %2839
  %2841 = vrot.lane.b32.xlu0 %v2806, 125
  %v2842 = vpop.permute.xlu0 %2841
  %2843 = vrot.lane.b32.xlu0 %v2807, 125
  %v2844 = vpop.permute.xlu0 %2843
  %2845 = vrot.lane.b32.xlu0 %v2808, 125
  %v2846 = vpop.permute.xlu0 %2845
  %2847 = vrot.lane.b32.xlu0 %v2809, 125
  %v2848 = vpop.permute.xlu0 %2847
  %2849 = vrot.lane.b32.xlu0 %v2810, 125
  %v2850 = vpop.permute.xlu0 %2849
  %2851 = vrot.lane.b32.xlu0 %v2811, 125
  %v2852 = vpop.permute.xlu0 %2851
  %2853 = vrot.lane.b32.xlu0 %v2812, 125
  %v2854 = vpop.permute.xlu0 %2853
  %2855 = vrot.lane.b32.xlu0 %v2813, 125
  %v2856 = vpop.permute.xlu0 %2855
  %2857 = vrot.lane.b32.xlu0 %v2814, 125
  %v2858 = vpop.permute.xlu0 %2857
  %2859 = vrot.lane.b32.xlu0 %v2815, 125
  %v2860 = vpop.permute.xlu0 %2859
  %2861 = vrot.lane.b32.xlu0 %v2816, 125
  %v2862 = vpop.permute.xlu0 %2861
  %2863 = vrot.lane.b32.xlu0 %v2817, 125
  %v2864 = vpop.permute.xlu0 %2863
  %2865 = vrot.lane.b32.xlu0 %v2818, 125
  %v2866 = vpop.permute.xlu0 %2865
  %v2867 = vsel %vm548, %v2836, %v2838
  %v2868 = vsel %vm548, %v2838, %v2840
  %v2869 = vsel %vm548, %v2840, %v2842
  %v2870 = vsel %vm548, %v2842, %v2844
  %v2871 = vsel %vm548, %v2844, %v2846
  %v2872 = vsel %vm548, %v2846, %v2848
  %v2873 = vsel %vm548, %v2848, %v2850
  %v2874 = vsel %vm548, %v2850, %v2852
  %v2875 = vsel %vm548, %v2852, %v2854
  %v2876 = vsel %vm548, %v2854, %v2856
  %v2877 = vsel %vm548, %v2856, %v2858
  %v2878 = vsel %vm548, %v2858, %v2860
  %v2879 = vsel %vm548, %v2860, %v2862
  %v2880 = vsel %vm548, %v2862, %v2864
  %v2881 = vsel %vm548, %v2864, %v2866
  %v2898 = vadd.f32 %v2783, %v2867
  %v2899 = vadd.f32 %v2784, %v2868
  %v2900 = vadd.f32 %v2785, %v2869
  %v2901 = vadd.f32 %v2786, %v2870
  %v2902 = vadd.f32 %v2787, %v2871
  %v2903 = vadd.f32 %v2788, %v2872
  %v2904 = vadd.f32 %v2789, %v2873
  %v2905 = vadd.f32 %v2790, %v2874
  %v2906 = vadd.f32 %v2791, %v2875
  %v2907 = vadd.f32 %v2792, %v2876
  %v2908 = vadd.f32 %v2793, %v2877
  %v2909 = vadd.f32 %v2794, %v2878
  %v2910 = vadd.f32 %v2795, %v2879
  %v2911 = vadd.f32 %v2796, %v2880
  %v2912 = vadd.f32 %v2797, %v2881
  %v2913 = vadd.f32 %v2798, %v2866
  %2914 = vset.pattern.permute.xlu0 24
  %2915 = vperm.xlu0 %2914, %v129
  %v2916 = vpop.permute.xlu0 %2915
  %v2918 = vmul.f32 %v2916, %v142
  %v2919 = vmul.f32 %v2916, %v146
  %v2920 = vmul.f32 %v2916, %v150
  %v2921 = vmul.f32 %v2916, %v154
  %v2922 = vmul.f32 %v2916, %v158
  %v2923 = vmul.f32 %v2916, %v162
  %v2924 = vmul.f32 %v2916, %v166
  %v2925 = vmul.f32 %v2916, %v170
  %v2926 = vmul.f32 %v2916, %v174
  %v2927 = vmul.f32 %v2916, %v178
  %v2928 = vmul.f32 %v2916, %v182
  %v2929 = vmul.f32 %v2916, %v186
  %v2930 = vmul.f32 %v2916, %v190
  %v2931 = vmul.f32 %v2916, %v194
  %v2932 = vmul.f32 %v2916, %v198
  %v2933 = vmul.f32 %v2916, 0.0
  %2950 = vrot.lane.b32.xlu0 %v2918, 124
  %v2951 = vpop.permute.xlu0 %2950
  %2952 = vrot.lane.b32.xlu0 %v2919, 124
  %v2953 = vpop.permute.xlu0 %2952
  %2954 = vrot.lane.b32.xlu0 %v2920, 124
  %v2955 = vpop.permute.xlu0 %2954
  %2956 = vrot.lane.b32.xlu0 %v2921, 124
  %v2957 = vpop.permute.xlu0 %2956
  %2958 = vrot.lane.b32.xlu0 %v2922, 124
  %v2959 = vpop.permute.xlu0 %2958
  %2960 = vrot.lane.b32.xlu0 %v2923, 124
  %v2961 = vpop.permute.xlu0 %2960
  %2962 = vrot.lane.b32.xlu0 %v2924, 124
  %v2963 = vpop.permute.xlu0 %2962
  %2964 = vrot.lane.b32.xlu0 %v2925, 124
  %v2965 = vpop.permute.xlu0 %2964
  %2966 = vrot.lane.b32.xlu0 %v2926, 124
  %v2967 = vpop.permute.xlu0 %2966
  %2968 = vrot.lane.b32.xlu0 %v2927, 124
  %v2969 = vpop.permute.xlu0 %2968
  %2970 = vrot.lane.b32.xlu0 %v2928, 124
  %v2971 = vpop.permute.xlu0 %2970
  %2972 = vrot.lane.b32.xlu0 %v2929, 124
  %v2973 = vpop.permute.xlu0 %2972
  %2974 = vrot.lane.b32.xlu0 %v2930, 124
  %v2975 = vpop.permute.xlu0 %2974
  %2976 = vrot.lane.b32.xlu0 %v2931, 124
  %v2977 = vpop.permute.xlu0 %2976
  %2978 = vrot.lane.b32.xlu0 %v2932, 124
  %v2979 = vpop.permute.xlu0 %2978
  %2980 = vrot.lane.b32.xlu0 %v2933, 124
  %v2981 = vpop.permute.xlu0 %2980
  %v2982 = vsel %vm669, %v2951, %v2953
  %v2983 = vsel %vm669, %v2953, %v2955
  %v2984 = vsel %vm669, %v2955, %v2957
  %v2985 = vsel %vm669, %v2957, %v2959
  %v2986 = vsel %vm669, %v2959, %v2961
  %v2987 = vsel %vm669, %v2961, %v2963
  %v2988 = vsel %vm669, %v2963, %v2965
  %v2989 = vsel %vm669, %v2965, %v2967
  %v2990 = vsel %vm669, %v2967, %v2969
  %v2991 = vsel %vm669, %v2969, %v2971
  %v2992 = vsel %vm669, %v2971, %v2973
  %v2993 = vsel %vm669, %v2973, %v2975
  %v2994 = vsel %vm669, %v2975, %v2977
  %v2995 = vsel %vm669, %v2977, %v2979
  %v2996 = vsel %vm669, %v2979, %v2981
  %v3013 = vadd.f32 %v2898, %v2982
  %v3014 = vadd.f32 %v2899, %v2983
  %v3015 = vadd.f32 %v2900, %v2984
  %v3016 = vadd.f32 %v2901, %v2985
  %v3017 = vadd.f32 %v2902, %v2986
  %v3018 = vadd.f32 %v2903, %v2987
  %v3019 = vadd.f32 %v2904, %v2988
  %v3020 = vadd.f32 %v2905, %v2989
  %v3021 = vadd.f32 %v2906, %v2990
  %v3022 = vadd.f32 %v2907, %v2991
  %v3023 = vadd.f32 %v2908, %v2992
  %v3024 = vadd.f32 %v2909, %v2993
  %v3025 = vadd.f32 %v2910, %v2994
  %v3026 = vadd.f32 %v2911, %v2995
  %v3027 = vadd.f32 %v2912, %v2996
  %v3028 = vadd.f32 %v2913, %v2981
  %v3029 = vld [vmem:[%s2] sm:$0xff]
  %3031 = vset.pattern.permute.xlu0 0
  %3032 = vperm.xlu0 %3031, %v3029
  %v3033 = vpop.permute.xlu0 %3032
  %v3035 = vadd.f32 %v3013, %v3033
  %v3036 = vadd.f32 %v3014, %v3033
  %v3037 = vadd.f32 %v3015, %v3033
  %v3038 = vadd.f32 %v3016, %v3033
  %v3039 = vadd.f32 %v3017, %v3033
  %v3040 = vadd.f32 %v3018, %v3033
  %v3041 = vadd.f32 %v3019, %v3033
  %v3042 = vadd.f32 %v3020, %v3033
  %v3043 = vadd.f32 %v3021, %v3033
  %v3044 = vadd.f32 %v3022, %v3033
  %v3045 = vadd.f32 %v3023, %v3033
  %v3046 = vadd.f32 %v3024, %v3033
  %v3047 = vadd.f32 %v3025, %v3033
  %v3048 = vadd.f32 %v3026, %v3033
  %v3049 = vadd.f32 %v3027, %v3033
  %v3050 = vadd.f32 %v3028, %v3033
  %v3051 = vtanh.pop %v3035
  %v3052 = vtanh.pop %v3036
  %v3053 = vtanh.pop %v3037
  %v3054 = vtanh.pop %v3038
  %v3055 = vtanh.pop %v3039
  %v3056 = vtanh.pop %v3040
  %v3057 = vtanh.pop %v3041
  %v3058 = vtanh.pop %v3042
  %v3059 = vtanh.pop %v3043
  %v3060 = vtanh.pop %v3044
  %v3061 = vtanh.pop %v3045
  %v3062 = vtanh.pop %v3046
  %v3063 = vtanh.pop %v3047
  %v3064 = vtanh.pop %v3048
  %v3065 = vtanh.pop %v3049
  %v3066 = vtanh.pop %v3050
  %v3067 = vld [vmem:[%s3] sm:$0xff]
  %v3068 = vld [vmem:[%s3 + $0x8] sm:$0xff]
  %v3069 = vld [vmem:[%s3 + $0x10] sm:$0xff]
  %v3070 = vld [vmem:[%s3 + $0x18] sm:$0xff]
  %v3071 = vld [vmem:[%s3 + $0x20] sm:$0xff]
  %v3072 = vld [vmem:[%s3 + $0x28] sm:$0xff]
  %v3073 = vld [vmem:[%s3 + $0x30] sm:$0xff]
  %v3074 = vld [vmem:[%s3 + $0x38] sm:$0xff]
  %v3075 = vld [vmem:[%s3 + $0x40] sm:$0xff]
  %v3076 = vld [vmem:[%s3 + $0x48] sm:$0xff]
  %v3077 = vld [vmem:[%s3 + $0x50] sm:$0xff]
  %v3078 = vld [vmem:[%s3 + $0x58] sm:$0xff]
  %v3079 = vld [vmem:[%s3 + $0x60] sm:$0xff]
  %v3080 = vld [vmem:[%s3 + $0x68] sm:$0xff]
  %v3081 = vld [vmem:[%s3 + $0x70] sm:$0xff]
  %v3082 = vld [vmem:[%s3 + $0x78] sm:$0xff]
  %v3083 = vld [vmem:[%s3 + $0x80] sm:$0xff]
  %v3084 = vld [vmem:[%s3 + $0x88] sm:$0xff]
  %v3085 = vld [vmem:[%s3 + $0x90] sm:$0xff]
  %v3086 = vld [vmem:[%s3 + $0x98] sm:$0xff]
  %v3087 = vld [vmem:[%s3 + $0xa0] sm:$0xff]
  %v3088 = vld [vmem:[%s3 + $0xa8] sm:$0xff]
  %v3089 = vld [vmem:[%s3 + $0xb0] sm:$0xff]
  %v3090 = vld [vmem:[%s3 + $0xb8] sm:$0xff]
  %v3091 = vld [vmem:[%s3 + $0xc0] sm:$0xff]
  %v3092 = vld [vmem:[%s3 + $0xc8] sm:$0xff]
  %v3093 = vld [vmem:[%s3 + $0xd0] sm:$0xff]
  %v3094 = vld [vmem:[%s3 + $0xd8] sm:$0xff]
  %v3095 = vld [vmem:[%s3 + $0xe0] sm:$0xff]
  %v3096 = vld [vmem:[%s3 + $0xe8] sm:$0xff]
  %v3097 = vld [vmem:[%s3 + $0xf0] sm:$0xff]
  %v3098 = vld [vmem:[%s3 + $0xf8] sm:$0xff]
  %v3099 = vld [vmem:[%s3 + $0x100] sm:$0xff]
  %v3100 = vld [vmem:[%s3 + $0x108] sm:$0xff]
  %v3101 = vld [vmem:[%s3 + $0x110] sm:$0xff]
  %v3102 = vld [vmem:[%s3 + $0x118] sm:$0xff]
  %v3103 = vld [vmem:[%s3 + $0x120] sm:$0xff]
  %v3104 = vld [vmem:[%s3 + $0x128] sm:$0xff]
  %v3105 = vld [vmem:[%s3 + $0x130] sm:$0xff]
  %v3106 = vld [vmem:[%s3 + $0x138] sm:$0xff]
  %v3107 = vld [vmem:[%s3 + $0x140] sm:$0xff]
  %v3108 = vld [vmem:[%s3 + $0x148] sm:$0xff]
  %v3109 = vld [vmem:[%s3 + $0x150] sm:$0xff]
  %v3110 = vld [vmem:[%s3 + $0x158] sm:$0xff]
  %v3111 = vld [vmem:[%s3 + $0x160] sm:$0xff]
  %v3112 = vld [vmem:[%s3 + $0x168] sm:$0xff]
  %v3113 = vld [vmem:[%s3 + $0x170] sm:$0xff]
  %v3114 = vld [vmem:[%s3 + $0x178] sm:$0xff]
  %v3115 = vld [vmem:[%s3 + $0x180] sm:$0xff]
  %v3116 = vld [vmem:[%s3 + $0x188] sm:$0xff]
  %v3117 = vld [vmem:[%s3 + $0x190] sm:$0xff]
  %v3118 = vld [vmem:[%s3 + $0x198] sm:$0xff]
  %v3119 = vld [vmem:[%s3 + $0x1a0] sm:$0xff]
  %v3120 = vld [vmem:[%s3 + $0x1a8] sm:$0xff]
  %v3121 = vld [vmem:[%s3 + $0x1b0] sm:$0xff]
  %v3122 = vld [vmem:[%s3 + $0x1b8] sm:$0xff]
  %v3123 = vld [vmem:[%s3 + $0x1c0] sm:$0xff]
  %v3124 = vld [vmem:[%s3 + $0x1c8] sm:$0xff]
  %v3125 = vld [vmem:[%s3 + $0x1d0] sm:$0xff]
  %v3126 = vld [vmem:[%s3 + $0x1d8] sm:$0xff]
  %v3127 = vld [vmem:[%s3 + $0x1e0] sm:$0xff]
  %v3128 = vld [vmem:[%s3 + $0x1e8] sm:$0xff]
  %v3129 = vld [vmem:[%s3 + $0x1f0] sm:$0xff]
  %v3130 = vld [vmem:[%s3 + $0x1f8] sm:$0xff]
  %v3131 = vld [vmem:[%s3 + $0x200] sm:$0xff]
  %v3132 = vld [vmem:[%s3 + $0x208] sm:$0xff]
  %v3133 = vld [vmem:[%s3 + $0x210] sm:$0xff]
  %v3134 = vld [vmem:[%s3 + $0x218] sm:$0xff]
  %v3135 = vld [vmem:[%s3 + $0x220] sm:$0xff]
  %v3136 = vld [vmem:[%s3 + $0x228] sm:$0xff]
  %v3137 = vld [vmem:[%s3 + $0x230] sm:$0xff]
  %v3138 = vld [vmem:[%s3 + $0x238] sm:$0xff]
  %v3139 = vld [vmem:[%s3 + $0x240] sm:$0xff]
  %v3140 = vld [vmem:[%s3 + $0x248] sm:$0xff]
  %v3141 = vld [vmem:[%s3 + $0x250] sm:$0xff]
  %v3142 = vld [vmem:[%s3 + $0x258] sm:$0xff]
  %v3143 = vld [vmem:[%s3 + $0x260] sm:$0xff]
  %v3144 = vld [vmem:[%s3 + $0x268] sm:$0xff]
  %v3145 = vld [vmem:[%s3 + $0x270] sm:$0xff]
  %v3146 = vld [vmem:[%s3 + $0x278] sm:$0xff]
  %v3147 = vld [vmem:[%s3 + $0x280] sm:$0xff]
  %v3148 = vld [vmem:[%s3 + $0x288] sm:$0xff]
  %v3149 = vld [vmem:[%s3 + $0x290] sm:$0xff]
  %v3150 = vld [vmem:[%s3 + $0x298] sm:$0xff]
  %v3151 = vld [vmem:[%s3 + $0x2a0] sm:$0xff]
  %v3152 = vld [vmem:[%s3 + $0x2a8] sm:$0xff]
  %v3153 = vld [vmem:[%s3 + $0x2b0] sm:$0xff]
  %v3154 = vld [vmem:[%s3 + $0x2b8] sm:$0xff]
  %v3155 = vld [vmem:[%s3 + $0x2c0] sm:$0xff]
  %v3156 = vld [vmem:[%s3 + $0x2c8] sm:$0xff]
  %v3157 = vld [vmem:[%s3 + $0x2d0] sm:$0xff]
  %v3158 = vld [vmem:[%s3 + $0x2d8] sm:$0xff]
  %v3159 = vld [vmem:[%s3 + $0x2e0] sm:$0xff]
  %v3160 = vld [vmem:[%s3 + $0x2e8] sm:$0xff]
  %v3161 = vld [vmem:[%s3 + $0x2f0] sm:$0xff]
  %v3162 = vld [vmem:[%s3 + $0x2f8] sm:$0xff]
  %v3163 = vld [vmem:[%s3 + $0x300] sm:$0xff]
  %v3164 = vld [vmem:[%s3 + $0x308] sm:$0xff]
  %v3165 = vld [vmem:[%s3 + $0x310] sm:$0xff]
  %v3166 = vld [vmem:[%s3 + $0x318] sm:$0xff]
  %v3167 = vld [vmem:[%s3 + $0x320] sm:$0xff]
  %v3168 = vld [vmem:[%s3 + $0x328] sm:$0xff]
  %v3169 = vld [vmem:[%s3 + $0x330] sm:$0xff]
  %v3170 = vld [vmem:[%s3 + $0x338] sm:$0xff]
  %v3171 = vld [vmem:[%s3 + $0x340] sm:$0xff]
  %v3172 = vld [vmem:[%s3 + $0x348] sm:$0xff]
  %v3173 = vld [vmem:[%s3 + $0x350] sm:$0xff]
  %v3174 = vld [vmem:[%s3 + $0x358] sm:$0xff]
  %v3175 = vld [vmem:[%s3 + $0x360] sm:$0xff]
  %v3176 = vld [vmem:[%s3 + $0x368] sm:$0xff]
  %v3177 = vld [vmem:[%s3 + $0x370] sm:$0xff]
  %v3178 = vld [vmem:[%s3 + $0x378] sm:$0xff]
  %v3179 = vld [vmem:[%s3 + $0x380] sm:$0xff]
  %v3180 = vld [vmem:[%s3 + $0x388] sm:$0xff]
  %v3181 = vld [vmem:[%s3 + $0x390] sm:$0xff]
  %v3182 = vld [vmem:[%s3 + $0x398] sm:$0xff]
  %v3183 = vld [vmem:[%s3 + $0x3a0] sm:$0xff]
  %v3184 = vld [vmem:[%s3 + $0x3a8] sm:$0xff]
  %v3185 = vld [vmem:[%s3 + $0x3b0] sm:$0xff]
  %v3186 = vld [vmem:[%s3 + $0x3b8] sm:$0xff]
  %v3187 = vld [vmem:[%s3 + $0x3c0] sm:$0xff]
  %v3188 = vld [vmem:[%s3 + $0x3c8] sm:$0xff]
  %v3189 = vld [vmem:[%s3 + $0x3d0] sm:$0xff]
  %v3190 = vld [vmem:[%s3 + $0x3d8] sm:$0xff]
  %v3191 = vld [vmem:[%s3 + $0x3e0] sm:$0xff]
  %v3192 = vld [vmem:[%s3 + $0x3e8] sm:$0xff]
  %v3193 = vld [vmem:[%s3 + $0x3f0] sm:$0xff]
  %v3194 = vld [vmem:[%s3 + $0x3f8] sm:$0xff]
  %v3195 = vld [vmem:[%s3 + $0x400] sm:$0xff]
  %v3196 = vld [vmem:[%s3 + $0x408] sm:$0xff]
  %v3197 = vld [vmem:[%s3 + $0x410] sm:$0xff]
  %v3198 = vld [vmem:[%s3 + $0x418] sm:$0xff]
  %v3199 = vld [vmem:[%s3 + $0x420] sm:$0xff]
  %v3200 = vld [vmem:[%s3 + $0x428] sm:$0xff]
  %v3201 = vld [vmem:[%s3 + $0x430] sm:$0xff]
  %v3202 = vld [vmem:[%s3 + $0x438] sm:$0xff]
  %v3203 = vld [vmem:[%s3 + $0x440] sm:$0xff]
  %v3204 = vld [vmem:[%s3 + $0x448] sm:$0xff]
  %v3205 = vld [vmem:[%s3 + $0x450] sm:$0xff]
  %v3206 = vld [vmem:[%s3 + $0x458] sm:$0xff]
  %v3207 = vld [vmem:[%s3 + $0x460] sm:$0xff]
  %v3208 = vld [vmem:[%s3 + $0x468] sm:$0xff]
  %v3209 = vld [vmem:[%s3 + $0x470] sm:$0xff]
  %v3210 = vld [vmem:[%s3 + $0x478] sm:$0xff]
  %v3211 = vld [vmem:[%s3 + $0x480] sm:$0xff]
  %v3212 = vld [vmem:[%s3 + $0x488] sm:$0xff]
  %v3213 = vld [vmem:[%s3 + $0x490] sm:$0xff]
  %v3214 = vld [vmem:[%s3 + $0x498] sm:$0xff]
  %v3215 = vld [vmem:[%s3 + $0x4a0] sm:$0xff]
  %v3216 = vld [vmem:[%s3 + $0x4a8] sm:$0xff]
  %v3217 = vld [vmem:[%s3 + $0x4b0] sm:$0xff]
  %v3218 = vld [vmem:[%s3 + $0x4b8] sm:$0xff]
  %v3219 = vld [vmem:[%s3 + $0x4c0] sm:$0xff]
  %v3220 = vld [vmem:[%s3 + $0x4c8] sm:$0xff]
  %v3221 = vld [vmem:[%s3 + $0x4d0] sm:$0xff]
  %v3222 = vld [vmem:[%s3 + $0x4d8] sm:$0xff]
  %v3223 = vld [vmem:[%s3 + $0x4e0] sm:$0xff]
  %v3224 = vld [vmem:[%s3 + $0x4e8] sm:$0xff]
  %v3225 = vld [vmem:[%s3 + $0x4f0] sm:$0xff]
  %v3226 = vld [vmem:[%s3 + $0x4f8] sm:$0xff]
  %v3227 = vld [vmem:[%s3 + $0x500] sm:$0xff]
  %v3228 = vld [vmem:[%s3 + $0x508] sm:$0xff]
  %v3229 = vld [vmem:[%s3 + $0x510] sm:$0xff]
  %v3230 = vld [vmem:[%s3 + $0x518] sm:$0xff]
  %v3231 = vld [vmem:[%s3 + $0x520] sm:$0xff]
  %v3232 = vld [vmem:[%s3 + $0x528] sm:$0xff]
  %v3233 = vld [vmem:[%s3 + $0x530] sm:$0xff]
  %v3234 = vld [vmem:[%s3 + $0x538] sm:$0xff]
  %v3235 = vld [vmem:[%s3 + $0x540] sm:$0xff]
  %v3236 = vld [vmem:[%s3 + $0x548] sm:$0xff]
  %v3237 = vld [vmem:[%s3 + $0x550] sm:$0xff]
  %v3238 = vld [vmem:[%s3 + $0x558] sm:$0xff]
  %v3239 = vld [vmem:[%s3 + $0x560] sm:$0xff]
  %v3240 = vld [vmem:[%s3 + $0x568] sm:$0xff]
  %v3241 = vld [vmem:[%s3 + $0x570] sm:$0xff]
  %v3242 = vld [vmem:[%s3 + $0x578] sm:$0xff]
  %v3243 = vld [vmem:[%s3 + $0x580] sm:$0xff]
  %v3244 = vld [vmem:[%s3 + $0x588] sm:$0xff]
  %v3245 = vld [vmem:[%s3 + $0x590] sm:$0xff]
  %v3246 = vld [vmem:[%s3 + $0x598] sm:$0xff]
  %v3247 = vld [vmem:[%s3 + $0x5a0] sm:$0xff]
  %v3248 = vld [vmem:[%s3 + $0x5a8] sm:$0xff]
  %v3249 = vld [vmem:[%s3 + $0x5b0] sm:$0xff]
  %v3250 = vld [vmem:[%s3 + $0x5b8] sm:$0xff]
  %v3251 = vld [vmem:[%s3 + $0x5c0] sm:$0xff]
  %v3252 = vld [vmem:[%s3 + $0x5c8] sm:$0xff]
  %v3253 = vld [vmem:[%s3 + $0x5d0] sm:$0xff]
  %v3254 = vld [vmem:[%s3 + $0x5d8] sm:$0xff]
  %v3255 = vld [vmem:[%s3 + $0x5e0] sm:$0xff]
  %v3256 = vld [vmem:[%s3 + $0x5e8] sm:$0xff]
  %v3257 = vld [vmem:[%s3 + $0x5f0] sm:$0xff]
  %v3258 = vld [vmem:[%s3 + $0x5f8] sm:$0xff]
  %v3259 = vld [vmem:[%s3 + $0x600] sm:$0xff]
  %v3260 = vld [vmem:[%s3 + $0x608] sm:$0xff]
  %v3261 = vld [vmem:[%s3 + $0x610] sm:$0xff]
  %v3262 = vld [vmem:[%s3 + $0x618] sm:$0xff]
  %v3263 = vld [vmem:[%s3 + $0x620] sm:$0xff]
  %v3264 = vld [vmem:[%s3 + $0x628] sm:$0xff]
  %v3265 = vld [vmem:[%s3 + $0x630] sm:$0xff]
  %v3266 = vld [vmem:[%s3 + $0x638] sm:$0xff]
  %v3267 = vld [vmem:[%s3 + $0x640] sm:$0xff]
  %v3268 = vld [vmem:[%s3 + $0x648] sm:$0xff]
  %v3269 = vld [vmem:[%s3 + $0x650] sm:$0xff]
  %v3270 = vld [vmem:[%s3 + $0x658] sm:$0xff]
  %v3271 = vld [vmem:[%s3 + $0x660] sm:$0xff]
  %v3272 = vld [vmem:[%s3 + $0x668] sm:$0xff]
  %v3273 = vld [vmem:[%s3 + $0x670] sm:$0xff]
  %v3274 = vld [vmem:[%s3 + $0x678] sm:$0xff]
  %v3275 = vld [vmem:[%s3 + $0x680] sm:$0xff]
  %v3276 = vld [vmem:[%s3 + $0x688] sm:$0xff]
  %v3277 = vld [vmem:[%s3 + $0x690] sm:$0xff]
  %v3278 = vld [vmem:[%s3 + $0x698] sm:$0xff]
  %v3279 = vld [vmem:[%s3 + $0x6a0] sm:$0xff]
  %v3280 = vld [vmem:[%s3 + $0x6a8] sm:$0xff]
  %v3281 = vld [vmem:[%s3 + $0x6b0] sm:$0xff]
  %v3282 = vld [vmem:[%s3 + $0x6b8] sm:$0xff]
  %v3283 = vld [vmem:[%s3 + $0x6c0] sm:$0xff]
  %v3284 = vld [vmem:[%s3 + $0x6c8] sm:$0xff]
  %v3285 = vld [vmem:[%s3 + $0x6d0] sm:$0xff]
  %v3286 = vld [vmem:[%s3 + $0x6d8] sm:$0xff]
  %v3287 = vld [vmem:[%s3 + $0x6e0] sm:$0xff]
  %v3288 = vld [vmem:[%s3 + $0x6e8] sm:$0xff]
  %v3289 = vld [vmem:[%s3 + $0x6f0] sm:$0xff]
  %v3290 = vld [vmem:[%s3 + $0x6f8] sm:$0xff]
  %v3291 = vld [vmem:[%s3 + $0x700] sm:$0xff]
  %v3292 = vld [vmem:[%s3 + $0x708] sm:$0xff]
  %v3293 = vld [vmem:[%s3 + $0x710] sm:$0xff]
  %v3294 = vld [vmem:[%s3 + $0x718] sm:$0xff]
  %v3295 = vld [vmem:[%s3 + $0x720] sm:$0xff]
  %v3296 = vld [vmem:[%s3 + $0x728] sm:$0xff]
  %v3297 = vld [vmem:[%s3 + $0x730] sm:$0xff]
  %v3298 = vld [vmem:[%s3 + $0x738] sm:$0xff]
  %v3299 = vld [vmem:[%s3 + $0x740] sm:$0xff]
  %v3300 = vld [vmem:[%s3 + $0x748] sm:$0xff]
  %v3301 = vld [vmem:[%s3 + $0x750] sm:$0xff]
  %v3302 = vld [vmem:[%s3 + $0x758] sm:$0xff]
  %v3303 = vld [vmem:[%s3 + $0x760] sm:$0xff]
  %v3304 = vld [vmem:[%s3 + $0x768] sm:$0xff]
  %v3305 = vld [vmem:[%s3 + $0x770] sm:$0xff]
  %v3306 = vld [vmem:[%s3 + $0x778] sm:$0xff]
  %v3307 = vld [vmem:[%s3 + $0x780] sm:$0xff]
  %v3308 = vld [vmem:[%s3 + $0x788] sm:$0xff]
  %v3309 = vld [vmem:[%s3 + $0x790] sm:$0xff]
  %v3310 = vld [vmem:[%s3 + $0x798] sm:$0xff]
  %v3311 = vld [vmem:[%s3 + $0x7a0] sm:$0xff]
  %v3312 = vld [vmem:[%s3 + $0x7a8] sm:$0xff]
  %v3313 = vld [vmem:[%s3 + $0x7b0] sm:$0xff]
  %v3314 = vld [vmem:[%s3 + $0x7b8] sm:$0xff]
  %v3315 = vld [vmem:[%s3 + $0x7c0] sm:$0xff]
  %v3316 = vld [vmem:[%s3 + $0x7c8] sm:$0xff]
  %v3317 = vld [vmem:[%s3 + $0x7d0] sm:$0xff]
  %v3318 = vld [vmem:[%s3 + $0x7d8] sm:$0xff]
  %v3319 = vld [vmem:[%s3 + $0x7e0] sm:$0xff]
  %v3320 = vld [vmem:[%s3 + $0x7e8] sm:$0xff]
  %v3321 = vld [vmem:[%s3 + $0x7f0] sm:$0xff]
  %v3322 = vld [vmem:[%s3 + $0x7f8] sm:$0xff]
  %3323 = vmatprep.subr.mxu0 %v3068
  %3324 = vmatpush1.msra.mxu0 %v3067
  %3325 = vmatprep.subr.mxu0 %v3070
  %3326 = vmatpush1.msra.mxu0 %v3069
  %3327 = vmatprep.subr.mxu0 %v3072
  %3328 = vmatpush1.msra.mxu0 %v3071
  %3329 = vmatprep.subr.mxu0 %v3074
  %3330 = vmatpush1.msra.mxu0 %v3073
  %3331 = vmatprep.subr.mxu0 %v3076
  %3332 = vmatpush1.msra.mxu0 %v3075
  %3333 = vmatprep.subr.mxu0 %v3078
  %3334 = vmatpush1.msra.mxu0 %v3077
  %3335 = vmatprep.subr.mxu0 %v3080
  %3336 = vmatpush1.msra.mxu0 %v3079
  %3337 = vmatprep.subr.mxu0 %v3082
  %3338 = vmatpush1.msra.mxu0 %v3081
  %3339 = vmatprep.subr.mxu0 %v3084
  %3340 = vmatpush1.msra.mxu0 %v3083
  %3341 = vmatprep.subr.mxu0 %v3086
  %3342 = vmatpush1.msra.mxu0 %v3085
  %3343 = vmatprep.subr.mxu0 %v3088
  %3344 = vmatpush1.msra.mxu0 %v3087
  %3345 = vmatprep.subr.mxu0 %v3090
  %3346 = vmatpush1.msra.mxu0 %v3089
  %3347 = vmatprep.subr.mxu0 %v3092
  %3348 = vmatpush1.msra.mxu0 %v3091
  %3349 = vmatprep.subr.mxu0 %v3094
  %3350 = vmatpush1.msra.mxu0 %v3093
  %3351 = vmatprep.subr.mxu0 %v3096
  %3352 = vmatpush1.msra.mxu0 %v3095
  %3353 = vmatprep.subr.mxu0 %v3098
  %3354 = vmatpush1.msra.mxu0 %v3097
  %3355 = vmatprep.subr.mxu0 %v3100
  %3356 = vmatpush1.msra.mxu0 %v3099
  %3357 = vmatprep.subr.mxu0 %v3102
  %3358 = vmatpush1.msra.mxu0 %v3101
  %3359 = vmatprep.subr.mxu0 %v3104
  %3360 = vmatpush1.msra.mxu0 %v3103
  %3361 = vmatprep.subr.mxu0 %v3106
  %3362 = vmatpush1.msra.mxu0 %v3105
  %3363 = vmatprep.subr.mxu0 %v3108
  %3364 = vmatpush1.msra.mxu0 %v3107
  %3365 = vmatprep.subr.mxu0 %v3110
  %3366 = vmatpush1.msra.mxu0 %v3109
  %3367 = vmatprep.subr.mxu0 %v3112
  %3368 = vmatpush1.msra.mxu0 %v3111
  %3369 = vmatprep.subr.mxu0 %v3114
  %3370 = vmatpush1.msra.mxu0 %v3113
  %3371 = vmatprep.subr.mxu0 %v3116
  %3372 = vmatpush1.msra.mxu0 %v3115
  %3373 = vmatprep.subr.mxu0 %v3118
  %3374 = vmatpush1.msra.mxu0 %v3117
  %3375 = vmatprep.subr.mxu0 %v3120
  %3376 = vmatpush1.msra.mxu0 %v3119
  %3377 = vmatprep.subr.mxu0 %v3122
  %3378 = vmatpush1.msra.mxu0 %v3121
  %3379 = vmatprep.subr.mxu0 %v3124
  %3380 = vmatpush1.msra.mxu0 %v3123
  %3381 = vmatprep.subr.mxu0 %v3126
  %3382 = vmatpush1.msra.mxu0 %v3125
  %3383 = vmatprep.subr.mxu0 %v3128
  %3384 = vmatpush1.msra.mxu0 %v3127
  %3385 = vmatprep.subr.mxu0 %v3130
  %3386 = vmatpush1.msra.mxu0 %v3129
  %3387 = vmatprep.mubr.f32.mxu0 %v3052
  %3388 = vmatmul.mubr.f32.gmra.mrb[0].mxu0 %v3051
  %v3389 = vpop.f32.mrb[0].mxu0
  %v3390 = vadd.f32 0.0, %v3389
  %v3391 = vpop.f32.mrb[0].mxu0
  %v3392 = vadd.f32 0.0, %v3391
  %3393 = vdwg.mxu0
  %3394 = vmatprep.subr.mxu0 %v3132
  %3395 = vmatpush1.msra.mxu0 %v3131
  %3396 = vmatprep.subr.mxu0 %v3134
  %3397 = vmatpush1.msra.mxu0 %v3133
  %3398 = vmatprep.subr.mxu0 %v3136
  %3399 = vmatpush1.msra.mxu0 %v3135
  %3400 = vmatprep.subr.mxu0 %v3138
  %3401 = vmatpush1.msra.mxu0 %v3137
  %3402 = vmatprep.subr.mxu0 %v3140
  %3403 = vmatpush1.msra.mxu0 %v3139
  %3404 = vmatprep.subr.mxu0 %v3142
  %3405 = vmatpush1.msra.mxu0 %v3141
  %3406 = vmatprep.subr.mxu0 %v3144
  %3407 = vmatpush1.msra.mxu0 %v3143
  %3408 = vmatprep.subr.mxu0 %v3146
  %3409 = vmatpush1.msra.mxu0 %v3145
  %3410 = vmatprep.subr.mxu0 %v3148
  %3411 = vmatpush1.msra.mxu0 %v3147
  %3412 = vmatprep.subr.mxu0 %v3150
  %3413 = vmatpush1.msra.mxu0 %v3149
  %3414 = vmatprep.subr.mxu0 %v3152
  %3415 = vmatpush1.msra.mxu0 %v3151
  %3416 = vmatprep.subr.mxu0 %v3154
  %3417 = vmatpush1.msra.mxu0 %v3153
  %3418 = vmatprep.subr.mxu0 %v3156
  %3419 = vmatpush1.msra.mxu0 %v3155
  %3420 = vmatprep.subr.mxu0 %v3158
  %3421 = vmatpush1.msra.mxu0 %v3157
  %3422 = vmatprep.subr.mxu0 %v3160
  %3423 = vmatpush1.msra.mxu0 %v3159
  %3424 = vmatprep.subr.mxu0 %v3162
  %3425 = vmatpush1.msra.mxu0 %v3161
  %3426 = vmatprep.subr.mxu0 %v3164
  %3427 = vmatpush1.msra.mxu0 %v3163
  %3428 = vmatprep.subr.mxu0 %v3166
  %3429 = vmatpush1.msra.mxu0 %v3165
  %3430 = vmatprep.subr.mxu0 %v3168
  %3431 = vmatpush1.msra.mxu0 %v3167
  %3432 = vmatprep.subr.mxu0 %v3170
  %3433 = vmatpush1.msra.mxu0 %v3169
  %3434 = vmatprep.subr.mxu0 %v3172
  %3435 = vmatpush1.msra.mxu0 %v3171
  %3436 = vmatprep.subr.mxu0 %v3174
  %3437 = vmatpush1.msra.mxu0 %v3173
  %3438 = vmatprep.subr.mxu0 %v3176
  %3439 = vmatpush1.msra.mxu0 %v3175
  %3440 = vmatprep.subr.mxu0 %v3178
  %3441 = vmatpush1.msra.mxu0 %v3177
  %3442 = vmatprep.subr.mxu0 %v3180
  %3443 = vmatpush1.msra.mxu0 %v3179
  %3444 = vmatprep.subr.mxu0 %v3182
  %3445 = vmatpush1.msra.mxu0 %v3181
  %3446 = vmatprep.subr.mxu0 %v3184
  %3447 = vmatpush1.msra.mxu0 %v3183
  %3448 = vmatprep.subr.mxu0 %v3186
  %3449 = vmatpush1.msra.mxu0 %v3185
  %3450 = vmatprep.subr.mxu0 %v3188
  %3451 = vmatpush1.msra.mxu0 %v3187
  %3452 = vmatprep.subr.mxu0 %v3190
  %3453 = vmatpush1.msra.mxu0 %v3189
  %3454 = vmatprep.subr.mxu0 %v3192
  %3455 = vmatpush1.msra.mxu0 %v3191
  %3456 = vmatprep.subr.mxu0 %v3194
  %3457 = vmatpush1.msra.mxu0 %v3193
  %3458 = vmatprep.mubr.f32.mxu0 %v3054
  %3459 = vmatmul.mubr.f32.gmra.mrb[0].mxu0 %v3053
  %v3460 = vpop.f32.mrb[0].mxu0
  %v3461 = vadd.f32 %v3390, %v3460
  %v3462 = vpop.f32.mrb[0].mxu0
  %v3463 = vadd.f32 %v3392, %v3462
  %3464 = vdwg.mxu0
  %3465 = vmatprep.subr.mxu0 %v3196
  %3466 = vmatpush1.msra.mxu0 %v3195
  %3467 = vmatprep.subr.mxu0 %v3198
  %3468 = vmatpush1.msra.mxu0 %v3197
  %3469 = vmatprep.subr.mxu0 %v3200
  %3470 = vmatpush1.msra.mxu0 %v3199
  %3471 = vmatprep.subr.mxu0 %v3202
  %3472 = vmatpush1.msra.mxu0 %v3201
  %3473 = vmatprep.subr.mxu0 %v3204
  %3474 = vmatpush1.msra.mxu0 %v3203
  %3475 = vmatprep.subr.mxu0 %v3206
  %3476 = vmatpush1.msra.mxu0 %v3205
  %3477 = vmatprep.subr.mxu0 %v3208
  %3478 = vmatpush1.msra.mxu0 %v3207
  %3479 = vmatprep.subr.mxu0 %v3210
  %3480 = vmatpush1.msra.mxu0 %v3209
  %3481 = vmatprep.subr.mxu0 %v3212
  %3482 = vmatpush1.msra.mxu0 %v3211
  %3483 = vmatprep.subr.mxu0 %v3214
  %3484 = vmatpush1.msra.mxu0 %v3213
  %3485 = vmatprep.subr.mxu0 %v3216
  %3486 = vmatpush1.msra.mxu0 %v3215
  %3487 = vmatprep.subr.mxu0 %v3218
  %3488 = vmatpush1.msra.mxu0 %v3217
  %3489 = vmatprep.subr.mxu0 %v3220
  %3490 = vmatpush1.msra.mxu0 %v3219
  %3491 = vmatprep.subr.mxu0 %v3222
  %3492 = vmatpush1.msra.mxu0 %v3221
  %3493 = vmatprep.subr.mxu0 %v3224
  %3494 = vmatpush1.msra.mxu0 %v3223
  %3495 = vmatprep.subr.mxu0 %v3226
  %3496 = vmatpush1.msra.mxu0 %v3225
  %3497 = vmatprep.subr.mxu0 %v3228
  %3498 = vmatpush1.msra.mxu0 %v3227
  %3499 = vmatprep.subr.mxu0 %v3230
  %3500 = vmatpush1.msra.mxu0 %v3229
  %3501 = vmatprep.subr.mxu0 %v3232
  %3502 = vmatpush1.msra.mxu0 %v3231
  %3503 = vmatprep.subr.mxu0 %v3234
  %3504 = vmatpush1.msra.mxu0 %v3233
  %3505 = vmatprep.subr.mxu0 %v3236
  %3506 = vmatpush1.msra.mxu0 %v3235
  %3507 = vmatprep.subr.mxu0 %v3238
  %3508 = vmatpush1.msra.mxu0 %v3237
  %3509 = vmatprep.subr.mxu0 %v3240
  %3510 = vmatpush1.msra.mxu0 %v3239
  %3511 = vmatprep.subr.mxu0 %v3242
  %3512 = vmatpush1.msra.mxu0 %v3241
  %3513 = vmatprep.subr.mxu0 %v3244
  %3514 = vmatpush1.msra.mxu0 %v3243
  %3515 = vmatprep.subr.mxu0 %v3246
  %3516 = vmatpush1.msra.mxu0 %v3245
  %3517 = vmatprep.subr.mxu0 %v3248
  %3518 = vmatpush1.msra.mxu0 %v3247
  %3519 = vmatprep.subr.mxu0 %v3250
  %3520 = vmatpush1.msra.mxu0 %v3249
  %3521 = vmatprep.subr.mxu0 %v3252
  %3522 = vmatpush1.msra.mxu0 %v3251
  %3523 = vmatprep.subr.mxu0 %v3254
  %3524 = vmatpush1.msra.mxu0 %v3253
  %3525 = vmatprep.subr.mxu0 %v3256
  %3526 = vmatpush1.msra.mxu0 %v3255
  %3527 = vmatprep.subr.mxu0 %v3258
  %3528 = vmatpush1.msra.mxu0 %v3257
  %3529 = vmatprep.mubr.f32.mxu0 %v3056
  %3530 = vmatmul.mubr.f32.gmra.mrb[0].mxu0 %v3055
  %v3531 = vpop.f32.mrb[0].mxu0
  %v3532 = vadd.f32 %v3461, %v3531
  %v3533 = vpop.f32.mrb[0].mxu0
  %v3534 = vadd.f32 %v3463, %v3533
  %3535 = vdwg.mxu0
  %3536 = vmatprep.subr.mxu0 %v3260
  %3537 = vmatpush1.msra.mxu0 %v3259
  %3538 = vmatprep.subr.mxu0 %v3262
  %3539 = vmatpush1.msra.mxu0 %v3261
  %3540 = vmatprep.subr.mxu0 %v3264
  %3541 = vmatpush1.msra.mxu0 %v3263
  %3542 = vmatprep.subr.mxu0 %v3266
  %3543 = vmatpush1.msra.mxu0 %v3265
  %3544 = vmatprep.subr.mxu0 %v3268
  %3545 = vmatpush1.msra.mxu0 %v3267
  %3546 = vmatprep.subr.mxu0 %v3270
  %3547 = vmatpush1.msra.mxu0 %v3269
  %3548 = vmatprep.subr.mxu0 %v3272
  %3549 = vmatpush1.msra.mxu0 %v3271
  %3550 = vmatprep.subr.mxu0 %v3274
  %3551 = vmatpush1.msra.mxu0 %v3273
  %3552 = vmatprep.subr.mxu0 %v3276
  %3553 = vmatpush1.msra.mxu0 %v3275
  %3554 = vmatprep.subr.mxu0 %v3278
  %3555 = vmatpush1.msra.mxu0 %v3277
  %3556 = vmatprep.subr.mxu0 %v3280
  %3557 = vmatpush1.msra.mxu0 %v3279
  %3558 = vmatprep.subr.mxu0 %v3282
  %3559 = vmatpush1.msra.mxu0 %v3281
  %3560 = vmatprep.subr.mxu0 %v3284
  %3561 = vmatpush1.msra.mxu0 %v3283
  %3562 = vmatprep.subr.mxu0 %v3286
  %3563 = vmatpush1.msra.mxu0 %v3285
  %3564 = vmatprep.subr.mxu0 %v3288
  %3565 = vmatpush1.msra.mxu0 %v3287
  %3566 = vmatprep.subr.mxu0 %v3290
  %3567 = vmatpush1.msra.mxu0 %v3289
  %3568 = vmatprep.subr.mxu0 %v3292
  %3569 = vmatpush1.msra.mxu0 %v3291
  %3570 = vmatprep.subr.mxu0 %v3294
  %3571 = vmatpush1.msra.mxu0 %v3293
  %3572 = vmatprep.subr.mxu0 %v3296
  %3573 = vmatpush1.msra.mxu0 %v3295
  %3574 = vmatprep.subr.mxu0 %v3298
  %3575 = vmatpush1.msra.mxu0 %v3297
  %3576 = vmatprep.subr.mxu0 %v3300
  %3577 = vmatpush1.msra.mxu0 %v3299
  %3578 = vmatprep.subr.mxu0 %v3302
  %3579 = vmatpush1.msra.mxu0 %v3301
  %3580 = vmatprep.subr.mxu0 %v3304
  %3581 = vmatpush1.msra.mxu0 %v3303
  %3582 = vmatprep.subr.mxu0 %v3306
  %3583 = vmatpush1.msra.mxu0 %v3305
  %3584 = vmatprep.subr.mxu0 %v3308
  %3585 = vmatpush1.msra.mxu0 %v3307
  %3586 = vmatprep.subr.mxu0 %v3310
  %3587 = vmatpush1.msra.mxu0 %v3309
  %3588 = vmatprep.subr.mxu0 %v3312
  %3589 = vmatpush1.msra.mxu0 %v3311
  %3590 = vmatprep.subr.mxu0 %v3314
  %3591 = vmatpush1.msra.mxu0 %v3313
  %3592 = vmatprep.subr.mxu0 %v3316
  %3593 = vmatpush1.msra.mxu0 %v3315
  %3594 = vmatprep.subr.mxu0 %v3318
  %3595 = vmatpush1.msra.mxu0 %v3317
  %3596 = vmatprep.subr.mxu0 %v3320
  %3597 = vmatpush1.msra.mxu0 %v3319
  %3598 = vmatprep.subr.mxu0 %v3322
  %3599 = vmatpush1.msra.mxu0 %v3321
  %3600 = vmatprep.mubr.f32.mxu0 %v3058
  %3601 = vmatmul.mubr.f32.gmra.mrb[0].mxu0 %v3057
  %v3602 = vpop.f32.mrb[0].mxu0
  %v3603 = vadd.f32 %v3532, %v3602
  %v3604 = vpop.f32.mrb[0].mxu0
  %v3605 = vadd.f32 %v3534, %v3604
  %3606 = vdwg.mxu0
  %3607 = vmatprep.subr.mxu0 %v3068
  %3608 = vmatpush1.msra.mxu0 %v3067
  %3609 = vmatprep.subr.mxu0 %v3070
  %3610 = vmatpush1.msra.mxu0 %v3069
  %3611 = vmatprep.subr.mxu0 %v3072
  %3612 = vmatpush1.msra.mxu0 %v3071
  %3613 = vmatprep.subr.mxu0 %v3074
  %3614 = vmatpush1.msra.mxu0 %v3073
  %3615 = vmatprep.subr.mxu0 %v3076
  %3616 = vmatpush1.msra.mxu0 %v3075
  %3617 = vmatprep.subr.mxu0 %v3078
  %3618 = vmatpush1.msra.mxu0 %v3077
  %3619 = vmatprep.subr.mxu0 %v3080
  %3620 = vmatpush1.msra.mxu0 %v3079
  %3621 = vmatprep.subr.mxu0 %v3082
  %3622 = vmatpush1.msra.mxu0 %v3081
  %3623 = vmatprep.subr.mxu0 %v3084
  %3624 = vmatpush1.msra.mxu0 %v3083
  %3625 = vmatprep.subr.mxu0 %v3086
  %3626 = vmatpush1.msra.mxu0 %v3085
  %3627 = vmatprep.subr.mxu0 %v3088
  %3628 = vmatpush1.msra.mxu0 %v3087
  %3629 = vmatprep.subr.mxu0 %v3090
  %3630 = vmatpush1.msra.mxu0 %v3089
  %3631 = vmatprep.subr.mxu0 %v3092
  %3632 = vmatpush1.msra.mxu0 %v3091
  %3633 = vmatprep.subr.mxu0 %v3094
  %3634 = vmatpush1.msra.mxu0 %v3093
  %3635 = vmatprep.subr.mxu0 %v3096
  %3636 = vmatpush1.msra.mxu0 %v3095
  %3637 = vmatprep.subr.mxu0 %v3098
  %3638 = vmatpush1.msra.mxu0 %v3097
  %3639 = vmatprep.subr.mxu0 %v3100
  %3640 = vmatpush1.msra.mxu0 %v3099
  %3641 = vmatprep.subr.mxu0 %v3102
  %3642 = vmatpush1.msra.mxu0 %v3101
  %3643 = vmatprep.subr.mxu0 %v3104
  %3644 = vmatpush1.msra.mxu0 %v3103
  %3645 = vmatprep.subr.mxu0 %v3106
  %3646 = vmatpush1.msra.mxu0 %v3105
  %3647 = vmatprep.subr.mxu0 %v3108
  %3648 = vmatpush1.msra.mxu0 %v3107
  %3649 = vmatprep.subr.mxu0 %v3110
  %3650 = vmatpush1.msra.mxu0 %v3109
  %3651 = vmatprep.subr.mxu0 %v3112
  %3652 = vmatpush1.msra.mxu0 %v3111
  %3653 = vmatprep.subr.mxu0 %v3114
  %3654 = vmatpush1.msra.mxu0 %v3113
  %3655 = vmatprep.subr.mxu0 %v3116
  %3656 = vmatpush1.msra.mxu0 %v3115
  %3657 = vmatprep.subr.mxu0 %v3118
  %3658 = vmatpush1.msra.mxu0 %v3117
  %3659 = vmatprep.subr.mxu0 %v3120
  %3660 = vmatpush1.msra.mxu0 %v3119
  %3661 = vmatprep.subr.mxu0 %v3122
  %3662 = vmatpush1.msra.mxu0 %v3121
  %3663 = vmatprep.subr.mxu0 %v3124
  %3664 = vmatpush1.msra.mxu0 %v3123
  %3665 = vmatprep.subr.mxu0 %v3126
  %3666 = vmatpush1.msra.mxu0 %v3125
  %3667 = vmatprep.subr.mxu0 %v3128
  %3668 = vmatpush1.msra.mxu0 %v3127
  %3669 = vmatprep.subr.mxu0 %v3130
  %3670 = vmatpush1.msra.mxu0 %v3129
  %3671 = vmatprep.mubr.f32.mxu0 %v3060
  %3672 = vmatmul.mubr.f32.gmra.mrb[0].mxu0 %v3059
  %v3673 = vpop.f32.mrb[0].mxu0
  %v3674 = vadd.f32 0.0, %v3673
  %v3675 = vpop.f32.mrb[0].mxu0
  %v3676 = vadd.f32 0.0, %v3675
  %3677 = vdwg.mxu0
  %3678 = vmatprep.subr.mxu0 %v3132
  %3679 = vmatpush1.msra.mxu0 %v3131
  %3680 = vmatprep.subr.mxu0 %v3134
  %3681 = vmatpush1.msra.mxu0 %v3133
  %3682 = vmatprep.subr.mxu0 %v3136
  %3683 = vmatpush1.msra.mxu0 %v3135
  %3684 = vmatprep.subr.mxu0 %v3138
  %3685 = vmatpush1.msra.mxu0 %v3137
  %3686 = vmatprep.subr.mxu0 %v3140
  %3687 = vmatpush1.msra.mxu0 %v3139
  %3688 = vmatprep.subr.mxu0 %v3142
  %3689 = vmatpush1.msra.mxu0 %v3141
  %3690 = vmatprep.subr.mxu0 %v3144
  %3691 = vmatpush1.msra.mxu0 %v3143
  %3692 = vmatprep.subr.mxu0 %v3146
  %3693 = vmatpush1.msra.mxu0 %v3145
  %3694 = vmatprep.subr.mxu0 %v3148
  %3695 = vmatpush1.msra.mxu0 %v3147
  %3696 = vmatprep.subr.mxu0 %v3150
  %3697 = vmatpush1.msra.mxu0 %v3149
  %3698 = vmatprep.subr.mxu0 %v3152
  %3699 = vmatpush1.msra.mxu0 %v3151
  %3700 = vmatprep.subr.mxu0 %v3154
  %3701 = vmatpush1.msra.mxu0 %v3153
  %3702 = vmatprep.subr.mxu0 %v3156
  %3703 = vmatpush1.msra.mxu0 %v3155
  %3704 = vmatprep.subr.mxu0 %v3158
  %3705 = vmatpush1.msra.mxu0 %v3157
  %3706 = vmatprep.subr.mxu0 %v3160
  %3707 = vmatpush1.msra.mxu0 %v3159
  %3708 = vmatprep.subr.mxu0 %v3162
  %3709 = vmatpush1.msra.mxu0 %v3161
  %3710 = vmatprep.subr.mxu0 %v3164
  %3711 = vmatpush1.msra.mxu0 %v3163
  %3712 = vmatprep.subr.mxu0 %v3166
  %3713 = vmatpush1.msra.mxu0 %v3165
  %3714 = vmatprep.subr.mxu0 %v3168
  %3715 = vmatpush1.msra.mxu0 %v3167
  %3716 = vmatprep.subr.mxu0 %v3170
  %3717 = vmatpush1.msra.mxu0 %v3169
  %3718 = vmatprep.subr.mxu0 %v3172
  %3719 = vmatpush1.msra.mxu0 %v3171
  %3720 = vmatprep.subr.mxu0 %v3174
  %3721 = vmatpush1.msra.mxu0 %v3173
  %3722 = vmatprep.subr.mxu0 %v3176
  %3723 = vmatpush1.msra.mxu0 %v3175
  %3724 = vmatprep.subr.mxu0 %v3178
  %3725 = vmatpush1.msra.mxu0 %v3177
  %3726 = vmatprep.subr.mxu0 %v3180
  %3727 = vmatpush1.msra.mxu0 %v3179
  %3728 = vmatprep.subr.mxu0 %v3182
  %3729 = vmatpush1.msra.mxu0 %v3181
  %3730 = vmatprep.subr.mxu0 %v3184
  %3731 = vmatpush1.msra.mxu0 %v3183
  %3732 = vmatprep.subr.mxu0 %v3186
  %3733 = vmatpush1.msra.mxu0 %v3185
  %3734 = vmatprep.subr.mxu0 %v3188
  %3735 = vmatpush1.msra.mxu0 %v3187
  %3736 = vmatprep.subr.mxu0 %v3190
  %3737 = vmatpush1.msra.mxu0 %v3189
  %3738 = vmatprep.subr.mxu0 %v3192
  %3739 = vmatpush1.msra.mxu0 %v3191
  %3740 = vmatprep.subr.mxu0 %v3194
  %3741 = vmatpush1.msra.mxu0 %v3193
  %3742 = vmatprep.mubr.f32.mxu0 %v3062
  %3743 = vmatmul.mubr.f32.gmra.mrb[0].mxu0 %v3061
  %v3744 = vpop.f32.mrb[0].mxu0
  %v3745 = vadd.f32 %v3674, %v3744
  %v3746 = vpop.f32.mrb[0].mxu0
  %v3747 = vadd.f32 %v3676, %v3746
  %3748 = vdwg.mxu0
  %3749 = vmatprep.subr.mxu0 %v3196
  %3750 = vmatpush1.msra.mxu0 %v3195
  %3751 = vmatprep.subr.mxu0 %v3198
  %3752 = vmatpush1.msra.mxu0 %v3197
  %3753 = vmatprep.subr.mxu0 %v3200
  %3754 = vmatpush1.msra.mxu0 %v3199
  %3755 = vmatprep.subr.mxu0 %v3202
  %3756 = vmatpush1.msra.mxu0 %v3201
  %3757 = vmatprep.subr.mxu0 %v3204
  %3758 = vmatpush1.msra.mxu0 %v3203
  %3759 = vmatprep.subr.mxu0 %v3206
  %3760 = vmatpush1.msra.mxu0 %v3205
  %3761 = vmatprep.subr.mxu0 %v3208
  %3762 = vmatpush1.msra.mxu0 %v3207
  %3763 = vmatprep.subr.mxu0 %v3210
  %3764 = vmatpush1.msra.mxu0 %v3209
  %3765 = vmatprep.subr.mxu0 %v3212
  %3766 = vmatpush1.msra.mxu0 %v3211
  %3767 = vmatprep.subr.mxu0 %v3214
  %3768 = vmatpush1.msra.mxu0 %v3213
  %3769 = vmatprep.subr.mxu0 %v3216
  %3770 = vmatpush1.msra.mxu0 %v3215
  %3771 = vmatprep.subr.mxu0 %v3218
  %3772 = vmatpush1.msra.mxu0 %v3217
  %3773 = vmatprep.subr.mxu0 %v3220
  %3774 = vmatpush1.msra.mxu0 %v3219
  %3775 = vmatprep.subr.mxu0 %v3222
  %3776 = vmatpush1.msra.mxu0 %v3221
  %3777 = vmatprep.subr.mxu0 %v3224
  %3778 = vmatpush1.msra.mxu0 %v3223
  %3779 = vmatprep.subr.mxu0 %v3226
  %3780 = vmatpush1.msra.mxu0 %v3225
  %3781 = vmatprep.subr.mxu0 %v3228
  %3782 = vmatpush1.msra.mxu0 %v3227
  %3783 = vmatprep.subr.mxu0 %v3230
  %3784 = vmatpush1.msra.mxu0 %v3229
  %3785 = vmatprep.subr.mxu0 %v3232
  %3786 = vmatpush1.msra.mxu0 %v3231
  %3787 = vmatprep.subr.mxu0 %v3234
  %3788 = vmatpush1.msra.mxu0 %v3233
  %3789 = vmatprep.subr.mxu0 %v3236
  %3790 = vmatpush1.msra.mxu0 %v3235
  %3791 = vmatprep.subr.mxu0 %v3238
  %3792 = vmatpush1.msra.mxu0 %v3237
  %3793 = vmatprep.subr.mxu0 %v3240
  %3794 = vmatpush1.msra.mxu0 %v3239
  %3795 = vmatprep.subr.mxu0 %v3242
  %3796 = vmatpush1.msra.mxu0 %v3241
  %3797 = vmatprep.subr.mxu0 %v3244
  %3798 = vmatpush1.msra.mxu0 %v3243
  %3799 = vmatprep.subr.mxu0 %v3246
  %3800 = vmatpush1.msra.mxu0 %v3245
  %3801 = vmatprep.subr.mxu0 %v3248
  %3802 = vmatpush1.msra.mxu0 %v3247
  %3803 = vmatprep.subr.mxu0 %v3250
  %3804 = vmatpush1.msra.mxu0 %v3249
  %3805 = vmatprep.subr.mxu0 %v3252
  %3806 = vmatpush1.msra.mxu0 %v3251
  %3807 = vmatprep.subr.mxu0 %v3254
  %3808 = vmatpush1.msra.mxu0 %v3253
  %3809 = vmatprep.subr.mxu0 %v3256
  %3810 = vmatpush1.msra.mxu0 %v3255
  %3811 = vmatprep.subr.mxu0 %v3258
  %3812 = vmatpush1.msra.mxu0 %v3257
  %3813 = vmatprep.mubr.f32.mxu0 %v3064
  %3814 = vmatmul.mubr.f32.gmra.mrb[0].mxu0 %v3063
  %v3815 = vpop.f32.mrb[0].mxu0
  %v3816 = vadd.f32 %v3745, %v3815
  %v3817 = vpop.f32.mrb[0].mxu0
  %v3818 = vadd.f32 %v3747, %v3817
  %3819 = vdwg.mxu0
  %3820 = vmatprep.subr.mxu0 %v3260
  %3821 = vmatpush1.msra.mxu0 %v3259
  %3822 = vmatprep.subr.mxu0 %v3262
  %3823 = vmatpush1.msra.mxu0 %v3261
  %3824 = vmatprep.subr.mxu0 %v3264
  %3825 = vmatpush1.msra.mxu0 %v3263
  %3826 = vmatprep.subr.mxu0 %v3266
  %3827 = vmatpush1.msra.mxu0 %v3265
  %3828 = vmatprep.subr.mxu0 %v3268
  %3829 = vmatpush1.msra.mxu0 %v3267
  %3830 = vmatprep.subr.mxu0 %v3270
  %3831 = vmatpush1.msra.mxu0 %v3269
  %3832 = vmatprep.subr.mxu0 %v3272
  %3833 = vmatpush1.msra.mxu0 %v3271
  %3834 = vmatprep.subr.mxu0 %v3274
  %3835 = vmatpush1.msra.mxu0 %v3273
  %3836 = vmatprep.subr.mxu0 %v3276
  %3837 = vmatpush1.msra.mxu0 %v3275
  %3838 = vmatprep.subr.mxu0 %v3278
  %3839 = vmatpush1.msra.mxu0 %v3277
  %3840 = vmatprep.subr.mxu0 %v3280
  %3841 = vmatpush1.msra.mxu0 %v3279
  %3842 = vmatprep.subr.mxu0 %v3282
  %3843 = vmatpush1.msra.mxu0 %v3281
  %3844 = vmatprep.subr.mxu0 %v3284
  %3845 = vmatpush1.msra.mxu0 %v3283
  %3846 = vmatprep.subr.mxu0 %v3286
  %3847 = vmatpush1.msra.mxu0 %v3285
  %3848 = vmatprep.subr.mxu0 %v3288
  %3849 = vmatpush1.msra.mxu0 %v3287
  %3850 = vmatprep.subr.mxu0 %v3290
  %3851 = vmatpush1.msra.mxu0 %v3289
  %3852 = vmatprep.subr.mxu0 %v3292
  %3853 = vmatpush1.msra.mxu0 %v3291
  %3854 = vmatprep.subr.mxu0 %v3294
  %3855 = vmatpush1.msra.mxu0 %v3293
  %3856 = vmatprep.subr.mxu0 %v3296
  %3857 = vmatpush1.msra.mxu0 %v3295
  %3858 = vmatprep.subr.mxu0 %v3298
  %3859 = vmatpush1.msra.mxu0 %v3297
  %3860 = vmatprep.subr.mxu0 %v3300
  %3861 = vmatpush1.msra.mxu0 %v3299
  %3862 = vmatprep.subr.mxu0 %v3302
  %3863 = vmatpush1.msra.mxu0 %v3301
  %3864 = vmatprep.subr.mxu0 %v3304
  %3865 = vmatpush1.msra.mxu0 %v3303
  %3866 = vmatprep.subr.mxu0 %v3306
  %3867 = vmatpush1.msra.mxu0 %v3305
  %3868 = vmatprep.subr.mxu0 %v3308
  %3869 = vmatpush1.msra.mxu0 %v3307
  %3870 = vmatprep.subr.mxu0 %v3310
  %3871 = vmatpush1.msra.mxu0 %v3309
  %3872 = vmatprep.subr.mxu0 %v3312
  %3873 = vmatpush1.msra.mxu0 %v3311
  %3874 = vmatprep.subr.mxu0 %v3314
  %3875 = vmatpush1.msra.mxu0 %v3313
  %3876 = vmatprep.subr.mxu0 %v3316
  %3877 = vmatpush1.msra.mxu0 %v3315
  %3878 = vmatprep.subr.mxu0 %v3318
  %3879 = vmatpush1.msra.mxu0 %v3317
  %3880 = vmatprep.subr.mxu0 %v3320
  %3881 = vmatpush1.msra.mxu0 %v3319
  %3882 = vmatprep.subr.mxu0 %v3322
  %3883 = vmatpush1.msra.mxu0 %v3321
  %3884 = vmatprep.mubr.f32.mxu0 %v3066
  %3885 = vmatmul.mubr.f32.gmra.mrb[0].mxu0 %v3065
  %v3886 = vpop.f32.mrb[0].mxu0
  %v3887 = vadd.f32 %v3816, %v3886
  %v3888 = vpop.f32.mrb[0].mxu0
  %v3889 = vadd.f32 %v3818, %v3888
  %3890 = vdwg.mxu0
  %3893 = vrot.lane.b32.xlu0 %v3887, 68
  %v3894 = vpop.permute.xlu0 %3893
  %3895 = vrot.lane.b32.xlu0 %v3889, 68
  %v3896 = vpop.permute.xlu0 %3895
  %vm3897 = vcmask 556032
  %v3898 = vsel %vm3897, %v3894, %v3896
  %v3902 = vsel %vm3897, %v3605, %v3894
  %vm3903 = vcmask 64512
  %v3904 = vsel %vm3903, %v3896, 0.0
  %3908 = vrot.lane.b32.xlu0 %v3603, 127
  %v3909 = vpop.permute.xlu0 %3908
  %3910 = vrot.lane.b32.xlu0 %v3902, 127
  %v3911 = vpop.permute.xlu0 %3910
  %3912 = vrot.lane.b32.xlu0 %v3898, 127
  %v3913 = vpop.permute.xlu0 %3912
  %3914 = vrot.lane.b32.xlu0 %v3904, 127
  %v3915 = vpop.permute.xlu0 %3914
  %v3916 = vsel %vm306, %v3909, %v3911
  %v3917 = vsel %vm306, %v3911, %v3913
  %v3918 = vsel %vm306, %v3913, %v3915
  %3923 = vrot.lane.b32.xlu0 %v3603, 126
  %v3924 = vpop.permute.xlu0 %3923
  %3925 = vrot.lane.b32.xlu0 %v3902, 126
  %v3926 = vpop.permute.xlu0 %3925
  %3927 = vrot.lane.b32.xlu0 %v3898, 126
  %v3928 = vpop.permute.xlu0 %3927
  %3929 = vrot.lane.b32.xlu0 %v3904, 126
  %v3930 = vpop.permute.xlu0 %3929
  %v3931 = vsel %vm427, %v3924, %v3926
  %v3932 = vsel %vm427, %v3926, %v3928
  %v3933 = vsel %vm427, %v3928, %v3930
  %3938 = vrot.lane.b32.xlu0 %v3603, 125
  %v3939 = vpop.permute.xlu0 %3938
  %3940 = vrot.lane.b32.xlu0 %v3902, 125
  %v3941 = vpop.permute.xlu0 %3940
  %3942 = vrot.lane.b32.xlu0 %v3898, 125
  %v3943 = vpop.permute.xlu0 %3942
  %3944 = vrot.lane.b32.xlu0 %v3904, 125
  %v3945 = vpop.permute.xlu0 %3944
  %v3946 = vsel %vm548, %v3939, %v3941
  %v3947 = vsel %vm548, %v3941, %v3943
  %v3948 = vsel %vm548, %v3943, %v3945
  %3953 = vrot.lane.b32.xlu0 %v3603, 124
  %v3954 = vpop.permute.xlu0 %3953
  %3955 = vrot.lane.b32.xlu0 %v3902, 124
  %v3956 = vpop.permute.xlu0 %3955
  %3957 = vrot.lane.b32.xlu0 %v3898, 124
  %v3958 = vpop.permute.xlu0 %3957
  %3959 = vrot.lane.b32.xlu0 %v3904, 124
  %v3960 = vpop.permute.xlu0 %3959
  %v3961 = vsel %vm669, %v3954, %v3956
  %v3962 = vsel %vm669, %v3956, %v3958
  %v3963 = vsel %vm669, %v3958, %v3960
  %3968 = vrot.lane.b32.xlu0 %v3603, 114
  %v3969 = vpop.permute.xlu0 %3968
  %3970 = vrot.lane.b32.xlu0 %v3902, 114
  %v3971 = vpop.permute.xlu0 %3970
  %3972 = vrot.lane.b32.xlu0 %v3898, 114
  %v3973 = vpop.permute.xlu0 %3972
  %3974 = vrot.lane.b32.xlu0 %v3904, 114
  %v3975 = vpop.permute.xlu0 %3974
  %vm3976 = vcmask 932864
  %v3977 = vsel %vm3976, %v3969, %v3971
  %v3978 = vsel %vm3976, %v3971, %v3973
  %v3979 = vsel %vm3976, %v3973, %v3975
  %3984 = vrot.lane.b32.xlu0 %v3603, 113
  %v3985 = vpop.permute.xlu0 %3984
  %3986 = vrot.lane.b32.xlu0 %v3902, 113
  %v3987 = vpop.permute.xlu0 %3986
  %3988 = vrot.lane.b32.xlu0 %v3898, 113
  %v3989 = vpop.permute.xlu0 %3988
  %3990 = vrot.lane.b32.xlu0 %v3904, 113
  %v3991 = vpop.permute.xlu0 %3990
  %vm3992 = vcmask 924672
  %v3993 = vsel %vm3992, %v3985, %v3987
  %v3994 = vsel %vm3992, %v3987, %v3989
  %v3995 = vsel %vm3992, %v3989, %v3991
  %4000 = vrot.lane.b32.xlu0 %v3603, 112
  %v4001 = vpop.permute.xlu0 %4000
  %4002 = vrot.lane.b32.xlu0 %v3902, 112
  %v4003 = vpop.permute.xlu0 %4002
  %4004 = vrot.lane.b32.xlu0 %v3898, 112
  %v4005 = vpop.permute.xlu0 %4004
  %4006 = vrot.lane.b32.xlu0 %v3904, 112
  %v4007 = vpop.permute.xlu0 %4006
  %vm4008 = vcmask 916480
  %v4009 = vsel %vm4008, %v4001, %v4003
  %v4010 = vsel %vm4008, %v4003, %v4005
  %v4011 = vsel %vm4008, %v4005, %v4007
  %4016 = vrot.lane.b32.xlu0 %v3603, 111
  %v4017 = vpop.permute.xlu0 %4016
  %4018 = vrot.lane.b32.xlu0 %v3902, 111
  %v4019 = vpop.permute.xlu0 %4018
  %4020 = vrot.lane.b32.xlu0 %v3898, 111
  %v4021 = vpop.permute.xlu0 %4020
  %4022 = vrot.lane.b32.xlu0 %v3904, 111
  %v4023 = vpop.permute.xlu0 %4022
  %vm4024 = vcmask 908288
  %v4025 = vsel %vm4024, %v4017, %v4019
  %v4026 = vsel %vm4024, %v4019, %v4021
  %v4027 = vsel %vm4024, %v4021, %v4023
  %4032 = vrot.lane.b32.xlu0 %v3603, 110
  %v4033 = vpop.permute.xlu0 %4032
  %4034 = vrot.lane.b32.xlu0 %v3902, 110
  %v4035 = vpop.permute.xlu0 %4034
  %4036 = vrot.lane.b32.xlu0 %v3898, 110
  %v4037 = vpop.permute.xlu0 %4036
  %4038 = vrot.lane.b32.xlu0 %v3904, 110
  %v4039 = vpop.permute.xlu0 %4038
  %vm4040 = vcmask 900096
  %v4041 = vsel %vm4040, %v4033, %v4035
  %v4042 = vsel %vm4040, %v4035, %v4037
  %v4043 = vsel %vm4040, %v4037, %v4039
  %4048 = vrot.lane.b32.xlu0 %v3603, 100
  %v4049 = vpop.permute.xlu0 %4048
  %4050 = vrot.lane.b32.xlu0 %v3902, 100
  %v4051 = vpop.permute.xlu0 %4050
  %4052 = vrot.lane.b32.xlu0 %v3898, 100
  %v4053 = vpop.permute.xlu0 %4052
  %4054 = vrot.lane.b32.xlu0 %v3904, 100
  %v4055 = vpop.permute.xlu0 %4054
  %vm4056 = vcmask 818176
  %v4057 = vsel %vm4056, %v4049, %v4051
  %v4058 = vsel %vm4056, %v4051, %v4053
  %v4059 = vsel %vm4056, %v4053, %v4055
  %4064 = vrot.lane.b32.xlu0 %v3603, 99
  %v4065 = vpop.permute.xlu0 %4064
  %4066 = vrot.lane.b32.xlu0 %v3902, 99
  %v4067 = vpop.permute.xlu0 %4066
  %4068 = vrot.lane.b32.xlu0 %v3898, 99
  %v4069 = vpop.permute.xlu0 %4068
  %4070 = vrot.lane.b32.xlu0 %v3904, 99
  %v4071 = vpop.permute.xlu0 %4070
  %vm4072 = vcmask 809984
  %v4073 = vsel %vm4072, %v4065, %v4067
  %v4074 = vsel %vm4072, %v4067, %v4069
  %v4075 = vsel %vm4072, %v4069, %v4071
  %4080 = vrot.lane.b32.xlu0 %v3603, 98
  %v4081 = vpop.permute.xlu0 %4080
  %4082 = vrot.lane.b32.xlu0 %v3902, 98
  %v4083 = vpop.permute.xlu0 %4082
  %4084 = vrot.lane.b32.xlu0 %v3898, 98
  %v4085 = vpop.permute.xlu0 %4084
  %4086 = vrot.lane.b32.xlu0 %v3904, 98
  %v4087 = vpop.permute.xlu0 %4086
  %vm4088 = vcmask 801792
  %v4089 = vsel %vm4088, %v4081, %v4083
  %v4090 = vsel %vm4088, %v4083, %v4085
  %v4091 = vsel %vm4088, %v4085, %v4087
  %4096 = vrot.lane.b32.xlu0 %v3603, 97
  %v4097 = vpop.permute.xlu0 %4096
  %4098 = vrot.lane.b32.xlu0 %v3902, 97
  %v4099 = vpop.permute.xlu0 %4098
  %4100 = vrot.lane.b32.xlu0 %v3898, 97
  %v4101 = vpop.permute.xlu0 %4100
  %4102 = vrot.lane.b32.xlu0 %v3904, 97
  %v4103 = vpop.permute.xlu0 %4102
  %vm4104 = vcmask 793600
  %v4105 = vsel %vm4104, %v4097, %v4099
  %v4106 = vsel %vm4104, %v4099, %v4101
  %v4107 = vsel %vm4104, %v4101, %v4103
  %4112 = vrot.lane.b32.xlu0 %v3603, 96
  %v4113 = vpop.permute.xlu0 %4112
  %4114 = vrot.lane.b32.xlu0 %v3902, 96
  %v4115 = vpop.permute.xlu0 %4114
  %4116 = vrot.lane.b32.xlu0 %v3898, 96
  %v4117 = vpop.permute.xlu0 %4116
  %4118 = vrot.lane.b32.xlu0 %v3904, 96
  %v4119 = vpop.permute.xlu0 %4118
  %v4120 = vsel %vm790, %v4113, %v4115
  %v4121 = vsel %vm790, %v4115, %v4117
  %v4122 = vsel %vm790, %v4117, %v4119
  %4127 = vrot.lane.b32.xlu0 %v3603, 86
  %v4128 = vpop.permute.xlu0 %4127
  %4129 = vrot.lane.b32.xlu0 %v3902, 86
  %v4130 = vpop.permute.xlu0 %4129
  %4131 = vrot.lane.b32.xlu0 %v3898, 86
  %v4132 = vpop.permute.xlu0 %4131
  %4133 = vrot.lane.b32.xlu0 %v3904, 86
  %v4134 = vpop.permute.xlu0 %4133
  %vm4135 = vcmask 703488
  %v4136 = vsel %vm4135, %v4128, %v4130
  %v4137 = vsel %vm4135, %v4130, %v4132
  %v4138 = vsel %vm4135, %v4132, %v4134
  %4143 = vrot.lane.b32.xlu0 %v3603, 115
  %v4144 = vpop.permute.xlu0 %4143
  %4145 = vrot.lane.b32.xlu0 %v3902, 115
  %v4146 = vpop.permute.xlu0 %4145
  %4147 = vrot.lane.b32.xlu0 %v3898, 115
  %v4148 = vpop.permute.xlu0 %4147
  %4149 = vrot.lane.b32.xlu0 %v3904, 115
  %v4150 = vpop.permute.xlu0 %4149
  %vm4151 = vcmask 941056
  %v4152 = vsel %vm4151, %v4144, %v4146
  %v4153 = vsel %vm4151, %v4146, %v4148
  %v4154 = vsel %vm4151, %v4148, %v4150
  %4155 = vrot.lane.b32.xlu0 %v3603, 85
  %v4156 = vpop.permute.xlu0 %4155
  %4157 = vrot.lane.b32.xlu0 %v3902, 85
  %v4158 = vpop.permute.xlu0 %4157
  %4159 = vrot.lane.b32.xlu0 %v3898, 85
  %v4160 = vpop.permute.xlu0 %4159
  %4161 = vrot.lane.b32.xlu0 %v3904, 85
  %v4162 = vpop.permute.xlu0 %4161
  %4163 = vrot.lane.b32.xlu0 %v3916, 85
  %v4164 = vpop.permute.xlu0 %4163
  %4165 = vrot.lane.b32.xlu0 %v3917, 85
  %v4166 = vpop.permute.xlu0 %4165
  %4167 = vrot.lane.b32.xlu0 %v3918, 85
  %v4168 = vpop.permute.xlu0 %4167
  %4169 = vrot.lane.b32.xlu0 %v3915, 85
  %v4170 = vpop.permute.xlu0 %4169
  %4171 = vrot.lane.b32.xlu0 %v3931, 85
  %v4172 = vpop.permute.xlu0 %4171
  %4173 = vrot.lane.b32.xlu0 %v3932, 85
  %v4174 = vpop.permute.xlu0 %4173
  %4175 = vrot.lane.b32.xlu0 %v3933, 85
  %v4176 = vpop.permute.xlu0 %4175
  %4177 = vrot.lane.b32.xlu0 %v3930, 85
  %v4178 = vpop.permute.xlu0 %4177
  %4179 = vrot.lane.b32.xlu0 %v3946, 85
  %v4180 = vpop.permute.xlu0 %4179
  %4181 = vrot.lane.b32.xlu0 %v3947, 85
  %v4182 = vpop.permute.xlu0 %4181
  %4183 = vrot.lane.b32.xlu0 %v3948, 85
  %v4184 = vpop.permute.xlu0 %4183
  %4185 = vrot.lane.b32.xlu0 %v3945, 85
  %v4186 = vpop.permute.xlu0 %4185
  %4187 = vrot.lane.b32.xlu0 %v4152, 85
  %v4188 = vpop.permute.xlu0 %4187
  %4189 = vrot.lane.b32.xlu0 %v4153, 85
  %v4190 = vpop.permute.xlu0 %4189
  %4191 = vrot.lane.b32.xlu0 %v4154, 85
  %v4192 = vpop.permute.xlu0 %4191
  %4193 = vrot.lane.b32.xlu0 %v4150, 85
  %v4194 = vpop.permute.xlu0 %4193
  %4195 = vrot.lane.b32.xlu0 %v3977, 85
  %v4196 = vpop.permute.xlu0 %4195
  %4197 = vrot.lane.b32.xlu0 %v3978, 85
  %v4198 = vpop.permute.xlu0 %4197
  %4199 = vrot.lane.b32.xlu0 %v3979, 85
  %v4200 = vpop.permute.xlu0 %4199
  %4201 = vrot.lane.b32.xlu0 %v3975, 85
  %v4202 = vpop.permute.xlu0 %4201
  %4203 = vrot.lane.b32.xlu0 %v3993, 85
  %v4204 = vpop.permute.xlu0 %4203
  %4205 = vrot.lane.b32.xlu0 %v3994, 85
  %v4206 = vpop.permute.xlu0 %4205
  %4207 = vrot.lane.b32.xlu0 %v3995, 85
  %v4208 = vpop.permute.xlu0 %4207
  %4209 = vrot.lane.b32.xlu0 %v3991, 85
  %v4210 = vpop.permute.xlu0 %4209
  %4211 = vrot.lane.b32.xlu0 %v4009, 85
  %v4212 = vpop.permute.xlu0 %4211
  %4213 = vrot.lane.b32.xlu0 %v4010, 85
  %v4214 = vpop.permute.xlu0 %4213
  %4215 = vrot.lane.b32.xlu0 %v4011, 85
  %v4216 = vpop.permute.xlu0 %4215
  %4217 = vrot.lane.b32.xlu0 %v4007, 85
  %v4218 = vpop.permute.xlu0 %4217
  %4219 = vrot.lane.b32.xlu0 %v4025, 85
  %v4220 = vpop.permute.xlu0 %4219
  %4221 = vrot.lane.b32.xlu0 %v4026, 85
  %v4222 = vpop.permute.xlu0 %4221
  %4223 = vrot.lane.b32.xlu0 %v4027, 85
  %v4224 = vpop.permute.xlu0 %4223
  %4225 = vrot.lane.b32.xlu0 %v4023, 85
  %v4226 = vpop.permute.xlu0 %4225
  %vm4227 = vcmask 695296
  %v4228 = vsel %vm4227, %v4156, %v4158
  %v4229 = vsel %vm4227, %v4158, %v4160
  %v4230 = vsel %vm4227, %v4160, %v4162
  %v4231 = vsel %vm4227, %v4164, %v4166
  %v4232 = vsel %vm4227, %v4166, %v4168
  %v4233 = vsel %vm4227, %v4168, %v4170
  %v4234 = vsel %vm4227, %v4172, %v4174
  %v4235 = vsel %vm4227, %v4174, %v4176
  %v4236 = vsel %vm4227, %v4176, %v4178
  %v4237 = vsel %vm4227, %v4180, %v4182
  %v4238 = vsel %vm4227, %v4182, %v4184
  %v4239 = vsel %vm4227, %v4184, %v4186
  %v4240 = vsel %vm4227, %v4188, %v4190
  %v4241 = vsel %vm4227, %v4190, %v4192
  %v4242 = vsel %vm4227, %v4192, %v4194
  %v4243 = vsel %vm4227, %v4196, %v4198
  %v4244 = vsel %vm4227, %v4198, %v4200
  %v4245 = vsel %vm4227, %v4200, %v4202
  %v4246 = vsel %vm4227, %v4204, %v4206
  %v4247 = vsel %vm4227, %v4206, %v4208
  %v4248 = vsel %vm4227, %v4208, %v4210
  %v4249 = vsel %vm4227, %v4212, %v4214
  %v4250 = vsel %vm4227, %v4214, %v4216
  %v4251 = vsel %vm4227, %v4216, %v4218
  %v4252 = vsel %vm4227, %v4220, %v4222
  %v4253 = vsel %vm4227, %v4222, %v4224
  %v4254 = vsel %vm4227, %v4224, %v4226
  %v4291 = vld [vmem:[%s4] sm:$0xff]
  %v4292 = vld [vmem:[%s4 + $0x8] sm:$0xff]
  %v4293 = vpack.c.bf16 %v3916, %v3603
  %v4294 = vpack.c.bf16 %v3917, %v3902
  %v4295 = vpack.c.bf16 %v3918, %v3898
  %v4296 = vpack.c.bf16 %v3915, %v3904
  %v4297 = vpack.c.bf16 %v3946, %v3931
  %v4298 = vpack.c.bf16 %v3947, %v3932
  %v4299 = vpack.c.bf16 %v3948, %v3933
  %v4300 = vpack.c.bf16 %v3945, %v3930
  %v4301 = vpack.c.bf16 %v3977, %v3961
  %v4302 = vpack.c.bf16 %v3978, %v3962
  %v4303 = vpack.c.bf16 %v3979, %v3963
  %v4304 = vpack.c.bf16 %v3975, %v3960
  %v4305 = vpack.c.bf16 %v4009, %v3993
  %v4306 = vpack.c.bf16 %v4010, %v3994
  %v4307 = vpack.c.bf16 %v4011, %v3995
  %v4308 = vpack.c.bf16 %v4007, %v3991
  %v4309 = vpack.c.bf16 %v4041, %v4025
  %v4310 = vpack.c.bf16 %v4042, %v4026
  %v4311 = vpack.c.bf16 %v4043, %v4027
  %v4312 = vpack.c.bf16 %v4039, %v4023
  %v4313 = vpack.c.bf16 %v4073, %v4057
  %v4314 = vpack.c.bf16 %v4074, %v4058
  %v4315 = vpack.c.bf16 %v4075, %v4059
  %v4316 = vpack.c.bf16 %v4071, %v4055
  %v4317 = vpack.c.bf16 %v4105, %v4089
  %v4318 = vpack.c.bf16 %v4106, %v4090
  %v4319 = vpack.c.bf16 %v4107, %v4091
  %v4320 = vpack.c.bf16 %v4103, %v4087
  %v4321 = vpack.c.bf16 %v4136, %v4120
  %v4322 = vpack.c.bf16 %v4137, %v4121
  %v4323 = vpack.c.bf16 %v4138, %v4122
  %v4324 = vpack.c.bf16 %v4134, %v4119
  %v4325 = vpack.c.bf16 %v4231, %v4228
  %v4326 = vpack.c.bf16 %v4232, %v4229
  %v4327 = vpack.c.bf16 %v4233, %v4230
  %v4328 = vpack.c.bf16 %v4170, %v4162
  %v4329 = vpack.c.bf16 %v4237, %v4234
  %v4330 = vpack.c.bf16 %v4238, %v4235
  %v4331 = vpack.c.bf16 %v4239, %v4236
  %v4332 = vpack.c.bf16 %v4186, %v4178
  %v4333 = vpack.c.bf16 %v4243, %v4240
  %v4334 = vpack.c.bf16 %v4244, %v4241
  %v4335 = vpack.c.bf16 %v4245, %v4242
  %v4336 = vpack.c.bf16 %v4202, %v4194
  %v4337 = vpack.c.bf16 %v4249, %v4246
  %v4338 = vpack.c.bf16 %v4250, %v4247
  %v4339 = vpack.c.bf16 %v4251, %v4248
  %v4340 = vpack.c.bf16 %v4218, %v4210
  %v4341 = vpack.c.bf16 %v4252, %v4252
  %v4342 = vpack.c.bf16 %v4253, %v4253
  %v4343 = vpack.c.bf16 %v4254, %v4254
  %v4344 = vpack.c.bf16 %v4226, %v4226
  %v4345 = vld [vmem:[%s5] sm:$0xff]
  %v4346 = vld [vmem:[%s5 + $0x8] sm:$0xff]
  %4348 = vset.pattern.permute.xlu0 0
  %4349 = vperm.xlu0 %4348, %v4345
  %v4350 = vpop.permute.xlu0 %4349
  %4353 = vset.pattern.permute.xlu0 0
  %4354 = vperm.xlu0 %4353, %v4346
  %v4355 = vpop.permute.xlu0 %4354
  %v4359 = vunpack.c.l.b16 %v4291
  %v4360 = vunpack.c.h.b16 %v4291
  %v4361 = vunpack.c.l.b16 %v4292
  %v4362 = vunpack.c.h.b16 %v4292
  %v4363 = vpack.c.b16 %v4361, %v4359
  %v4364 = vpack.c.b16 %v4362, %v4360
  %vm4366 = vcmask 588800
  %v4368 = vsel %vm4366, %v4364, 0
  %vm4370 = vcmask 1043456
  %v4372 = vsel %vm4370, %v4341, 0
  %v4375 = vsel %vm4370, %v4342, 0
  %v4378 = vsel %vm4370, %v4343, 0
  %v4381 = vsel %vm4370, %v4344, 0
  %4383 = vmatprep.subr.bf16.mxu0 %v4294
  %4384 = vmatpush1.bf16.msra.mxu0 %v4293
  %4385 = vmatprep.subr.bf16.mxu0 %v4298
  %4386 = vmatpush1.bf16.msra.mxu0 %v4297
  %4387 = vmatprep.subr.bf16.mxu0 %v4302
  %4388 = vmatpush1.bf16.msra.mxu0 %v4301
  %4389 = vmatprep.subr.bf16.mxu0 %v4306
  %4390 = vmatpush1.bf16.msra.mxu0 %v4305
  %4391 = vmatprep.subr.bf16.mxu0 %v4310
  %4392 = vmatpush1.bf16.msra.mxu0 %v4309
  %4393 = vmatprep.subr.bf16.mxu0 %v4314
  %4394 = vmatpush1.bf16.msra.mxu0 %v4313
  %4395 = vmatprep.subr.bf16.mxu0 %v4318
  %4396 = vmatpush1.bf16.msra.mxu0 %v4317
  %4397 = vmatprep.subr.bf16.mxu0 %v4322
  %4398 = vmatpush1.bf16.msra.mxu0 %v4321
  %4399 = vmatprep.subr.bf16.mxu0 %v4326
  %4400 = vmatpush1.bf16.msra.mxu0 %v4325
  %4401 = vmatprep.subr.bf16.mxu0 %v4330
  %4402 = vmatpush1.bf16.msra.mxu0 %v4329
  %4403 = vmatprep.subr.bf16.mxu0 %v4334
  %4404 = vmatpush1.bf16.msra.mxu0 %v4333
  %4405 = vmatprep.subr.bf16.mxu0 %v4338
  %4406 = vmatpush1.bf16.msra.mxu0 %v4337
  %4407 = vmatprep.subr.bf16.mxu0 %v4375
  %4408 = vmatpush1.bf16.msra.mxu0 %v4372
  %4409 = vmatprep.subr.bf16.mxu0 0
  %4410 = vmatpush1.bf16.msra.mxu0 0
  %4411 = vmatprep.subr.bf16.mxu0 0
  %4412 = vmatpush1.bf16.msra.mxu0 0
  %4413 = vmatprep.subr.bf16.mxu0 0
  %4414 = vmatpush1.bf16.msra.mxu0 0
  %4415 = vmatprep.mubr.bf16.mxu0 %v4368
  %4416 = vmatmul.mubr.bf16.gmra.mrb[0].mxu0 %v4363
  %v4417 = vpop.f32.mrb[0].mxu0
  %v4418 = vadd.f32 %v4350, %v4417
  %v4419 = vpop.f32.mrb[0].mxu0
  %v4420 = vadd.f32 %v4350, %v4419
  %v4421 = vpop.f32.mrb[0].mxu0
  %v4422 = vadd.f32 %v4355, %v4421
  %v4423 = vpop.f32.mrb[0].mxu0
  %v4424 = vadd.f32 %v4355, %v4423
  %4425 = vdwg.mxu0
  %4426 = vmatprep.subr.bf16.mxu0 %v4296
  %4427 = vmatpush1.bf16.msra.mxu0 %v4295
  %4428 = vmatprep.subr.bf16.mxu0 %v4300
  %4429 = vmatpush1.bf16.msra.mxu0 %v4299
  %4430 = vmatprep.subr.bf16.mxu0 %v4304
  %4431 = vmatpush1.bf16.msra.mxu0 %v4303
  %4432 = vmatprep.subr.bf16.mxu0 %v4308
  %4433 = vmatpush1.bf16.msra.mxu0 %v4307
  %4434 = vmatprep.subr.bf16.mxu0 %v4312
  %4435 = vmatpush1.bf16.msra.mxu0 %v4311
  %4436 = vmatprep.subr.bf16.mxu0 %v4316
  %4437 = vmatpush1.bf16.msra.mxu0 %v4315
  %4438 = vmatprep.subr.bf16.mxu0 %v4320
  %4439 = vmatpush1.bf16.msra.mxu0 %v4319
  %4440 = vmatprep.subr.bf16.mxu0 %v4324
  %4441 = vmatpush1.bf16.msra.mxu0 %v4323
  %4442 = vmatprep.subr.bf16.mxu0 %v4328
  %4443 = vmatpush1.bf16.msra.mxu0 %v4327
  %4444 = vmatprep.subr.bf16.mxu0 %v4332
  %4445 = vmatpush1.bf16.msra.mxu0 %v4331
  %4446 = vmatprep.subr.bf16.mxu0 %v4336
  %4447 = vmatpush1.bf16.msra.mxu0 %v4335
  %4448 = vmatprep.subr.bf16.mxu0 %v4340
  %4449 = vmatpush1.bf16.msra.mxu0 %v4339
  %4450 = vmatprep.subr.bf16.mxu0 %v4381
  %4451 = vmatpush1.bf16.msra.mxu0 %v4378
  %4452 = vmatprep.subr.bf16.mxu0 0
  %4453 = vmatpush1.bf16.msra.mxu0 0
  %4454 = vmatprep.subr.bf16.mxu0 0
  %4455 = vmatpush1.bf16.msra.mxu0 0
  %4456 = vmatprep.subr.bf16.mxu0 0
  %4457 = vmatpush1.bf16.msra.mxu0 0
  %4458 = vmatprep.mubr.bf16.mxu0 %v4368
  %4459 = vmatmul.mubr.bf16.gmra.mrb[0].mxu0 %v4363
  %v4460 = vpop.f32.mrb[0].mxu0
  %v4461 = vadd.f32 %v4350, %v4460
  %v4462 = vpop.f32.mrb[0].mxu0
  %v4463 = vadd.f32 %v4350, %v4462
  %v4464 = vpop.f32.mrb[0].mxu0
  %v4465 = vadd.f32 %v4355, %v4464
  %v4466 = vpop.f32.mrb[0].mxu0
  %v4467 = vadd.f32 %v4355, %v4466
  %4468 = vdwg.mxu0
  %v4469 = vtanh.pop %v4418
  %v4470 = vtanh.pop %v4420
  %v4471 = vtanh.pop %v4461
  %v4472 = vtanh.pop %v4463
  %v4473 = vtanh.pop %v4422
  %v4474 = vtanh.pop %v4424
  %v4475 = vtanh.pop %v4465
  %v4476 = vtanh.pop %v4467
  %v4477 = vld [vmem:[%s6] sm:$0xff]
  %v4478 = vld [vmem:[%s6 + $0x8] sm:$0xff]
  %v4479 = vld [vmem:[%s6 + $0x10] sm:$0xff]
  %v4480 = vld [vmem:[%s6 + $0x18] sm:$0xff]
  %v4481 = vld [vmem:[%s6 + $0x20] sm:$0xff]
  %v4482 = vld [vmem:[%s6 + $0x28] sm:$0xff]
  %v4483 = vld [vmem:[%s6 + $0x30] sm:$0xff]
  %v4484 = vld [vmem:[%s6 + $0x38] sm:$0xff]
  %v4485 = vld [vmem:[%s6 + $0x40] sm:$0xff]
  %v4486 = vld [vmem:[%s6 + $0x48] sm:$0xff]
  %v4487 = vld [vmem:[%s6 + $0x50] sm:$0xff]
  %v4488 = vld [vmem:[%s6 + $0x58] sm:$0xff]
  %v4489 = vld [vmem:[%s6 + $0x60] sm:$0xff]
  %v4490 = vld [vmem:[%s6 + $0x68] sm:$0xff]
  %v4491 = vld [vmem:[%s6 + $0x70] sm:$0xff]
  %v4492 = vld [vmem:[%s6 + $0x78] sm:$0xff]
  %v4493 = vld [vmem:[%s6 + $0x80] sm:$0xff]
  %v4494 = vld [vmem:[%s6 + $0x88] sm:$0xff]
  %v4495 = vld [vmem:[%s6 + $0x90] sm:$0xff]
  %v4496 = vld [vmem:[%s6 + $0x98] sm:$0xff]
  %v4497 = vld [vmem:[%s6 + $0xa0] sm:$0xff]
  %v4498 = vld [vmem:[%s6 + $0xa8] sm:$0xff]
  %v4499 = vld [vmem:[%s6 + $0xb0] sm:$0xff]
  %v4500 = vld [vmem:[%s6 + $0xb8] sm:$0xff]
  %v4501 = vld [vmem:[%s6 + $0xc0] sm:$0xf]
  %v4503 = vsel %vm3897, %v4470, 0
  %v4506 = vsel %vm3897, %v4474, 0
  %v4509 = vsel %vm4370, %v4501, 0
  %4511 = vmatprep.subr.mxu0 0.0
  %4512 = vmatpush1.msra.mxu0 %v4477
  %4513 = vmatprep.subr.mxu0 0.0
  %4514 = vmatpush1.msra.mxu0 %v4478
  %4515 = vmatprep.subr.mxu0 0.0
  %4516 = vmatpush1.msra.mxu0 %v4479
  %4517 = vmatprep.subr.mxu0 0.0
  %4518 = vmatpush1.msra.mxu0 %v4480
  %4519 = vmatprep.subr.mxu0 0.0
  %4520 = vmatpush1.msra.mxu0 %v4481
  %4521 = vmatprep.subr.mxu0 0.0
  %4522 = vmatpush1.msra.mxu0 %v4482
  %4523 = vmatprep.subr.mxu0 0.0
  %4524 = vmatpush1.msra.mxu0 %v4483
  %4525 = vmatprep.subr.mxu0 0.0
  %4526 = vmatpush1.msra.mxu0 %v4484
  %4527 = vmatprep.subr.mxu0 0.0
  %4528 = vmatpush1.msra.mxu0 %v4485
  %4529 = vmatprep.subr.mxu0 0.0
  %4530 = vmatpush1.msra.mxu0 %v4486
  %4531 = vmatprep.subr.mxu0 0.0
  %4532 = vmatpush1.msra.mxu0 %v4487
  %4533 = vmatprep.subr.mxu0 0.0
  %4534 = vmatpush1.msra.mxu0 %v4488
  %4535 = vmatprep.subr.mxu0 0.0
  %4536 = vmatpush1.msra.mxu0 %v4489
  %4537 = vmatprep.subr.mxu0 0.0
  %4538 = vmatpush1.msra.mxu0 %v4490
  %4539 = vmatprep.subr.mxu0 0.0
  %4540 = vmatpush1.msra.mxu0 %v4491
  %4541 = vmatprep.subr.mxu0 0.0
  %4542 = vmatpush1.msra.mxu0 %v4492
  %4543 = vmatprep.subr.mxu0 0.0
  %4544 = vmatpush1.msra.mxu0 %v4493
  %4545 = vmatprep.subr.mxu0 0.0
  %4546 = vmatpush1.msra.mxu0 %v4494
  %4547 = vmatprep.subr.mxu0 0.0
  %4548 = vmatpush1.msra.mxu0 %v4495
  %4549 = vmatprep.subr.mxu0 0.0
  %4550 = vmatpush1.msra.mxu0 %v4496
  %4551 = vmatprep.subr.mxu0 0.0
  %4552 = vmatpush1.msra.mxu0 %v4497
  %4553 = vmatprep.subr.mxu0 0.0
  %4554 = vmatpush1.msra.mxu0 %v4498
  %4555 = vmatprep.subr.mxu0 0.0
  %4556 = vmatpush1.msra.mxu0 %v4499
  %4557 = vmatprep.subr.mxu0 0.0
  %4558 = vmatpush1.msra.mxu0 %v4500
  %4559 = vmatprep.subr.mxu0 0.0
  %4560 = vmatpush1.msra.mxu0 %v4509
  %4561 = vmatprep.subr.mxu0 0.0
  %4562 = vmatpush1.msra.mxu0 0.0
  %4563 = vmatprep.subr.mxu0 0.0
  %4564 = vmatpush1.msra.mxu0 0.0
  %4565 = vmatprep.subr.mxu0 0.0
  %4566 = vmatpush1.msra.mxu0 0.0
  %4567 = vmatprep.subr.mxu0 0.0
  %4568 = vmatpush1.msra.mxu0 0.0
  %4569 = vmatprep.subr.mxu0 0.0
  %4570 = vmatpush1.msra.mxu0 0.0
  %4571 = vmatprep.subr.mxu0 0.0
  %4572 = vmatpush1.msra.mxu0 0.0
  %4573 = vmatprep.subr.mxu0 0.0
  %4574 = vmatpush1.msra.mxu0 0.0
  %4575 = vmatprep.mubr.f32.mxu0 %v4503
  %4576 = vmatmul.mubr.f32.gmra.mrb[0].mxu0 %v4469
  %v4577 = vpop.f32.mrb[0].mxu0
  %v4578 = vadd.f32 0.0, %v4577
  %v4579 = vpop.f32.mrb[0].mxu0
  %4580 = vmatprep.mubr.f32.mxu0 %v4506
  %4581 = vmatmul.mubr.f32.gmra.mrb[0].mxu0 %v4473
  %v4582 = vpop.f32.mrb[0].mxu0
  %v4583 = vadd.f32 0.0, %v4582
  %v4584 = vpop.f32.mrb[0].mxu0
  %4585 = vdwg.mxu0
  %4590 = vrot.lane.b32.xlu0 %v4470, 60
  %v4591 = vpop.permute.xlu0 %4590
  %4592 = vrot.lane.b32.xlu0 %v4471, 60
  %v4593 = vpop.permute.xlu0 %4592
  %4594 = vrot.lane.b32.xlu0 %v4472, 60
  %v4595 = vpop.permute.xlu0 %4594
  %4596 = vrot.lane.b32.xlu0 %v4474, 60
  %v4597 = vpop.permute.xlu0 %4596
  %4598 = vrot.lane.b32.xlu0 %v4475, 60
  %v4599 = vpop.permute.xlu0 %4598
  %4600 = vrot.lane.b32.xlu0 %v4476, 60
  %v4601 = vpop.permute.xlu0 %4600
  %v4602 = vsel %vm1879, %v4591, %v4593
  %v4603 = vsel %vm1879, %v4593, %v4595
  %v4604 = vsel %vm1879, %v4597, %v4599
  %v4605 = vsel %vm1879, %v4599, %v4601
  %v4608 = vsel %vm3897, %v4603, 0
  %v4610 = vsel %vm3897, %v4605, 0
  %4612 = vmatprep.subr.mxu0 0.0
  %4613 = vmatpush1.msra.mxu0 %v4477
  %4614 = vmatprep.subr.mxu0 0.0
  %4615 = vmatpush1.msra.mxu0 %v4478
  %4616 = vmatprep.subr.mxu0 0.0
  %4617 = vmatpush1.msra.mxu0 %v4479
  %4618 = vmatprep.subr.mxu0 0.0
  %4619 = vmatpush1.msra.mxu0 %v4480
  %4620 = vmatprep.subr.mxu0 0.0
  %4621 = vmatpush1.msra.mxu0 %v4481
  %4622 = vmatprep.subr.mxu0 0.0
  %4623 = vmatpush1.msra.mxu0 %v4482
  %4624 = vmatprep.subr.mxu0 0.0
  %4625 = vmatpush1.msra.mxu0 %v4483
  %4626 = vmatprep.subr.mxu0 0.0
  %4627 = vmatpush1.msra.mxu0 %v4484
  %4628 = vmatprep.subr.mxu0 0.0
  %4629 = vmatpush1.msra.mxu0 %v4485
  %4630 = vmatprep.subr.mxu0 0.0
  %4631 = vmatpush1.msra.mxu0 %v4486
  %4632 = vmatprep.subr.mxu0 0.0
  %4633 = vmatpush1.msra.mxu0 %v4487
  %4634 = vmatprep.subr.mxu0 0.0
  %4635 = vmatpush1.msra.mxu0 %v4488
  %4636 = vmatprep.subr.mxu0 0.0
  %4637 = vmatpush1.msra.mxu0 %v4489
  %4638 = vmatprep.subr.mxu0 0.0
  %4639 = vmatpush1.msra.mxu0 %v4490
  %4640 = vmatprep.subr.mxu0 0.0
  %4641 = vmatpush1.msra.mxu0 %v4491
  %4642 = vmatprep.subr.mxu0 0.0
  %4643 = vmatpush1.msra.mxu0 %v4492
  %4644 = vmatprep.subr.mxu0 0.0
  %4645 = vmatpush1.msra.mxu0 %v4493
  %4646 = vmatprep.subr.mxu0 0.0
  %4647 = vmatpush1.msra.mxu0 %v4494
  %4648 = vmatprep.subr.mxu0 0.0
  %4649 = vmatpush1.msra.mxu0 %v4495
  %4650 = vmatprep.subr.mxu0 0.0
  %4651 = vmatpush1.msra.mxu0 %v4496
  %4652 = vmatprep.subr.mxu0 0.0
  %4653 = vmatpush1.msra.mxu0 %v4497
  %4654 = vmatprep.subr.mxu0 0.0
  %4655 = vmatpush1.msra.mxu0 %v4498
  %4656 = vmatprep.subr.mxu0 0.0
  %4657 = vmatpush1.msra.mxu0 %v4499
  %4658 = vmatprep.subr.mxu0 0.0
  %4659 = vmatpush1.msra.mxu0 %v4500
  %4660 = vmatprep.subr.mxu0 0.0
  %4661 = vmatpush1.msra.mxu0 %v4509
  %4662 = vmatprep.subr.mxu0 0.0
  %4663 = vmatpush1.msra.mxu0 0.0
  %4664 = vmatprep.subr.mxu0 0.0
  %4665 = vmatpush1.msra.mxu0 0.0
  %4666 = vmatprep.subr.mxu0 0.0
  %4667 = vmatpush1.msra.mxu0 0.0
  %4668 = vmatprep.subr.mxu0 0.0
  %4669 = vmatpush1.msra.mxu0 0.0
  %4670 = vmatprep.subr.mxu0 0.0
  %4671 = vmatpush1.msra.mxu0 0.0
  %4672 = vmatprep.subr.mxu0 0.0
  %4673 = vmatpush1.msra.mxu0 0.0
  %4674 = vmatprep.subr.mxu0 0.0
  %4675 = vmatpush1.msra.mxu0 0.0
  %4676 = vmatprep.mubr.f32.mxu0 %v4608
  %4677 = vmatmul.mubr.f32.gmra.mrb[0].mxu0 %v4602
  %v4678 = vpop.f32.mrb[0].mxu0
  %v4679 = vadd.f32 0.0, %v4678
  %v4680 = vpop.f32.mrb[0].mxu0
  %4681 = vmatprep.mubr.f32.mxu0 %v4610
  %4682 = vmatmul.mubr.f32.gmra.mrb[0].mxu0 %v4604
  %v4683 = vpop.f32.mrb[0].mxu0
  %v4684 = vadd.f32 0.0, %v4683
  %v4685 = vpop.f32.mrb[0].mxu0
  %4686 = vdwg.mxu0
  %4689 = vrot.lane.b32.xlu0 %v4679, 25
  %v4690 = vpop.permute.xlu0 %4689
  %4691 = vrot.lane.b32.xlu0 %v4684, 25
  %v4692 = vpop.permute.xlu0 %4691
  %vm4695 = vcmask 203776
  %v4696 = vsel %vm4695, %v4578, %v4690
  %v4697 = vsel %vm4695, %v4583, %v4692
  %4700 = vrot.lane.b32.xlu0 %v4696, 127
  %v4701 = vpop.permute.xlu0 %4700
  %4702 = vrot.lane.b32.xlu0 %v4697, 127
  %v4703 = vpop.permute.xlu0 %4702
  %4706 = vrot.lane.b32.xlu0 %v4696, 126
  %v4707 = vpop.permute.xlu0 %4706
  %4708 = vrot.lane.b32.xlu0 %v4697, 126
  %v4709 = vpop.permute.xlu0 %4708
  %4712 = vrot.lane.b32.xlu0 %v4696, 125
  %v4713 = vpop.permute.xlu0 %4712
  %4714 = vrot.lane.b32.xlu0 %v4697, 125
  %v4715 = vpop.permute.xlu0 %4714
  %4718 = vrot.lane.b32.xlu0 %v4696, 124
  %v4719 = vpop.permute.xlu0 %4718
  %4720 = vrot.lane.b32.xlu0 %v4697, 124
  %v4721 = vpop.permute.xlu0 %4720
  %4724 = vrot.lane.b32.xlu0 %v4696, 123
  %v4725 = vpop.permute.xlu0 %4724
  %4726 = vrot.lane.b32.xlu0 %v4697, 123
  %v4727 = vpop.permute.xlu0 %4726
  %4730 = vrot.lane.b32.xlu0 %v4696, 122
  %v4731 = vpop.permute.xlu0 %4730
  %4732 = vrot.lane.b32.xlu0 %v4697, 122
  %v4733 = vpop.permute.xlu0 %4732
  %4736 = vrot.lane.b32.xlu0 %v4696, 121
  %v4737 = vpop.permute.xlu0 %4736
  %4738 = vrot.lane.b32.xlu0 %v4697, 121
  %v4739 = vpop.permute.xlu0 %4738
  %4742 = vrot.lane.b32.xlu0 %v4696, 120
  %v4743 = vpop.permute.xlu0 %4742
  %4744 = vrot.lane.b32.xlu0 %v4697, 120
  %v4745 = vpop.permute.xlu0 %4744
  %4748 = vrot.lane.b32.xlu0 %v4696, 119
  %v4749 = vpop.permute.xlu0 %4748
  %4750 = vrot.lane.b32.xlu0 %v4697, 119
  %v4751 = vpop.permute.xlu0 %4750
  %4754 = vrot.lane.b32.xlu0 %v4696, 118
  %v4755 = vpop.permute.xlu0 %4754
  %4756 = vrot.lane.b32.xlu0 %v4697, 118
  %v4757 = vpop.permute.xlu0 %4756
  %4760 = vrot.lane.b32.xlu0 %v4696, 117
  %v4761 = vpop.permute.xlu0 %4760
  %4762 = vrot.lane.b32.xlu0 %v4697, 117
  %v4763 = vpop.permute.xlu0 %4762
  %4766 = vrot.lane.b32.xlu0 %v4696, 116
  %v4767 = vpop.permute.xlu0 %4766
  %4768 = vrot.lane.b32.xlu0 %v4697, 116
  %v4769 = vpop.permute.xlu0 %4768
  %4772 = vrot.lane.b32.xlu0 %v4696, 115
  %v4773 = vpop.permute.xlu0 %4772
  %4774 = vrot.lane.b32.xlu0 %v4697, 115
  %v4775 = vpop.permute.xlu0 %4774
  %4778 = vrot.lane.b32.xlu0 %v4696, 114
  %v4779 = vpop.permute.xlu0 %4778
  %4780 = vrot.lane.b32.xlu0 %v4697, 114
  %v4781 = vpop.permute.xlu0 %4780
  %4784 = vrot.lane.b32.xlu0 %v4696, 113
  %v4785 = vpop.permute.xlu0 %4784
  %4786 = vrot.lane.b32.xlu0 %v4697, 113
  %v4787 = vpop.permute.xlu0 %4786
  %4790 = vrot.lane.b32.xlu0 %v4696, 112
  %v4791 = vpop.permute.xlu0 %4790
  %4792 = vrot.lane.b32.xlu0 %v4697, 112
  %v4793 = vpop.permute.xlu0 %4792
  %4794 = vrot.lane.b32.xlu0 %v4701, 112
  %v4795 = vpop.permute.xlu0 %4794
  %4796 = vrot.lane.b32.xlu0 %v4703, 112
  %v4797 = vpop.permute.xlu0 %4796
  %4798 = vrot.lane.b32.xlu0 %v4707, 112
  %v4799 = vpop.permute.xlu0 %4798
  %4800 = vrot.lane.b32.xlu0 %v4709, 112
  %v4801 = vpop.permute.xlu0 %4800
  %4802 = vrot.lane.b32.xlu0 %v4713, 112
  %v4803 = vpop.permute.xlu0 %4802
  %4804 = vrot.lane.b32.xlu0 %v4715, 112
  %v4805 = vpop.permute.xlu0 %4804
  %4806 = vrot.lane.b32.xlu0 %v4719, 112
  %v4807 = vpop.permute.xlu0 %4806
  %4808 = vrot.lane.b32.xlu0 %v4721, 112
  %v4809 = vpop.permute.xlu0 %4808
  %4810 = vrot.lane.b32.xlu0 %v4725, 112
  %v4811 = vpop.permute.xlu0 %4810
  %4812 = vrot.lane.b32.xlu0 %v4727, 112
  %v4813 = vpop.permute.xlu0 %4812
  %4814 = vrot.lane.b32.xlu0 %v4731, 112
  %v4815 = vpop.permute.xlu0 %4814
  %4816 = vrot.lane.b32.xlu0 %v4733, 112
  %v4817 = vpop.permute.xlu0 %4816
  %4818 = vrot.lane.b32.xlu0 %v4737, 112
  %v4819 = vpop.permute.xlu0 %4818
  %4820 = vrot.lane.b32.xlu0 %v4739, 112
  %v4821 = vpop.permute.xlu0 %4820
  %4822 = vrot.lane.b32.xlu0 %v4743, 112
  %v4823 = vpop.permute.xlu0 %4822
  %4824 = vrot.lane.b32.xlu0 %v4745, 112
  %v4825 = vpop.permute.xlu0 %4824
  %v4844 = vld [vmem:[%s7] sm:$0xff]
  %v4845 = vld [vmem:[%s7 + $0x8] sm:$0xff]
  %v4846 = vld [vmem:[%s7 + $0x10] sm:$0xff]
  %v4847 = vld [vmem:[%s7 + $0x18] sm:$0xff]
  %v4848 = vld [vmem:[%s7 + $0x20] sm:$0xff]
  %v4849 = vld [vmem:[%s7 + $0x28] sm:$0xff]
  %v4850 = vld [vmem:[%s7 + $0x30] sm:$0xff]
  %v4851 = vld [vmem:[%s7 + $0x38] sm:$0xff]
  %v4852 = vld [vmem:[%s7 + $0x40] sm:$0xff]
  %v4853 = vld [vmem:[%s7 + $0x48] sm:$0xff]
  %v4854 = vld [vmem:[%s7 + $0x50] sm:$0xff]
  %v4855 = vld [vmem:[%s7 + $0x58] sm:$0xff]
  %v4856 = vld [vmem:[%s7 + $0x60] sm:$0xff]
  %v4857 = vld [vmem:[%s7 + $0x68] sm:$0xff]
  %v4858 = vld [vmem:[%s7 + $0x70] sm:$0xff]
  %v4859 = vld [vmem:[%s7 + $0x78] sm:$0xff]
  %v4860 = vld [vmem:[%s7 + $0x80] sm:$0xff]
  %v4861 = vld [vmem:[%s7 + $0x88] sm:$0xff]
  %v4862 = vld [vmem:[%s7 + $0x90] sm:$0xff]
  %v4863 = vld [vmem:[%s7 + $0x98] sm:$0xff]
  %v4864 = vld [vmem:[%s7 + $0xa0] sm:$0xff]
  %v4865 = vld [vmem:[%s7 + $0xa8] sm:$0xff]
  %v4866 = vld [vmem:[%s7 + $0xb0] sm:$0xff]
  %v4867 = vld [vmem:[%s7 + $0xb8] sm:$0xff]
  %v4868 = vld [vmem:[%s7 + $0xc0] sm:$0xff]
  %v4869 = vld [vmem:[%s7 + $0xc8] sm:$0xff]
  %v4870 = vld [vmem:[%s7 + $0xd0] sm:$0xff]
  %v4871 = vld [vmem:[%s7 + $0xd8] sm:$0xff]
  %v4872 = vld [vmem:[%s7 + $0xe0] sm:$0xff]
  %v4873 = vld [vmem:[%s7 + $0xe8] sm:$0xff]
  %v4874 = vpack.c.bf16 %v4697, %v4696
  %v4875 = vpack.c.bf16 %v4703, %v4701
  %v4876 = vpack.c.bf16 %v4709, %v4707
  %v4877 = vpack.c.bf16 %v4715, %v4713
  %v4878 = vpack.c.bf16 %v4721, %v4719
  %v4879 = vpack.c.bf16 %v4727, %v4725
  %v4880 = vpack.c.bf16 %v4733, %v4731
  %v4881 = vpack.c.bf16 %v4739, %v4737
  %v4882 = vpack.c.bf16 %v4745, %v4743
  %v4883 = vpack.c.bf16 %v4751, %v4749
  %v4884 = vpack.c.bf16 %v4757, %v4755
  %v4885 = vpack.c.bf16 %v4763, %v4761
  %v4886 = vpack.c.bf16 %v4769, %v4767
  %v4887 = vpack.c.bf16 %v4775, %v4773
  %v4888 = vpack.c.bf16 %v4781, %v4779
  %v4889 = vpack.c.bf16 %v4787, %v4785
  %v4890 = vpack.c.bf16 %v4793, %v4791
  %v4891 = vpack.c.bf16 %v4797, %v4795
  %v4892 = vpack.c.bf16 %v4801, %v4799
  %v4893 = vpack.c.bf16 %v4805, %v4803
  %v4894 = vpack.c.bf16 %v4809, %v4807
  %v4895 = vpack.c.bf16 %v4813, %v4811
  %v4896 = vpack.c.bf16 %v4817, %v4815
  %v4897 = vpack.c.bf16 %v4821, %v4819
  %v4898 = vpack.c.bf16 %v4825, %v4823
  %v4899 = vld [vmem:[%s8] sm:$0xff]
  %v4900 = vld [vmem:[%s8 + $0x8] sm:$0xff]
  %v4901 = vld [vmem:[%s8 + $0x10] sm:$0xff]
  %v4902 = vld [vmem:[%s8 + $0x18] sm:$0xff]
  %v4903 = vld [vmem:[%s8 + $0x20] sm:$0xff]
  %v4904 = vld [vmem:[%s8 + $0x28] sm:$0xff]
  %v4905 = vld [vmem:[%s8 + $0x30] sm:$0xff]
  %v4906 = vld [vmem:[%s8 + $0x38] sm:$0xff]
  %v4907 = vld [vmem:[%s8 + $0x40] sm:$0xff]
  %v4908 = vld [vmem:[%s8 + $0x48] sm:$0xff]
  %v4909 = vld [vmem:[%s8 + $0x50] sm:$0xff]
  %v4910 = vld [vmem:[%s8 + $0x58] sm:$0xff]
  %v4911 = vld [vmem:[%s8 + $0x60] sm:$0xff]
  %v4912 = vld [vmem:[%s8 + $0x68] sm:$0xff]
  %v4913 = vld [vmem:[%s8 + $0x70] sm:$0xff]
  %4915 = vset.pattern.permute.xlu0 0
  %4916 = vperm.xlu0 %4915, %v4899
  %v4917 = vpop.permute.xlu0 %4916
  %4920 = vset.pattern.permute.xlu0 0
  %4921 = vperm.xlu0 %4920, %v4900
  %v4922 = vpop.permute.xlu0 %4921
  %4925 = vset.pattern.permute.xlu0 0
  %4926 = vperm.xlu0 %4925, %v4901
  %v4927 = vpop.permute.xlu0 %4926
  %4930 = vset.pattern.permute.xlu0 0
  %4931 = vperm.xlu0 %4930, %v4902
  %v4932 = vpop.permute.xlu0 %4931
  %4935 = vset.pattern.permute.xlu0 0
  %4936 = vperm.xlu0 %4935, %v4903
  %v4937 = vpop.permute.xlu0 %4936
  %4940 = vset.pattern.permute.xlu0 0
  %4941 = vperm.xlu0 %4940, %v4904
  %v4942 = vpop.permute.xlu0 %4941
  %4945 = vset.pattern.permute.xlu0 0
  %4946 = vperm.xlu0 %4945, %v4905
  %v4947 = vpop.permute.xlu0 %4946
  %4950 = vset.pattern.permute.xlu0 0
  %4951 = vperm.xlu0 %4950, %v4906
  %v4952 = vpop.permute.xlu0 %4951
  %4955 = vset.pattern.permute.xlu0 0
  %4956 = vperm.xlu0 %4955, %v4907
  %v4957 = vpop.permute.xlu0 %4956
  %4960 = vset.pattern.permute.xlu0 0
  %4961 = vperm.xlu0 %4960, %v4908
  %v4962 = vpop.permute.xlu0 %4961
  %4965 = vset.pattern.permute.xlu0 0
  %4966 = vperm.xlu0 %4965, %v4909
  %v4967 = vpop.permute.xlu0 %4966
  %4970 = vset.pattern.permute.xlu0 0
  %4971 = vperm.xlu0 %4970, %v4910
  %v4972 = vpop.permute.xlu0 %4971
  %4975 = vset.pattern.permute.xlu0 0
  %4976 = vperm.xlu0 %4975, %v4911
  %v4977 = vpop.permute.xlu0 %4976
  %4980 = vset.pattern.permute.xlu0 0
  %4981 = vperm.xlu0 %4980, %v4912
  %v4982 = vpop.permute.xlu0 %4981
  %4985 = vset.pattern.permute.xlu0 0
  %4986 = vperm.xlu0 %4985, %v4913
  %v4987 = vpop.permute.xlu0 %4986
  %v5019 = vunpack.c.l.b16 %v4844
  %v5020 = vunpack.c.h.b16 %v4844
  %v5021 = vunpack.c.l.b16 %v4845
  %v5022 = vunpack.c.h.b16 %v4845
  %v5023 = vunpack.c.l.b16 %v4846
  %v5024 = vunpack.c.h.b16 %v4846
  %v5025 = vunpack.c.l.b16 %v4847
  %v5026 = vunpack.c.h.b16 %v4847
  %v5027 = vunpack.c.l.b16 %v4848
  %v5028 = vunpack.c.h.b16 %v4848
  %v5029 = vunpack.c.l.b16 %v4849
  %v5030 = vunpack.c.h.b16 %v4849
  %v5031 = vunpack.c.l.b16 %v4850
  %v5032 = vunpack.c.h.b16 %v4850
  %v5033 = vunpack.c.l.b16 %v4851
  %v5034 = vunpack.c.h.b16 %v4851
  %v5035 = vunpack.c.l.b16 %v4852
  %v5036 = vunpack.c.h.b16 %v4852
  %v5037 = vunpack.c.l.b16 %v4853
  %v5038 = vunpack.c.h.b16 %v4853
  %v5039 = vunpack.c.l.b16 %v4854
  %v5040 = vunpack.c.h.b16 %v4854
  %v5041 = vunpack.c.l.b16 %v4855
  %v5042 = vunpack.c.h.b16 %v4855
  %v5043 = vunpack.c.l.b16 %v4856
  %v5044 = vunpack.c.h.b16 %v4856
  %v5045 = vunpack.c.l.b16 %v4857
  %v5046 = vunpack.c.h.b16 %v4857
  %v5047 = vunpack.c.l.b16 %v4858
  %v5048 = vunpack.c.h.b16 %v4858
  %v5049 = vunpack.c.l.b16 %v4859
  %v5050 = vunpack.c.h.b16 %v4859
  %v5051 = vunpack.c.l.b16 %v4860
  %v5052 = vunpack.c.h.b16 %v4860
  %v5053 = vunpack.c.l.b16 %v4861
  %v5054 = vunpack.c.h.b16 %v4861
  %v5055 = vunpack.c.l.b16 %v4862
  %v5056 = vunpack.c.h.b16 %v4862
  %v5057 = vunpack.c.l.b16 %v4863
  %v5058 = vunpack.c.h.b16 %v4863
  %v5059 = vunpack.c.l.b16 %v4864
  %v5060 = vunpack.c.h.b16 %v4864
  %v5061 = vunpack.c.l.b16 %v4865
  %v5062 = vunpack.c.h.b16 %v4865
  %v5063 = vunpack.c.l.b16 %v4866
  %v5064 = vunpack.c.h.b16 %v4866
  %v5065 = vunpack.c.l.b16 %v4867
  %v5066 = vunpack.c.h.b16 %v4867
  %v5067 = vunpack.c.l.b16 %v4868
  %v5068 = vunpack.c.h.b16 %v4868
  %v5069 = vunpack.c.l.b16 %v4869
  %v5070 = vunpack.c.h.b16 %v4869
  %v5071 = vunpack.c.l.b16 %v4870
  %v5072 = vunpack.c.h.b16 %v4870
  %v5073 = vunpack.c.l.b16 %v4871
  %v5074 = vunpack.c.h.b16 %v4871
  %v5075 = vunpack.c.l.b16 %v4872
  %v5076 = vunpack.c.h.b16 %v4872
  %v5077 = vunpack.c.l.b16 %v4873
  %v5078 = vunpack.c.h.b16 %v4873
  %v5079 = vpack.c.b16 %v5023, %v5019
  %v5080 = vpack.c.b16 %v5024, %v5020
  %v5081 = vpack.c.b16 %v5025, %v5021
  %v5082 = vpack.c.b16 %v5026, %v5022
  %v5083 = vpack.c.b16 %v5031, %v5027
  %v5084 = vpack.c.b16 %v5032, %v5028
  %v5085 = vpack.c.b16 %v5033, %v5029
  %v5086 = vpack.c.b16 %v5034, %v5030
  %v5087 = vpack.c.b16 %v5039, %v5035
  %v5088 = vpack.c.b16 %v5040, %v5036
  %v5089 = vpack.c.b16 %v5041, %v5037
  %v5090 = vpack.c.b16 %v5042, %v5038
  %v5091 = vpack.c.b16 %v5047, %v5043
  %v5092 = vpack.c.b16 %v5048, %v5044
  %v5093 = vpack.c.b16 %v5049, %v5045
  %v5094 = vpack.c.b16 %v5050, %v5046
  %v5095 = vpack.c.b16 %v5055, %v5051
  %v5096 = vpack.c.b16 %v5056, %v5052
  %v5097 = vpack.c.b16 %v5057, %v5053
  %v5098 = vpack.c.b16 %v5058, %v5054
  %v5099 = vpack.c.b16 %v5063, %v5059
  %v5100 = vpack.c.b16 %v5064, %v5060
  %v5101 = vpack.c.b16 %v5065, %v5061
  %v5102 = vpack.c.b16 %v5066, %v5062
  %v5103 = vpack.c.b16 %v5071, %v5067
  %v5104 = vpack.c.b16 %v5072, %v5068
  %v5105 = vpack.c.b16 %v5073, %v5069
  %v5106 = vpack.c.b16 %v5074, %v5070
  %v5107 = vpack.c.b16 %v5075, %v5075
  %v5108 = vpack.c.b16 %v5076, %v5076
  %v5109 = vpack.c.b16 %v5077, %v5077
  %v5110 = vpack.c.b16 %v5078, %v5078
  %vm5135 = vcmask 130048
  %v5137 = vsel %vm5135, %v5082, 0
  %v5140 = vsel %vm5135, %v5086, 0
  %v5143 = vsel %vm5135, %v5090, 0
  %v5146 = vsel %vm5135, %v5094, 0
  %v5149 = vsel %vm5135, %v5098, 0
  %v5152 = vsel %vm5135, %v5102, 0
  %v5155 = vsel %vm5135, %v5106, 0
  %v5158 = vsel %vm5135, %v5110, 0
  %5160 = vmatprep.subr.bf16.mxu0 0
  %5161 = vmatpush1.bf16.msra.mxu0 %v4874
  %5162 = vmatprep.subr.bf16.mxu0 0
  %5163 = vmatpush1.bf16.msra.mxu0 %v4875
  %5164 = vmatprep.subr.bf16.mxu0 0
  %5165 = vmatpush1.bf16.msra.mxu0 %v4876
  %5166 = vmatprep.subr.bf16.mxu0 0
  %5167 = vmatpush1.bf16.msra.mxu0 %v4877
  %5168 = vmatprep.subr.bf16.mxu0 0
  %5169 = vmatpush1.bf16.msra.mxu0 %v4878
  %5170 = vmatprep.subr.bf16.mxu0 0
  %5171 = vmatpush1.bf16.msra.mxu0 %v4879
  %5172 = vmatprep.subr.bf16.mxu0 0
  %5173 = vmatpush1.bf16.msra.mxu0 %v4880
  %5174 = vmatprep.subr.bf16.mxu0 0
  %5175 = vmatpush1.bf16.msra.mxu0 %v4881
  %5176 = vmatprep.subr.bf16.mxu0 0
  %5177 = vmatpush1.bf16.msra.mxu0 %v4882
  %5178 = vmatprep.subr.bf16.mxu0 0
  %5179 = vmatpush1.bf16.msra.mxu0 %v4883
  %5180 = vmatprep.subr.bf16.mxu0 0
  %5181 = vmatpush1.bf16.msra.mxu0 %v4884
  %5182 = vmatprep.subr.bf16.mxu0 0
  %5183 = vmatpush1.bf16.msra.mxu0 %v4885
  %5184 = vmatprep.subr.bf16.mxu0 0
  %5185 = vmatpush1.bf16.msra.mxu0 %v4886
  %5186 = vmatprep.subr.bf16.mxu0 0
  %5187 = vmatpush1.bf16.msra.mxu0 %v4887
  %5188 = vmatprep.subr.bf16.mxu0 0
  %5189 = vmatpush1.bf16.msra.mxu0 %v4888
  %5190 = vmatprep.subr.bf16.mxu0 0
  %5191 = vmatpush1.bf16.msra.mxu0 %v4889
  %5192 = vmatprep.mubr.bf16.mxu0 %v5080
  %5193 = vmatmul.mubr.bf16.gmra.mrb[0].mxu0 %v5079
  %v5194 = vpop.f32.mrb[0].mxu0
  %v5195 = vadd.f32 %v4917, %v5194
  %v5196 = vpop.f32.mrb[0].mxu0
  %v5197 = vpop.f32.mrb[0].mxu0
  %v5198 = vadd.f32 %v4922, %v5197
  %v5199 = vpop.f32.mrb[0].mxu0
  %5200 = vmatprep.mubr.bf16.mxu0 %v5084
  %5201 = vmatmul.mubr.bf16.gmra.mrb[0].mxu0 %v5083
  %v5202 = vpop.f32.mrb[0].mxu0
  %v5203 = vadd.f32 %v4927, %v5202
  %v5204 = vpop.f32.mrb[0].mxu0
  %v5205 = vpop.f32.mrb[0].mxu0
  %v5206 = vadd.f32 %v4932, %v5205
  %v5207 = vpop.f32.mrb[0].mxu0
  %5208 = vmatprep.mubr.bf16.mxu0 %v5088
  %5209 = vmatmul.mubr.bf16.gmra.mrb[0].mxu0 %v5087
  %v5210 = vpop.f32.mrb[0].mxu0
  %v5211 = vadd.f32 %v4937, %v5210
  %v5212 = vpop.f32.mrb[0].mxu0
  %v5213 = vpop.f32.mrb[0].mxu0
  %v5214 = vadd.f32 %v4942, %v5213
  %v5215 = vpop.f32.mrb[0].mxu0
  %5216 = vmatprep.mubr.bf16.mxu0 %v5092
  %5217 = vmatmul.mubr.bf16.gmra.mrb[0].mxu0 %v5091
  %v5218 = vpop.f32.mrb[0].mxu0
  %v5219 = vadd.f32 %v4947, %v5218
  %v5220 = vpop.f32.mrb[0].mxu0
  %v5221 = vpop.f32.mrb[0].mxu0
  %v5222 = vadd.f32 %v4952, %v5221
  %v5223 = vpop.f32.mrb[0].mxu0
  %5224 = vmatprep.mubr.bf16.mxu0 %v5096
  %5225 = vmatmul.mubr.bf16.gmra.mrb[0].mxu0 %v5095
  %v5226 = vpop.f32.mrb[0].mxu0
  %v5227 = vadd.f32 %v4957, %v5226
  %v5228 = vpop.f32.mrb[0].mxu0
  %v5229 = vpop.f32.mrb[0].mxu0
  %v5230 = vadd.f32 %v4962, %v5229
  %v5231 = vpop.f32.mrb[0].mxu0
  %5232 = vmatprep.mubr.bf16.mxu0 %v5100
  %5233 = vmatmul.mubr.bf16.gmra.mrb[0].mxu0 %v5099
  %v5234 = vpop.f32.mrb[0].mxu0
  %v5235 = vadd.f32 %v4967, %v5234
  %v5236 = vpop.f32.mrb[0].mxu0
  %v5237 = vpop.f32.mrb[0].mxu0
  %v5238 = vadd.f32 %v4972, %v5237
  %v5239 = vpop.f32.mrb[0].mxu0
  %5240 = vmatprep.mubr.bf16.mxu0 %v5104
  %5241 = vmatmul.mubr.bf16.gmra.mrb[0].mxu0 %v5103
  %v5242 = vpop.f32.mrb[0].mxu0
  %v5243 = vadd.f32 %v4977, %v5242
  %v5244 = vpop.f32.mrb[0].mxu0
  %v5245 = vpop.f32.mrb[0].mxu0
  %v5246 = vadd.f32 %v4982, %v5245
  %v5247 = vpop.f32.mrb[0].mxu0
  %5248 = vmatprep.mubr.bf16.mxu0 %v5108
  %5249 = vmatmul.mubr.bf16.gmra.mrb[0].mxu0 %v5107
  %v5250 = vpop.f32.mrb[0].mxu0
  %v5251 = vadd.f32 %v4987, %v5250
  %v5252 = vpop.f32.mrb[0].mxu0
  %v5253 = vpop.f32.mrb[0].mxu0
  %v5254 = vpop.f32.mrb[0].mxu0
  %5255 = vdwg.mxu0
  %5256 = vmatprep.subr.bf16.mxu0 0
  %5257 = vmatpush1.bf16.msra.mxu0 %v4890
  %5258 = vmatprep.subr.bf16.mxu0 0
  %5259 = vmatpush1.bf16.msra.mxu0 %v4891
  %5260 = vmatprep.subr.bf16.mxu0 0
  %5261 = vmatpush1.bf16.msra.mxu0 %v4892
  %5262 = vmatprep.subr.bf16.mxu0 0
  %5263 = vmatpush1.bf16.msra.mxu0 %v4893
  %5264 = vmatprep.subr.bf16.mxu0 0
  %5265 = vmatpush1.bf16.msra.mxu0 %v4894
  %5266 = vmatprep.subr.bf16.mxu0 0
  %5267 = vmatpush1.bf16.msra.mxu0 %v4895
  %5268 = vmatprep.subr.bf16.mxu0 0
  %5269 = vmatpush1.bf16.msra.mxu0 %v4896
  %5270 = vmatprep.subr.bf16.mxu0 0
  %5271 = vmatpush1.bf16.msra.mxu0 %v4897
  %5272 = vmatprep.subr.bf16.mxu0 0
  %5273 = vmatpush1.bf16.msra.mxu0 %v4898
  %5274 = vmatprep.subr.bf16.mxu0 0
  %5275 = vmatpush1.bf16.msra.mxu0 0
  %5276 = vmatprep.subr.bf16.mxu0 0
  %5277 = vmatpush1.bf16.msra.mxu0 0
  %5278 = vmatprep.subr.bf16.mxu0 0
  %5279 = vmatpush1.bf16.msra.mxu0 0
  %5280 = vmatprep.subr.bf16.mxu0 0
  %5281 = vmatpush1.bf16.msra.mxu0 0
  %5282 = vmatprep.subr.bf16.mxu0 0
  %5283 = vmatpush1.bf16.msra.mxu0 0
  %5284 = vmatprep.subr.bf16.mxu0 0
  %5285 = vmatpush1.bf16.msra.mxu0 0
  %5286 = vmatprep.subr.bf16.mxu0 0
  %5287 = vmatpush1.bf16.msra.mxu0 0
  %5288 = vmatprep.mubr.bf16.mxu0 %v5137
  %5289 = vmatmul.mubr.bf16.gmra.mrb[0].mxu0 %v5081
  %v5290 = vpop.f32.mrb[0].mxu0
  %v5291 = vadd.f32 %v5195, %v5290
  %v5292 = vpop.f32.mrb[0].mxu0
  %v5293 = vpop.f32.mrb[0].mxu0
  %v5294 = vadd.f32 %v5198, %v5293
  %v5295 = vpop.f32.mrb[0].mxu0
  %5296 = vmatprep.mubr.bf16.mxu0 %v5140
  %5297 = vmatmul.mubr.bf16.gmra.mrb[0].mxu0 %v5085
  %v5298 = vpop.f32.mrb[0].mxu0
  %v5299 = vadd.f32 %v5203, %v5298
  %v5300 = vpop.f32.mrb[0].mxu0
  %v5301 = vpop.f32.mrb[0].mxu0
  %v5302 = vadd.f32 %v5206, %v5301
  %v5303 = vpop.f32.mrb[0].mxu0
  %5304 = vmatprep.mubr.bf16.mxu0 %v5143
  %5305 = vmatmul.mubr.bf16.gmra.mrb[0].mxu0 %v5089
  %v5306 = vpop.f32.mrb[0].mxu0
  %v5307 = vadd.f32 %v5211, %v5306
  %v5308 = vpop.f32.mrb[0].mxu0
  %v5309 = vpop.f32.mrb[0].mxu0
  %v5310 = vadd.f32 %v5214, %v5309
  %v5311 = vpop.f32.mrb[0].mxu0
  %5312 = vmatprep.mubr.bf16.mxu0 %v5146
  %5313 = vmatmul.mubr.bf16.gmra.mrb[0].mxu0 %v5093
  %v5314 = vpop.f32.mrb[0].mxu0
  %v5315 = vadd.f32 %v5219, %v5314
  %v5316 = vpop.f32.mrb[0].mxu0
  %v5317 = vpop.f32.mrb[0].mxu0
  %v5318 = vadd.f32 %v5222, %v5317
  %v5319 = vpop.f32.mrb[0].mxu0
  %5320 = vmatprep.mubr.bf16.mxu0 %v5149
  %5321 = vmatmul.mubr.bf16.gmra.mrb[0].mxu0 %v5097
  %v5322 = vpop.f32.mrb[0].mxu0
  %v5323 = vadd.f32 %v5227, %v5322
  %v5324 = vpop.f32.mrb[0].mxu0
  %v5325 = vpop.f32.mrb[0].mxu0
  %v5326 = vadd.f32 %v5230, %v5325
  %v5327 = vpop.f32.mrb[0].mxu0
  %5328 = vmatprep.mubr.bf16.mxu0 %v5152
  %5329 = vmatmul.mubr.bf16.gmra.mrb[0].mxu0 %v5101
  %v5330 = vpop.f32.mrb[0].mxu0
  %v5331 = vadd.f32 %v5235, %v5330
  %v5332 = vpop.f32.mrb[0].mxu0
  %v5333 = vpop.f32.mrb[0].mxu0
  %v5334 = vadd.f32 %v5238, %v5333
  %v5335 = vpop.f32.mrb[0].mxu0
  %5336 = vmatprep.mubr.bf16.mxu0 %v5155
  %5337 = vmatmul.mubr.bf16.gmra.mrb[0].mxu0 %v5105
  %v5338 = vpop.f32.mrb[0].mxu0
  %v5339 = vadd.f32 %v5243, %v5338
  %v5340 = vpop.f32.mrb[0].mxu0
  %v5341 = vpop.f32.mrb[0].mxu0
  %v5342 = vadd.f32 %v5246, %v5341
  %v5343 = vpop.f32.mrb[0].mxu0
  %5344 = vmatprep.mubr.bf16.mxu0 %v5158
  %5345 = vmatmul.mubr.bf16.gmra.mrb[0].mxu0 %v5109
  %v5346 = vpop.f32.mrb[0].mxu0
  %v5347 = vadd.f32 %v5251, %v5346
  %v5348 = vpop.f32.mrb[0].mxu0
  %v5349 = vpop.f32.mrb[0].mxu0
  %v5350 = vpop.f32.mrb[0].mxu0
  %5351 = vdwg.mxu0
  %v5352 = vtanh.pop %v5291
  %v5353 = vtanh.pop %v5294
  %v5354 = vtanh.pop %v5299
  %v5355 = vtanh.pop %v5302
  %v5356 = vtanh.pop %v5307
  %v5357 = vtanh.pop %v5310
  %v5358 = vtanh.pop %v5315
  %v5359 = vtanh.pop %v5318
  %v5360 = vtanh.pop %v5323
  %v5361 = vtanh.pop %v5326
  %v5362 = vtanh.pop %v5331
  %v5363 = vtanh.pop %v5334
  %v5364 = vtanh.pop %v5339
  %v5365 = vtanh.pop %v5342
  %v5366 = vtanh.pop %v5347
  %5382 = vrot.lane.b32.xlu0 %v5352, 104
  %v5383 = vpop.permute.xlu0 %5382
  %5384 = vrot.lane.b32.xlu0 %v5353, 104
  %v5385 = vpop.permute.xlu0 %5384
  %5386 = vrot.lane.b32.xlu0 %v5354, 104
  %v5387 = vpop.permute.xlu0 %5386
  %5388 = vrot.lane.b32.xlu0 %v5355, 104
  %v5389 = vpop.permute.xlu0 %5388
  %5390 = vrot.lane.b32.xlu0 %v5356, 104
  %v5391 = vpop.permute.xlu0 %5390
  %5392 = vrot.lane.b32.xlu0 %v5357, 104
  %v5393 = vpop.permute.xlu0 %5392
  %5394 = vrot.lane.b32.xlu0 %v5358, 104
  %v5395 = vpop.permute.xlu0 %5394
  %5396 = vrot.lane.b32.xlu0 %v5359, 104
  %v5397 = vpop.permute.xlu0 %5396
  %5398 = vrot.lane.b32.xlu0 %v5360, 104
  %v5399 = vpop.permute.xlu0 %5398
  %5400 = vrot.lane.b32.xlu0 %v5361, 104
  %v5401 = vpop.permute.xlu0 %5400
  %5402 = vrot.lane.b32.xlu0 %v5362, 104
  %v5403 = vpop.permute.xlu0 %5402
  %5404 = vrot.lane.b32.xlu0 %v5363, 104
  %v5405 = vpop.permute.xlu0 %5404
  %5406 = vrot.lane.b32.xlu0 %v5364, 104
  %v5407 = vpop.permute.xlu0 %5406
  %5408 = vrot.lane.b32.xlu0 %v5365, 104
  %v5409 = vpop.permute.xlu0 %5408
  %5410 = vrot.lane.b32.xlu0 %v5366, 104
  %v5411 = vpop.permute.xlu0 %5410
  %vm5427 = vcmask 7168
  %v5428 = vsel %vm5427, %v5352, %v5383
  %v5429 = vsel %vm5427, %v5353, %v5385
  %v5430 = vsel %vm5427, %v5354, %v5387
  %v5431 = vsel %vm5427, %v5355, %v5389
  %v5432 = vsel %vm5427, %v5356, %v5391
  %v5433 = vsel %vm5427, %v5357, %v5393
  %v5434 = vsel %vm5427, %v5358, %v5395
  %v5435 = vsel %vm5427, %v5359, %v5397
  %v5436 = vsel %vm5427, %v5360, %v5399
  %v5437 = vsel %vm5427, %v5361, %v5401
  %v5438 = vsel %vm5427, %v5362, %v5403
  %v5439 = vsel %vm5427, %v5363, %v5405
  %v5440 = vsel %vm5427, %v5364, %v5407
  %v5441 = vsel %vm5427, %v5365, %v5409
  %v5442 = vsel %vm5427, %v5366, %v5411
  %v5443 = vld [vmem:[%s9] sm:$0xf]
  %v5444 = vld [vmem:[%s9 + $0x4] sm:$0xf]
  %v5445 = vld [vmem:[%s9 + $0x8] sm:$0xf]
  %v5446 = vld [vmem:[%s9 + $0xc] sm:$0xf]
  %v5447 = vld [vmem:[%s9 + $0x10] sm:$0xf]
  %v5448 = vld [vmem:[%s9 + $0x14] sm:$0xf]
  %v5449 = vld [vmem:[%s9 + $0x18] sm:$0xf]
  %v5450 = vld [vmem:[%s9 + $0x1c] sm:$0xf]
  %v5451 = vld [vmem:[%s9 + $0x20] sm:$0xf]
  %v5452 = vld [vmem:[%s9 + $0x24] sm:$0xf]
  %v5453 = vld [vmem:[%s9 + $0x28] sm:$0x3]
  %v5454 = vpack.c.bf16 %v5429, %v5428
  %v5455 = vpack.c.bf16 %v5431, %v5430
  %v5456 = vpack.c.bf16 %v5433, %v5432
  %v5457 = vpack.c.bf16 %v5435, %v5434
  %v5458 = vpack.c.bf16 %v5437, %v5436
  %v5459 = vpack.c.bf16 %v5439, %v5438
  %v5460 = vpack.c.bf16 %v5441, %v5440
  %v5461 = vpack.c.bf16 %v5442, %v5442
  %v5462 = vld [vmem:[%s10] sm:$0xff]
  %v5463 = vld [vmem:[%s10 + $0x8] sm:$0xff]
  %v5464 = vld [vmem:[%s10 + $0x10] sm:$0xff]
  %v5465 = vld [vmem:[%s10 + $0x18] sm:$0xff]
  %v5466 = vld [vmem:[%s10 + $0x20] sm:$0xff]
  %v5467 = vld [vmem:[%s10 + $0x28] sm:$0xff]
  %v5468 = vld [vmem:[%s10 + $0x30] sm:$0xff]
  %v5469 = vld [vmem:[%s10 + $0x38] sm:$0xff]
  %v5470 = vld [vmem:[%s10 + $0x40] sm:$0xff]
  %v5471 = vld [vmem:[%s10 + $0x48] sm:$0xff]
  %v5472 = vld [vmem:[%s10 + $0x50] sm:$0xf]
  %5474 = vset.pattern.permute.xlu0 0
  %5475 = vperm.xlu0 %5474, %v5462
  %v5476 = vpop.permute.xlu0 %5475
  %5479 = vset.pattern.permute.xlu0 0
  %5480 = vperm.xlu0 %5479, %v5463
  %v5481 = vpop.permute.xlu0 %5480
  %5484 = vset.pattern.permute.xlu0 0
  %5485 = vperm.xlu0 %5484, %v5464
  %v5486 = vpop.permute.xlu0 %5485
  %5489 = vset.pattern.permute.xlu0 0
  %5490 = vperm.xlu0 %5489, %v5465
  %v5491 = vpop.permute.xlu0 %5490
  %5494 = vset.pattern.permute.xlu0 0
  %5495 = vperm.xlu0 %5494, %v5466
  %v5496 = vpop.permute.xlu0 %5495
  %5499 = vset.pattern.permute.xlu0 0
  %5500 = vperm.xlu0 %5499, %v5467
  %v5501 = vpop.permute.xlu0 %5500
  %5504 = vset.pattern.permute.xlu0 0
  %5505 = vperm.xlu0 %5504, %v5468
  %v5506 = vpop.permute.xlu0 %5505
  %5509 = vset.pattern.permute.xlu0 0
  %5510 = vperm.xlu0 %5509, %v5469
  %v5511 = vpop.permute.xlu0 %5510
  %5514 = vset.pattern.permute.xlu0 0
  %5515 = vperm.xlu0 %5514, %v5470
  %v5516 = vpop.permute.xlu0 %5515
  %5519 = vset.pattern.permute.xlu0 0
  %5520 = vperm.xlu0 %5519, %v5471
  %v5521 = vpop.permute.xlu0 %5520
  %5524 = vset.pattern.permute.xlu0 0
  %5525 = vperm.xlu0 %5524, %v5472
  %v5526 = vpop.permute.xlu0 %5525
  %v5539 = vunpack.c.l.b16 %v5443
  %v5540 = vunpack.c.l.b16 %v5444
  %v5541 = vunpack.c.l.b16 %v5445
  %v5542 = vunpack.c.l.b16 %v5446
  %v5543 = vunpack.c.l.b16 %v5447
  %v5544 = vunpack.c.l.b16 %v5448
  %v5545 = vunpack.c.l.b16 %v5449
  %v5546 = vunpack.c.l.b16 %v5450
  %v5547 = vunpack.c.l.b16 %v5451
  %v5548 = vunpack.c.l.b16 %v5452
  %v5549 = vunpack.c.l.b16 %v5453
  %v5550 = vpack.c.b16 %v5540, %v5539
  %v5551 = vpack.c.b16 %v5542, %v5541
  %v5552 = vpack.c.b16 %v5544, %v5543
  %v5553 = vpack.c.b16 %v5546, %v5545
  %v5554 = vpack.c.b16 %v5548, %v5547
  %v5555 = vpack.c.b16 %v5549, %v5549
  %vm5556 = vcmask 982016
  %v5558 = vsel %vm5556, %v5550, 0
  %v5561 = vsel %vm5556, %v5551, 0
  %v5564 = vsel %vm5556, %v5552, 0
  %v5567 = vsel %vm5556, %v5553, 0
  %v5570 = vsel %vm5556, %v5554, 0
  %v5573 = vsel %vm5556, %v5555, 0
  %v5576 = vsel %vm4370, %v5461, 0
  %5578 = vmatprep.subr.bf16.mxu0 0
  %5579 = vmatpush1.bf16.msra.mxu0 %v5454
  %5580 = vmatprep.subr.bf16.mxu0 0
  %5581 = vmatpush1.bf16.msra.mxu0 %v5455
  %5582 = vmatprep.subr.bf16.mxu0 0
  %5583 = vmatpush1.bf16.msra.mxu0 %v5456
  %5584 = vmatprep.subr.bf16.mxu0 0
  %5585 = vmatpush1.bf16.msra.mxu0 %v5457
  %5586 = vmatprep.subr.bf16.mxu0 0
  %5587 = vmatpush1.bf16.msra.mxu0 %v5458
  %5588 = vmatprep.subr.bf16.mxu0 0
  %5589 = vmatpush1.bf16.msra.mxu0 %v5459
  %5590 = vmatprep.subr.bf16.mxu0 0
  %5591 = vmatpush1.bf16.msra.mxu0 %v5460
  %5592 = vmatprep.subr.bf16.mxu0 0
  %5593 = vmatpush1.bf16.msra.mxu0 %v5576
  %5594 = vmatprep.subr.bf16.mxu0 0
  %5595 = vmatpush1.bf16.msra.mxu0 0
  %5596 = vmatprep.subr.bf16.mxu0 0
  %5597 = vmatpush1.bf16.msra.mxu0 0
  %5598 = vmatprep.subr.bf16.mxu0 0
  %5599 = vmatpush1.bf16.msra.mxu0 0
  %5600 = vmatprep.subr.bf16.mxu0 0
  %5601 = vmatpush1.bf16.msra.mxu0 0
  %5602 = vmatprep.subr.bf16.mxu0 0
  %5603 = vmatpush1.bf16.msra.mxu0 0
  %5604 = vmatprep.subr.bf16.mxu0 0
  %5605 = vmatpush1.bf16.msra.mxu0 0
  %5606 = vmatprep.subr.bf16.mxu0 0
  %5607 = vmatpush1.bf16.msra.mxu0 0
  %5608 = vmatprep.subr.bf16.mxu0 0
  %5609 = vmatpush1.bf16.msra.mxu0 0
  %5610 = vmatprep.mubr.bf16.mxu0 0
  %5611 = vmatmul.mubr.bf16.gmra.mrb[0].mxu0 %v5558
  %v5612 = vpop.f32.mrb[0].mxu0
  %v5613 = vadd.f32 %v5476, %v5612
  %v5614 = vpop.f32.mrb[0].mxu0
  %v5615 = vpop.f32.mrb[0].mxu0
  %v5616 = vadd.f32 %v5481, %v5615
  %v5617 = vpop.f32.mrb[0].mxu0
  %5618 = vmatprep.mubr.bf16.mxu0 0
  %5619 = vmatmul.mubr.bf16.gmra.mrb[0].mxu0 %v5561
  %v5620 = vpop.f32.mrb[0].mxu0
  %v5621 = vadd.f32 %v5486, %v5620
  %v5622 = vpop.f32.mrb[0].mxu0
  %v5623 = vpop.f32.mrb[0].mxu0
  %v5624 = vadd.f32 %v5491, %v5623
  %v5625 = vpop.f32.mrb[0].mxu0
  %5626 = vmatprep.mubr.bf16.mxu0 0
  %5627 = vmatmul.mubr.bf16.gmra.mrb[0].mxu0 %v5564
  %v5628 = vpop.f32.mrb[0].mxu0
  %v5629 = vadd.f32 %v5496, %v5628
  %v5630 = vpop.f32.mrb[0].mxu0
  %v5631 = vpop.f32.mrb[0].mxu0
  %v5632 = vadd.f32 %v5501, %v5631
  %v5633 = vpop.f32.mrb[0].mxu0
  %5634 = vmatprep.mubr.bf16.mxu0 0
  %5635 = vmatmul.mubr.bf16.gmra.mrb[0].mxu0 %v5567
  %v5636 = vpop.f32.mrb[0].mxu0
  %v5637 = vadd.f32 %v5506, %v5636
  %v5638 = vpop.f32.mrb[0].mxu0
  %v5639 = vpop.f32.mrb[0].mxu0
  %v5640 = vadd.f32 %v5511, %v5639
  %v5641 = vpop.f32.mrb[0].mxu0
  %5642 = vmatprep.mubr.bf16.mxu0 0
  %5643 = vmatmul.mubr.bf16.gmra.mrb[0].mxu0 %v5570
  %v5644 = vpop.f32.mrb[0].mxu0
  %v5645 = vadd.f32 %v5516, %v5644
  %v5646 = vpop.f32.mrb[0].mxu0
  %v5647 = vpop.f32.mrb[0].mxu0
  %v5648 = vadd.f32 %v5521, %v5647
  %v5649 = vpop.f32.mrb[0].mxu0
  %5650 = vmatprep.mubr.bf16.mxu0 0
  %5651 = vmatmul.mubr.bf16.gmra.mrb[0].mxu0 %v5573
  %v5652 = vpop.f32.mrb[0].mxu0
  %v5653 = vadd.f32 %v5526, %v5652
  %v5654 = vpop.f32.mrb[0].mxu0
  %v5655 = vpop.f32.mrb[0].mxu0
  %v5656 = vpop.f32.mrb[0].mxu0
  %5657 = vdwg.mxu0
  %v5658 = vtanh.pop %v5613
  %v5659 = vtanh.pop %v5616
  %v5660 = vtanh.pop %v5621
  %v5661 = vtanh.pop %v5624
  %v5662 = vtanh.pop %v5629
  %v5663 = vtanh.pop %v5632
  %v5664 = vtanh.pop %v5637
  %v5665 = vtanh.pop %v5640
  %v5666 = vtanh.pop %v5645
  %v5667 = vtanh.pop %v5648
  %v5668 = vtanh.pop %v5653
  %v5669 = vld [vmem:[%s11] sm:$0xf]
  %v5670 = vld [vmem:[%s11 + $0x4] sm:$0x1]
  %v5671 = vpack.c.bf16 %v5659, %v5658
  %v5672 = vpack.c.bf16 %v5661, %v5660
  %v5673 = vpack.c.bf16 %v5663, %v5662
  %v5674 = vpack.c.bf16 %v5665, %v5664
  %v5675 = vpack.c.bf16 %v5667, %v5666
  %v5676 = vpack.c.bf16 %v5668, %v5668
  %v5677 = vld [vmem:[%s12] sm:$0xff]
  %v5678 = vld [vmem:[%s12 + $0x8] sm:$0x3]
  %5680 = vset.pattern.permute.xlu0 0
  %5681 = vperm.xlu0 %5680, %v5677
  %v5682 = vpop.permute.xlu0 %5681
  %5685 = vset.pattern.permute.xlu0 0
  %5686 = vperm.xlu0 %5685, %v5678
  %v5687 = vpop.permute.xlu0 %5686
  %v5691 = vunpack.c.l.b16 %v5669
  %v5692 = vunpack.c.l.b16 %v5670
  %v5693 = vpack.c.b16 %v5692, %v5691
  %vm5694 = vcmask 687104
  %v5696 = vsel %vm5694, %v5693, 0
  %vm5698 = vcmask 1041408
  %v5700 = vsel %vm5698, %v5676, 0
  %5702 = vmatprep.subr.bf16.mxu0 0
  %5703 = vmatpush1.bf16.msra.mxu0 %v5671
  %5704 = vmatprep.subr.bf16.mxu0 0
  %5705 = vmatpush1.bf16.msra.mxu0 %v5672
  %5706 = vmatprep.subr.bf16.mxu0 0
  %5707 = vmatpush1.bf16.msra.mxu0 %v5673
  %5708 = vmatprep.subr.bf16.mxu0 0
  %5709 = vmatpush1.bf16.msra.mxu0 %v5674
  %5710 = vmatprep.subr.bf16.mxu0 0
  %5711 = vmatpush1.bf16.msra.mxu0 %v5675
  %5712 = vmatprep.subr.bf16.mxu0 0
  %5713 = vmatpush1.bf16.msra.mxu0 %v5700
  %5714 = vmatprep.subr.bf16.mxu0 0
  %5715 = vmatpush1.bf16.msra.mxu0 0
  %5716 = vmatprep.subr.bf16.mxu0 0
  %5717 = vmatpush1.bf16.msra.mxu0 0
  %5718 = vmatprep.subr.bf16.mxu0 0
  %5719 = vmatpush1.bf16.msra.mxu0 0
  %5720 = vmatprep.subr.bf16.mxu0 0
  %5721 = vmatpush1.bf16.msra.mxu0 0
  %5722 = vmatprep.subr.bf16.mxu0 0
  %5723 = vmatpush1.bf16.msra.mxu0 0
  %5724 = vmatprep.subr.bf16.mxu0 0
  %5725 = vmatpush1.bf16.msra.mxu0 0
  %5726 = vmatprep.subr.bf16.mxu0 0
  %5727 = vmatpush1.bf16.msra.mxu0 0
  %5728 = vmatprep.subr.bf16.mxu0 0
  %5729 = vmatpush1.bf16.msra.mxu0 0
  %5730 = vmatprep.subr.bf16.mxu0 0
  %5731 = vmatpush1.bf16.msra.mxu0 0
  %5732 = vmatprep.subr.bf16.mxu0 0
  %5733 = vmatpush1.bf16.msra.mxu0 0
  %5734 = vmatprep.mubr.bf16.mxu0 0
  %5735 = vmatmul.mubr.bf16.gmra.mrb[0].mxu0 %v5696
  %v5736 = vpop.f32.mrb[0].mxu0
  %v5737 = vadd.f32 %v5682, %v5736
  %v5738 = vpop.f32.mrb[0].mxu0
  %v5739 = vpop.f32.mrb[0].mxu0
  %v5740 = vadd.f32 %v5687, %v5739
  %v5741 = vpop.f32.mrb[0].mxu0
  %5742 = vdwg.mxu0
  %vm5743 = vcmask 15360
  %5744 = vst.msk [vmem:[%s13] sm:$0xff] %vm5743, %v5737
  %vm5745 = vcmask 9216
  %5746 = vst.msk [vmem:[%s13 + $0x8] sm:$0x3] %vm5745, %v5740
  // Predicated region
  $region54: #{_lenet_forward_impl.1} parent=0 // pred_check
    _
  $region55: #{_lenet_forward_impl.1} parent=0 // pred_check_branch
    %5748 = sbr.rel (0) target = $region57
  $region56: #{_lenet_forward_impl.1} parent=0 // pred_region
    _
  $region57: #{_lenet_forward_impl.1} parent=0 // pred_fallthru
    _
  // Predicated region
  $region58: #{_lenet_forward_impl.1} parent=0 // pred_check
    _
  $region59: #{_lenet_forward_impl.1} parent=0 // pred_check_branch
    %5750 = sbr.rel (0) target = $region61
  $region60: #{_lenet_forward_impl.1} parent=0 // pred_region
    _
  $region61: #{_lenet_forward_impl.1} parent=0 // pred_fallthru
    _

</llo_original>
